<compile_context>
chip_gen: v7x
topology: tpu7x:2x2x1
jax: 0.10.0
libtpu: 0.0.40
codegen_flags: <defaults>
</compile_context>

<pallas_src>
import math
import jax
import jax.numpy as jnp
from jax.experimental import pallas as pl
from jax.experimental.pallas import tpu as pltpu


def _round_up(x, m):
    return ((x + m - 1) // m) * m


def _maybe_cast(x, dtype):
    return x if x.dtype == dtype else x.astype(dtype)


def _num_tensorcores_per_chip():
    # v7x packs 2 TensorCores per chip (sharded via the "parallel" grid axis);
    # v5e / v6e have 1.  Falls back to 1 if the device kind cannot be read.
    try:
        kind = jax.devices()[0].device_kind.lower()
    except Exception:
        return 1
    return 2 if "v7" in kind else 1


def mlp_kernel(x_ref, w1_ref, b1_ref, w2_ref, b2_ref, w3_ref, b3_ref, o_ref):
    """Fused 3-layer MLP for one row tile.

    x_ref : (tm, nhid)        activations (f32, cast to compute dtype in-kernel)
    w1_ref: (nhid, 2*nhid)    layer-1 weight (compute dtype, e.g. bf16)
    b1_ref: (1, 2*nhid)       layer-1 bias (f32)
    w2_ref: (2*nhid, 2*nhid)  layer-2 weight (compute dtype)
    b2_ref: (1, 2*nhid)       layer-2 bias (f32)
    w3_ref: (1, 2*nhid)       layer-3 weight as a row (f32)
    b3_ref: (1, 1)            layer-3 bias, SMEM scalar (f32)
    o_ref : (1, 1, tm)        lane-dense output block (f32)
    """
    cd = w1_ref.dtype
    x = _maybe_cast(x_ref[...], cd)

    # Layer 1 (MXU, f32 accumulation) + ReLU on the VPU.
    h1 = jnp.dot(x, w1_ref[...], preferred_element_type=jnp.float32) + b1_ref[...]
    h1 = jnp.maximum(h1, 0.0)

    # Layer 2.
    h2 = jnp.dot(_maybe_cast(h1, cd), w2_ref[...],
                 preferred_element_type=jnp.float32) + b2_ref[...]
    h2 = jnp.maximum(h2, 0.0)

    # Layer 3: single output column -> VPU multiply + XLU lane reduce (keeps the
    # MXU free); scalar bias folded in from SMEM; tm results stored lane-major.
    out = jnp.sum(h2 * w3_ref[...], axis=-1) + b3_ref[0, 0]     # (tm,)
    o_ref[...] = out.reshape(1, 1, -1).astype(o_ref.dtype)


def mlp_forward(x, params, *, tm=None, compute_dtype=jnp.bfloat16):
    """x: [N, nhid] float32.  params: dict of w1,b1,w2,b2,w3,b3 (f32 masters)."""
    N, nhid = x.shape

    # MXU-layer weights go in at the compute dtype (bf16 doubles MXU throughput
    # and halves weight traffic); biases, w3 row and accumulators stay f32.
    w1 = _maybe_cast(params["w1"], compute_dtype)
    w2 = _maybe_cast(params["w2"], compute_dtype)
    b1, b2 = params["b1"], params["b2"]
    w3, b3 = params["w3"], params["b3"]

    # Row tile: one grid step on single-TC chips (v5e/v6e), two equal steps on
    # v7x so both TensorCores stay busy; multiple of 8 (f32 sublane tiling),
    # capped to keep the x tile + intermediates comfortably inside VMEM.
    if tm is None:
        n_tc = _num_tensorcores_per_chip()
        tm = min(pl.cdiv(N, n_tc), 1024)
    tm = _round_up(max(8, min(tm, _round_up(N, 8))), 8)
    num_tiles = pl.cdiv(N, tm)

    # Explicit VMEM budget: 2x-buffered x tile + resident weights/biases +
    # f32 h1/h2 intermediates + output blocks, with 2x headroom; capped at
    # 56 MiB so it never exceeds v7x's 64 MiB physical VMEM.
    def _nbytes(a):
        return a.size * a.dtype.itemsize
    est = (2 * tm * nhid * x.dtype.itemsize
           + 2 * (_nbytes(w1) + _nbytes(w2) + _nbytes(b1) + _nbytes(b2) + _nbytes(w3))
           + 2 * 2 * tm * (2 * nhid) * 4
           + 2 * tm * 4)
    vmem_limit = int(min(max(2 * est, 32 * 1024 * 1024), 56 * 1024 * 1024))

    full = lambda i: (0, 0)
    out_lane = pl.pallas_call(
        mlp_kernel,
        out_shape=jax.ShapeDtypeStruct((num_tiles, 1, tm), jnp.float32),
        grid_spec=pltpu.PrefetchScalarGridSpec(
            num_scalar_prefetch=0,
            grid=(num_tiles,),
            in_specs=[
                pl.BlockSpec((tm, nhid), lambda i: (i, 0)),        # x row tile
                pl.BlockSpec(w1.shape, full),                      # w1 (resident)
                pl.BlockSpec(b1.shape, full),                      # b1
                pl.BlockSpec(w2.shape, full),                      # w2 (resident)
                pl.BlockSpec(b2.shape, full),                      # b2
                pl.BlockSpec(w3.shape, full),                      # w3 row
                pl.BlockSpec(memory_space=pltpu.MemorySpace.SMEM), # b3 scalar
            ],
            # Lane-dense output: tm results per step along the lane axis.
            out_specs=pl.BlockSpec((1, 1, tm), lambda i: (i, 0, 0)),
        ),
        compiler_params=pltpu.CompilerParams(
            dimension_semantics=("parallel",),   # v7x megacore shards row tiles
            vmem_limit_bytes=vmem_limit,
        ),
    )(x, w1, b1, w2, b2, w3, b3)

    # (num_tiles, 1, tm) -> (N, 1); padded tail rows (if any) are sliced off.
    return out_lane.reshape(num_tiles * tm, 1)[:N]


def init_params(key, nhid):
    """Deterministic init mirroring torch.nn.Linear default:
    U(-1/sqrt(fan_in), 1/sqrt(fan_in)) for both weight and bias."""
    def linear(key, fan_in, fan_out):
        kw, kb = jax.random.split(key)
        bound = 1.0 / math.sqrt(fan_in)
        w = jax.random.uniform(kw, (fan_in, fan_out), jnp.float32, -bound, bound)
        b = jax.random.uniform(kb, (1, fan_out), jnp.float32, -bound, bound)
        return w, b

    k1, k2, k3 = jax.random.split(key, 3)
    w1, b1 = linear(k1, nhid, 2 * nhid)
    w2, b2 = linear(k2, 2 * nhid, 2 * nhid)
    w3c, b3 = linear(k3, 2 * nhid, 1)
    return {"w1": w1, "b1": b1, "w2": w2, "b2": b2,
            "w3": w3c.T,   # layer-3 weight kept as a (1, 2*nhid) row
            "b3": b3}      # (1, 1)


def mlp_reference(x, p, compute_dtype=jnp.float32):
    cd = compute_dtype
    h1 = jnp.dot(x.astype(cd), p["w1"].astype(cd),
                 preferred_element_type=jnp.float32) + p["b1"]
    h1 = jnp.maximum(h1, 0.0)
    h2 = jnp.dot(h1.astype(cd), p["w2"].astype(cd),
                 preferred_element_type=jnp.float32) + p["b2"]
    h2 = jnp.maximum(h2, 0.0)
    return jnp.dot(h2, p["w3"].T, preferred_element_type=jnp.float32) + p["b3"]


if __name__ == "__main__":
    nhid = 64      # hidden width 2*nhid = 128 fills the 128-lane vregs exactly
    N = 512        # 1 grid step on v5e/v6e, 2 equal steps on v7x (auto tm)
    dropout = 0.5  # stored by the torch module but never applied in forward()

    key = jax.random.PRNGKey(0)
    kp, kx = jax.random.split(key)
    params = init_params(kp, nhid)
    x = jax.random.normal(kx, (N, nhid), jnp.float32)

    # Default bf16-MXU path, checked against a matched bf16-input / f32-accum reference.
    out = jax.block_until_ready(mlp_forward(x, params, compute_dtype=jnp.bfloat16))
    ref = mlp_reference(x, params, compute_dtype=jnp.bfloat16)
    assert out.shape == (N, 1)
    assert out.dtype == jnp.float32
    assert jnp.allclose(out, ref, atol=2e-3, rtol=2e-3), float(
        jnp.max(jnp.abs(out - ref)))

    # Full-f32 path (validation only; never ship for perf on v5e) for a tight check.
    out32 = jax.block_until_ready(mlp_forward(x, params, compute_dtype=jnp.float32))
    ref32 = mlp_reference(x, params, compute_dtype=jnp.float32)
    assert jnp.allclose(out32, ref32, atol=1e-4, rtol=1e-4), float(
        jnp.max(jnp.abs(out32 - ref32)))

    print("KERNEL_OK")
</pallas_src>

<mosaic_0001>
module attributes {stable_mosaic.version = 11 : i64} {
  func.func @mlp_kernel(%arg0: i32, %arg1: memref<512x64xf32, #tpu.memory_space<vmem>>, %arg2: memref<64x128xbf16, #tpu.memory_space<vmem>>, %arg3: memref<1x128xf32, #tpu.memory_space<vmem>>, %arg4: memref<128x128xbf16, #tpu.memory_space<vmem>>, %arg5: memref<1x128xf32, #tpu.memory_space<vmem>>, %arg6: memref<1x128xf32, #tpu.memory_space<vmem>>, %arg7: memref<1x1xf32, #tpu.memory_space<smem>>, %arg8: memref<1x1x512xf32, #tpu.memory_space<vmem>>) attributes {dimension_semantics = [#tpu.dimension_semantics<parallel>], iteration_bounds = array<i64: 1>, scalar_prefetch = 0 : i64, scratch_operands = 0 : i64, tpu.core_type = #tpu.core_type<tc>, window_params = [{transform_indices = @transform_0, window_bounds = array<i64: 512, 64>}, {pipeline_mode = #tpu.pipeline_mode<synchronous>, transform_indices = @transform_1, window_bounds = array<i64: 64, 128>}, {pipeline_mode = #tpu.pipeline_mode<synchronous>, transform_indices = @transform_2, window_bounds = array<i64: 1, 128>}, {pipeline_mode = #tpu.pipeline_mode<synchronous>, transform_indices = @transform_3, window_bounds = array<i64: 128, 128>}, {pipeline_mode = #tpu.pipeline_mode<synchronous>, transform_indices = @transform_4, window_bounds = array<i64: 1, 128>}, {pipeline_mode = #tpu.pipeline_mode<synchronous>, transform_indices = @transform_5, window_bounds = array<i64: 1, 128>}, {transform_indices = @transform_6, window_bounds = array<i64: 1, 1>}, {transform_indices = @transform_7, window_bounds = array<i64: 1, 1, 512>}]} {
    %c0 = arith.constant 0 : index
    %c0_0 = arith.constant 0 : index
    %0 = vector.load %arg1[%c0, %c0_0] : memref<512x64xf32, #tpu.memory_space<vmem>>, vector<512x64xf32>
    %1 = arith.truncf %0 : vector<512x64xf32> to vector<512x64xbf16>
    %c0_1 = arith.constant 0 : index
    %c0_2 = arith.constant 0 : index
    %2 = vector.load %arg2[%c0_1, %c0_2] : memref<64x128xbf16, #tpu.memory_space<vmem>>, vector<64x128xbf16>
    %cst = arith.constant dense<0.000000e+00> : vector<512x128xf32>
    %3 = tpu.matmul %1, %2, %cst {dimension_numbers = #tpu.dot_dimension_numbers<[1], [0], [0], [1], [0, 0, 1, 1], [], []>} : vector<512x64xbf16>, vector<64x128xbf16>, vector<512x128xf32> -> vector<512x128xf32>
    %c0_3 = arith.constant 0 : index
    %c0_4 = arith.constant 0 : index
    %4 = vector.load %arg3[%c0_3, %c0_4] : memref<1x128xf32, #tpu.memory_space<vmem>>, vector<1x128xf32>
    %5 = vector.broadcast %4 : vector<1x128xf32> to vector<512x128xf32>
    %6 = arith.addf %3, %5 : vector<512x128xf32>
    %cst_5 = arith.constant 0.000000e+00 : f32
    %7 = vector.broadcast %cst_5 : f32 to vector<512x128xf32>
    %8 = arith.maximumf %6, %7 : vector<512x128xf32>
    %9 = arith.truncf %8 : vector<512x128xf32> to vector<512x128xbf16>
    %c0_6 = arith.constant 0 : index
    %c0_7 = arith.constant 0 : index
    %10 = vector.load %arg4[%c0_6, %c0_7] : memref<128x128xbf16, #tpu.memory_space<vmem>>, vector<128x128xbf16>
    %cst_8 = arith.constant dense<0.000000e+00> : vector<512x128xf32>
    %11 = tpu.matmul %9, %10, %cst_8 {dimension_numbers = #tpu.dot_dimension_numbers<[1], [0], [0], [1], [0, 0, 1, 1], [], []>} : vector<512x128xbf16>, vector<128x128xbf16>, vector<512x128xf32> -> vector<512x128xf32>
    %c0_9 = arith.constant 0 : index
    %c0_10 = arith.constant 0 : index
    %12 = vector.load %arg5[%c0_9, %c0_10] : memref<1x128xf32, #tpu.memory_space<vmem>>, vector<1x128xf32>
    %13 = vector.broadcast %12 : vector<1x128xf32> to vector<512x128xf32>
    %14 = arith.addf %11, %13 : vector<512x128xf32>
    %cst_11 = arith.constant 0.000000e+00 : f32
    %15 = vector.broadcast %cst_11 : f32 to vector<512x128xf32>
    %16 = arith.maximumf %14, %15 : vector<512x128xf32>
    %c0_12 = arith.constant 0 : index
    %c0_13 = arith.constant 0 : index
    %17 = vector.load %arg6[%c0_12, %c0_13] : memref<1x128xf32, #tpu.memory_space<vmem>>, vector<1x128xf32>
    %18 = vector.broadcast %17 : vector<1x128xf32> to vector<512x128xf32>
    %19 = arith.mulf %16, %18 : vector<512x128xf32>
    %cst_14 = arith.constant dense<0.000000e+00> : vector<512xf32>
    %20 = vector.multi_reduction <add>, %19, %cst_14 [1] : vector<512x128xf32> to vector<512xf32>
    %c0_15 = arith.constant 0 : index
    %c0_16 = arith.constant 0 : index
    %21 = memref.load %arg7[%c0_15, %c0_16] : memref<1x1xf32, #tpu.memory_space<smem>>
    %22 = vector.broadcast %21 : f32 to vector<512xf32>
    %23 = arith.addf %20, %22 : vector<512xf32>
    %24 = vector.shape_cast %23 : vector<512xf32> to vector<1x1x512xf32>
    %c0_17 = arith.constant 0 : index
    %c0_18 = arith.constant 0 : index
    %c0_19 = arith.constant 0 : index
    %25 = vector.load %arg8[%c0_17, %c0_18, %c0_19] : memref<1x1x512xf32, #tpu.memory_space<vmem>>, vector<1x1x512xf32>
    tpu.vector_store %arg8[%c0_17, %c0_18, %c0_19], %24 {strides = array<i32>} : memref<1x1x512xf32, #tpu.memory_space<vmem>>, vector<1x1x512xf32>,
    return
  }
  func.func @transform_0(%arg0: i32) -> (i32, i32) {
    %c0_i32 = arith.constant 0 : i32
    %c0_i32_0 = arith.constant 0 : i32
    return %arg0, %c0_i32 : i32, i32
  }
  func.func @transform_1(%arg0: i32) -> (i32, i32) {
    %c0_i32 = arith.constant 0 : i32
    %c0_i32_0 = arith.constant 0 : i32
    %c0_i32_1 = arith.constant 0 : i32
    return %c0_i32, %c0_i32_0 : i32, i32
  }
  func.func @transform_2(%arg0: i32) -> (i32, i32) {
    %c0_i32 = arith.constant 0 : i32
    %c0_i32_0 = arith.constant 0 : i32
    %c0_i32_1 = arith.constant 0 : i32
    return %c0_i32, %c0_i32_0 : i32, i32
  }
  func.func @transform_3(%arg0: i32) -> (i32, i32) {
    %c0_i32 = arith.constant 0 : i32
    %c0_i32_0 = arith.constant 0 : i32
    %c0_i32_1 = arith.constant 0 : i32
    return %c0_i32, %c0_i32_0 : i32, i32
  }
  func.func @transform_4(%arg0: i32) -> (i32, i32) {
    %c0_i32 = arith.constant 0 : i32
    %c0_i32_0 = arith.constant 0 : i32
    %c0_i32_1 = arith.constant 0 : i32
    return %c0_i32, %c0_i32_0 : i32, i32
  }
  func.func @transform_5(%arg0: i32) -> (i32, i32) {
    %c0_i32 = arith.constant 0 : i32
    %c0_i32_0 = arith.constant 0 : i32
    %c0_i32_1 = arith.constant 0 : i32
    return %c0_i32, %c0_i32_0 : i32, i32
  }
  func.func @transform_6(%arg0: i32) -> (i32, i32) {
    %c0_i32 = arith.constant 0 : i32
    %c0_i32_0 = arith.constant 0 : i32
    %c0_i32_1 = arith.constant 0 : i32
    return %c0_i32, %c0_i32_0 : i32, i32
  }
  func.func @transform_7(%arg0: i32) -> (i32, i32, i32) {
    %c0_i32 = arith.constant 0 : i32
    %c0_i32_0 = arith.constant 0 : i32
    %c0_i32_1 = arith.constant 0 : i32
    return %arg0, %c0_i32, %c0_i32_0 : i32, i32, i32
  }
}

</mosaic_0001>

<llo_original>
// kernel: tpu_custom_call.1
$region0: #{tpu_custom_call.1}
  #allocation0 [shape = 'u32[]', space=smem, size = 0x4, offset = 0x4, fixed_abs, tag = 'smem constant byte address 0x4 - core index']
  #allocation1 [shape = 'u32[144,128]{1,0:T(1,128)}', space=vmem, size = 0x12000, scoped, tag = 'internal scratch']
  #allocation2 [shape = 'f32[1,1]{1,0:T(1,128)S(6)}', space=smem, size = 0x200, scoped, tag = 'scoped memory for tpu_custom_call.1']
  %s0 = inlined_call_operand.vmem [shape: f32[512,64], index: 0, kind: input, shape index: {}]
  %s1 = inlined_call_operand.vmem [shape: bf16[64,128], index: 1, kind: input, shape index: {}]
  %s2 = inlined_call_operand.vmem [shape: f32[1,128], index: 2, kind: input, shape index: {}]
  %s3 = inlined_call_operand.vmem [shape: bf16[128,128], index: 3, kind: input, shape index: {}]
  %s4 = inlined_call_operand.vmem [shape: f32[1,128], index: 4, kind: input, shape index: {}]
  %s5 = inlined_call_operand.vmem [shape: f32[1,128], index: 5, kind: input, shape index: {}]
  %s6 = inlined_call_operand.<no memory space> [shape: f32[1,1], index: 6, kind: input, shape index: {}]
  %s7 = inlined_call_operand.hbm [shape: f32[1,1,512], index: 7, kind: output, shape index: {}]
  %s8 = sld [smem:[#allocation0]]
  $region38: #{tpu_custom_call.1} parent=0
    _
  %s10 = ssub.s32 1, %s8
  %s11 = scalar_select 0, %s10, %s8
  %12 = sst [smem:[#allocation2]] %s6
  $region1: #{tpu_custom_call.1} parent=0
    #allocation3 [shape = 'u8[2048]{0}', space=vmem, size = 0x800, scoped, tag = 'output window, operand 0, single buffered']
    #allocation4 [shape = 's32[1]{0}', space=sflag, size = 0x4, scoped, tag = 'scoped memory for tpu_custom_call.1']
    %13 = vsyncpa [#allocation4], 0
    // Predicated region
    $region2: #{tpu_custom_call.1} parent=1 // pred_check
      _
    $region3: #{tpu_custom_call.1} parent=1 // pred_check_branch
      %15 = sbr.rel (0) target = $region5
    $region4: #{tpu_custom_call.1} parent=1 // pred_region
      _
    $region5: #{tpu_custom_call.1} parent=1 // pred_fallthru
      _
    // Predicated region
    $region6: #{tpu_custom_call.1} parent=1 // pred_check
      _
    $region7: #{tpu_custom_call.1} parent=1 // pred_check_branch
      %17 = sbr.rel (0) target = $region9
    $region8: #{tpu_custom_call.1} parent=1 // pred_region
      _
    $region9: #{tpu_custom_call.1} parent=1 // pred_fallthru
      _
    // Predicated region
    $region10: #{tpu_custom_call.1} parent=1 // pred_check
      _
    $region11: #{tpu_custom_call.1} parent=1 // pred_check_branch
      %19 = sbr.rel (0) target = $region13
    $region12: #{tpu_custom_call.1} parent=1 // pred_region
      _
    $region13: #{tpu_custom_call.1} parent=1 // pred_fallthru
      _
    // Predicated region
    $region14: #{tpu_custom_call.1} parent=1 // pred_check
      _
    $region15: #{tpu_custom_call.1} parent=1 // pred_check_branch
      %21 = sbr.rel (0) target = $region17
    $region16: #{tpu_custom_call.1} parent=1 // pred_region
      _
    $region17: #{tpu_custom_call.1} parent=1 // pred_fallthru
      _
    // Predicated region
    $region18: #{tpu_custom_call.1} parent=1 // pred_check
      _
    $region19: #{tpu_custom_call.1} parent=1 // pred_check_branch
      %23 = sbr.rel (0) target = $region21
    $region20: #{tpu_custom_call.1} parent=1 // pred_region
      _
    $region21: #{tpu_custom_call.1} parent=1 // pred_fallthru
      _
    // Predicated region
    $region22: #{tpu_custom_call.1} parent=1 // pred_check
      _
    $region23: #{tpu_custom_call.1} parent=1 // pred_check_branch
      %25 = sbr.rel (0) target = $region25
    $region24: #{tpu_custom_call.1} parent=1 // pred_region
      _
    $region25: #{tpu_custom_call.1} parent=1 // pred_fallthru
      _
    // Predicated region
    $region26: #{tpu_custom_call.1} parent=1 // pred_check
      _
    $region27: #{tpu_custom_call.1} parent=1 // pred_check_branch
      %27 = sbr.rel (0) target = $region29
    $region28: #{tpu_custom_call.1} parent=1 // pred_region
      _
    $region29: #{tpu_custom_call.1} parent=1 // pred_fallthru
      _
    %v29 = vld [vmem:[%s0] sm:$0xff]
    %v30 = vld [vmem:[%s0 + $0x8] sm:$0xff]
    %v31 = vld [vmem:[%s0 + $0x10] sm:$0xff]
    %v32 = vld [vmem:[%s0 + $0x18] sm:$0xff]
    %v33 = vld [vmem:[%s0 + $0x20] sm:$0xff]
    %v34 = vld [vmem:[%s0 + $0x28] sm:$0xff]
    %v35 = vld [vmem:[%s0 + $0x30] sm:$0xff]
    %v36 = vld [vmem:[%s0 + $0x38] sm:$0xff]
    %v37 = vld [vmem:[%s0 + $0x40] sm:$0xff]
    %v38 = vld [vmem:[%s0 + $0x48] sm:$0xff]
    %v39 = vld [vmem:[%s0 + $0x50] sm:$0xff]
    %v40 = vld [vmem:[%s0 + $0x58] sm:$0xff]
    %v41 = vld [vmem:[%s0 + $0x60] sm:$0xff]
    %v42 = vld [vmem:[%s0 + $0x68] sm:$0xff]
    %v43 = vld [vmem:[%s0 + $0x70] sm:$0xff]
    %v44 = vld [vmem:[%s0 + $0x78] sm:$0xff]
    %v45 = vld [vmem:[%s0 + $0x80] sm:$0xff]
    %v46 = vld [vmem:[%s0 + $0x88] sm:$0xff]
    %v47 = vld [vmem:[%s0 + $0x90] sm:$0xff]
    %v48 = vld [vmem:[%s0 + $0x98] sm:$0xff]
    %v49 = vld [vmem:[%s0 + $0xa0] sm:$0xff]
    %v50 = vld [vmem:[%s0 + $0xa8] sm:$0xff]
    %v51 = vld [vmem:[%s0 + $0xb0] sm:$0xff]
    %v52 = vld [vmem:[%s0 + $0xb8] sm:$0xff]
    %v53 = vld [vmem:[%s0 + $0xc0] sm:$0xff]
    %v54 = vld [vmem:[%s0 + $0xc8] sm:$0xff]
    %v55 = vld [vmem:[%s0 + $0xd0] sm:$0xff]
    %v56 = vld [vmem:[%s0 + $0xd8] sm:$0xff]
    %v57 = vld [vmem:[%s0 + $0xe0] sm:$0xff]
    %v58 = vld [vmem:[%s0 + $0xe8] sm:$0xff]
    %v59 = vld [vmem:[%s0 + $0xf0] sm:$0xff]
    %v60 = vld [vmem:[%s0 + $0xf8] sm:$0xff]
    %v61 = vld [vmem:[%s0 + $0x100] sm:$0xff]
    %v62 = vld [vmem:[%s0 + $0x108] sm:$0xff]
    %v63 = vld [vmem:[%s0 + $0x110] sm:$0xff]
    %v64 = vld [vmem:[%s0 + $0x118] sm:$0xff]
    %v65 = vld [vmem:[%s0 + $0x120] sm:$0xff]
    %v66 = vld [vmem:[%s0 + $0x128] sm:$0xff]
    %v67 = vld [vmem:[%s0 + $0x130] sm:$0xff]
    %v68 = vld [vmem:[%s0 + $0x138] sm:$0xff]
    %v69 = vld [vmem:[%s0 + $0x140] sm:$0xff]
    %v70 = vld [vmem:[%s0 + $0x148] sm:$0xff]
    %v71 = vld [vmem:[%s0 + $0x150] sm:$0xff]
    %v72 = vld [vmem:[%s0 + $0x158] sm:$0xff]
    %v73 = vld [vmem:[%s0 + $0x160] sm:$0xff]
    %v74 = vld [vmem:[%s0 + $0x168] sm:$0xff]
    %v75 = vld [vmem:[%s0 + $0x170] sm:$0xff]
    %v76 = vld [vmem:[%s0 + $0x178] sm:$0xff]
    %v77 = vld [vmem:[%s0 + $0x180] sm:$0xff]
    %v78 = vld [vmem:[%s0 + $0x188] sm:$0xff]
    %v79 = vld [vmem:[%s0 + $0x190] sm:$0xff]
    %v80 = vld [vmem:[%s0 + $0x198] sm:$0xff]
    %v81 = vld [vmem:[%s0 + $0x1a0] sm:$0xff]
    %v82 = vld [vmem:[%s0 + $0x1a8] sm:$0xff]
    %v83 = vld [vmem:[%s0 + $0x1b0] sm:$0xff]
    %v84 = vld [vmem:[%s0 + $0x1b8] sm:$0xff]
    %v85 = vld [vmem:[%s0 + $0x1c0] sm:$0xff]
    %v86 = vld [vmem:[%s0 + $0x1c8] sm:$0xff]
    %v87 = vld [vmem:[%s0 + $0x1d0] sm:$0xff]
    %v88 = vld [vmem:[%s0 + $0x1d8] sm:$0xff]
    %v89 = vld [vmem:[%s0 + $0x1e0] sm:$0xff]
    %v90 = vld [vmem:[%s0 + $0x1e8] sm:$0xff]
    %v91 = vld [vmem:[%s0 + $0x1f0] sm:$0xff]
    %v92 = vld [vmem:[%s0 + $0x1f8] sm:$0xff]
    %v93 = vpack.c.bf16 %v30, %v29
    %v94 = vpack.c.bf16 %v32, %v31
    %v95 = vpack.c.bf16 %v34, %v33
    %v96 = vpack.c.bf16 %v36, %v35
    %v97 = vpack.c.bf16 %v38, %v37
    %v98 = vpack.c.bf16 %v40, %v39
    %v99 = vpack.c.bf16 %v42, %v41
    %v100 = vpack.c.bf16 %v44, %v43
    %v101 = vpack.c.bf16 %v46, %v45
    %v102 = vpack.c.bf16 %v48, %v47
    %v103 = vpack.c.bf16 %v50, %v49
    %v104 = vpack.c.bf16 %v52, %v51
    %v105 = vpack.c.bf16 %v54, %v53
    %v106 = vpack.c.bf16 %v56, %v55
    %v107 = vpack.c.bf16 %v58, %v57
    %v108 = vpack.c.bf16 %v60, %v59
    %v109 = vpack.c.bf16 %v62, %v61
    %v110 = vpack.c.bf16 %v64, %v63
    %v111 = vpack.c.bf16 %v66, %v65
    %v112 = vpack.c.bf16 %v68, %v67
    %v113 = vpack.c.bf16 %v70, %v69
    %v114 = vpack.c.bf16 %v72, %v71
    %v115 = vpack.c.bf16 %v74, %v73
    %v116 = vpack.c.bf16 %v76, %v75
    %v117 = vpack.c.bf16 %v78, %v77
    %v118 = vpack.c.bf16 %v80, %v79
    %v119 = vpack.c.bf16 %v82, %v81
    %v120 = vpack.c.bf16 %v84, %v83
    %v121 = vpack.c.bf16 %v86, %v85
    %v122 = vpack.c.bf16 %v88, %v87
    %v123 = vpack.c.bf16 %v90, %v89
    %v124 = vpack.c.bf16 %v92, %v91
    %v125 = vld [vmem:[%s1] sm:$0xf]
    %v126 = vld [vmem:[%s1 + $0x4] sm:$0xf]
    %v127 = vld [vmem:[%s1 + $0x8] sm:$0xf]
    %v128 = vld [vmem:[%s1 + $0xc] sm:$0xf]
    %v129 = vld [vmem:[%s1 + $0x10] sm:$0xf]
    %v130 = vld [vmem:[%s1 + $0x14] sm:$0xf]
    %v131 = vld [vmem:[%s1 + $0x18] sm:$0xf]
    %v132 = vld [vmem:[%s1 + $0x1c] sm:$0xf]
    %v133 = vld [vmem:[%s2] sm:$0x1]
    %v135 = vlaneseq
    %v136 = vshrl.u32 %v135, 7
    %v137 = vsub.s32 0, %v136
    %v138 = vrot.slane %v133, %v137
    %v148 = vunpack.c.l.b16 %v125
    %v149 = vunpack.c.l.b16 %v126
    %v150 = vunpack.c.l.b16 %v127
    %v151 = vunpack.c.l.b16 %v128
    %v152 = vunpack.c.l.b16 %v129
    %v153 = vunpack.c.l.b16 %v130
    %v154 = vunpack.c.l.b16 %v131
    %v155 = vunpack.c.l.b16 %v132
    %v156 = vpack.c.b16 %v149, %v148
    %v157 = vpack.c.b16 %v151, %v150
    %v158 = vpack.c.b16 %v153, %v152
    %v159 = vpack.c.b16 %v155, %v154
    %vm164 = vcmask 523264
    %v166 = vsel %vm164, %v93, 0
    %v169 = vsel %vm164, %v94, 0
    %v172 = vsel %vm164, %v95, 0
    %v175 = vsel %vm164, %v96, 0
    %v178 = vsel %vm164, %v97, 0
    %v181 = vsel %vm164, %v98, 0
    %v184 = vsel %vm164, %v99, 0
    %v187 = vsel %vm164, %v100, 0
    %v190 = vsel %vm164, %v101, 0
    %v193 = vsel %vm164, %v102, 0
    %v196 = vsel %vm164, %v103, 0
    %v199 = vsel %vm164, %v104, 0
    %v202 = vsel %vm164, %v105, 0
    %v205 = vsel %vm164, %v106, 0
    %v208 = vsel %vm164, %v107, 0
    %v211 = vsel %vm164, %v108, 0
    %v214 = vsel %vm164, %v109, 0
    %v217 = vsel %vm164, %v110, 0
    %v220 = vsel %vm164, %v111, 0
    %v223 = vsel %vm164, %v112, 0
    %v226 = vsel %vm164, %v113, 0
    %v229 = vsel %vm164, %v114, 0
    %v232 = vsel %vm164, %v115, 0
    %v235 = vsel %vm164, %v116, 0
    %v238 = vsel %vm164, %v117, 0
    %v241 = vsel %vm164, %v118, 0
    %v244 = vsel %vm164, %v119, 0
    %v247 = vsel %vm164, %v120, 0
    %v250 = vsel %vm164, %v121, 0
    %v253 = vsel %vm164, %v122, 0
    %v256 = vsel %vm164, %v123, 0
    %v259 = vsel %vm164, %v124, 0
    %261 = vmatprep.subr.bf16.mxu0 0
    %262 = vmatpush1.bf16.msra.mxu0 %v156
    %263 = vmatprep.subr.bf16.mxu0 0
    %264 = vmatpush1.bf16.msra.mxu0 %v157
    %265 = vmatprep.subr.bf16.mxu0 0
    %266 = vmatpush1.bf16.msra.mxu0 %v158
    %267 = vmatprep.subr.bf16.mxu0 0
    %268 = vmatpush1.bf16.msra.mxu0 %v159
    %269 = vmatprep.subr.bf16.mxu0 0
    %270 = vmatpush1.bf16.msra.mxu0 0
    %271 = vmatprep.subr.bf16.mxu0 0
    %272 = vmatpush1.bf16.msra.mxu0 0
    %273 = vmatprep.subr.bf16.mxu0 0
    %274 = vmatpush1.bf16.msra.mxu0 0
    %275 = vmatprep.subr.bf16.mxu0 0
    %276 = vmatpush1.bf16.msra.mxu0 0
    %277 = vmatprep.subr.bf16.mxu0 0
    %278 = vmatpush1.bf16.msra.mxu0 0
    %279 = vmatprep.subr.bf16.mxu0 0
    %280 = vmatpush1.bf16.msra.mxu0 0
    %281 = vmatprep.subr.bf16.mxu0 0
    %282 = vmatpush1.bf16.msra.mxu0 0
    %283 = vmatprep.subr.bf16.mxu0 0
    %284 = vmatpush1.bf16.msra.mxu0 0
    %285 = vmatprep.subr.bf16.mxu0 0
    %286 = vmatpush1.bf16.msra.mxu0 0
    %287 = vmatprep.subr.bf16.mxu0 0
    %288 = vmatpush1.bf16.msra.mxu0 0
    %289 = vmatprep.subr.bf16.mxu0 0
    %290 = vmatpush1.bf16.msra.mxu0 0
    %291 = vmatprep.subr.bf16.mxu0 0
    %292 = vmatpush1.bf16.msra.mxu0 0
    %293 = vmatprep.mubr.bf16.mxu0 0
    %294 = vmatmul.mubr.bf16.gmra.mrb[0].mxu0 %v166
    %v295 = vpop.f32.mrb[0].mxu0
    %v296 = vadd.f32 %v138, %v295
    %v297 = vpop.f32.mrb[0].mxu0
    %v298 = vpop.f32.mrb[0].mxu0
    %v299 = vadd.f32 %v138, %v298
    %v300 = vpop.f32.mrb[0].mxu0
    %301 = vmatprep.mubr.bf16.mxu0 0
    %302 = vmatmul.mubr.bf16.gmra.mrb[0].mxu0 %v169
    %v303 = vpop.f32.mrb[0].mxu0
    %v304 = vadd.f32 %v138, %v303
    %v305 = vpop.f32.mrb[0].mxu0
    %v306 = vpop.f32.mrb[0].mxu0
    %v307 = vadd.f32 %v138, %v306
    %v308 = vpop.f32.mrb[0].mxu0
    %309 = vmatprep.mubr.bf16.mxu0 0
    %310 = vmatmul.mubr.bf16.gmra.mrb[0].mxu0 %v172
    %v311 = vpop.f32.mrb[0].mxu0
    %v312 = vadd.f32 %v138, %v311
    %v313 = vpop.f32.mrb[0].mxu0
    %v314 = vpop.f32.mrb[0].mxu0
    %v315 = vadd.f32 %v138, %v314
    %v316 = vpop.f32.mrb[0].mxu0
    %317 = vmatprep.mubr.bf16.mxu0 0
    %318 = vmatmul.mubr.bf16.gmra.mrb[0].mxu0 %v175
    %v319 = vpop.f32.mrb[0].mxu0
    %v320 = vadd.f32 %v138, %v319
    %v321 = vpop.f32.mrb[0].mxu0
    %v322 = vpop.f32.mrb[0].mxu0
    %v323 = vadd.f32 %v138, %v322
    %v324 = vpop.f32.mrb[0].mxu0
    %325 = vmatprep.mubr.bf16.mxu0 0
    %326 = vmatmul.mubr.bf16.gmra.mrb[0].mxu0 %v178
    %v327 = vpop.f32.mrb[0].mxu0
    %v328 = vadd.f32 %v138, %v327
    %v329 = vpop.f32.mrb[0].mxu0
    %v330 = vpop.f32.mrb[0].mxu0
    %v331 = vadd.f32 %v138, %v330
    %v332 = vpop.f32.mrb[0].mxu0
    %333 = vmatprep.mubr.bf16.mxu0 0
    %334 = vmatmul.mubr.bf16.gmra.mrb[0].mxu0 %v181
    %v335 = vpop.f32.mrb[0].mxu0
    %v336 = vadd.f32 %v138, %v335
    %v337 = vpop.f32.mrb[0].mxu0
    %v338 = vpop.f32.mrb[0].mxu0
    %v339 = vadd.f32 %v138, %v338
    %v340 = vpop.f32.mrb[0].mxu0
    %341 = vmatprep.mubr.bf16.mxu0 0
    %342 = vmatmul.mubr.bf16.gmra.mrb[0].mxu0 %v184
    %v343 = vpop.f32.mrb[0].mxu0
    %v344 = vadd.f32 %v138, %v343
    %v345 = vpop.f32.mrb[0].mxu0
    %v346 = vpop.f32.mrb[0].mxu0
    %v347 = vadd.f32 %v138, %v346
    %v348 = vpop.f32.mrb[0].mxu0
    %349 = vmatprep.mubr.bf16.mxu0 0
    %350 = vmatmul.mubr.bf16.gmra.mrb[0].mxu0 %v187
    %v351 = vpop.f32.mrb[0].mxu0
    %v352 = vadd.f32 %v138, %v351
    %v353 = vpop.f32.mrb[0].mxu0
    %v354 = vpop.f32.mrb[0].mxu0
    %v355 = vadd.f32 %v138, %v354
    %v356 = vpop.f32.mrb[0].mxu0
    %357 = vmatprep.mubr.bf16.mxu0 0
    %358 = vmatmul.mubr.bf16.gmra.mrb[0].mxu0 %v190
    %v359 = vpop.f32.mrb[0].mxu0
    %v360 = vadd.f32 %v138, %v359
    %v361 = vpop.f32.mrb[0].mxu0
    %v362 = vpop.f32.mrb[0].mxu0
    %v363 = vadd.f32 %v138, %v362
    %v364 = vpop.f32.mrb[0].mxu0
    %365 = vmatprep.mubr.bf16.mxu0 0
    %366 = vmatmul.mubr.bf16.gmra.mrb[0].mxu0 %v193
    %v367 = vpop.f32.mrb[0].mxu0
    %v368 = vadd.f32 %v138, %v367
    %v369 = vpop.f32.mrb[0].mxu0
    %v370 = vpop.f32.mrb[0].mxu0
    %v371 = vadd.f32 %v138, %v370
    %v372 = vpop.f32.mrb[0].mxu0
    %373 = vmatprep.mubr.bf16.mxu0 0
    %374 = vmatmul.mubr.bf16.gmra.mrb[0].mxu0 %v196
    %v375 = vpop.f32.mrb[0].mxu0
    %v376 = vadd.f32 %v138, %v375
    %v377 = vpop.f32.mrb[0].mxu0
    %v378 = vpop.f32.mrb[0].mxu0
    %v379 = vadd.f32 %v138, %v378
    %v380 = vpop.f32.mrb[0].mxu0
    %381 = vmatprep.mubr.bf16.mxu0 0
    %382 = vmatmul.mubr.bf16.gmra.mrb[0].mxu0 %v199
    %v383 = vpop.f32.mrb[0].mxu0
    %v384 = vadd.f32 %v138, %v383
    %v385 = vpop.f32.mrb[0].mxu0
    %v386 = vpop.f32.mrb[0].mxu0
    %v387 = vadd.f32 %v138, %v386
    %v388 = vpop.f32.mrb[0].mxu0
    %389 = vmatprep.mubr.bf16.mxu0 0
    %390 = vmatmul.mubr.bf16.gmra.mrb[0].mxu0 %v202
    %v391 = vpop.f32.mrb[0].mxu0
    %v392 = vadd.f32 %v138, %v391
    %v393 = vpop.f32.mrb[0].mxu0
    %v394 = vpop.f32.mrb[0].mxu0
    %v395 = vadd.f32 %v138, %v394
    %v396 = vpop.f32.mrb[0].mxu0
    %397 = vmatprep.mubr.bf16.mxu0 0
    %398 = vmatmul.mubr.bf16.gmra.mrb[0].mxu0 %v205
    %v399 = vpop.f32.mrb[0].mxu0
    %v400 = vadd.f32 %v138, %v399
    %v401 = vpop.f32.mrb[0].mxu0
    %v402 = vpop.f32.mrb[0].mxu0
    %v403 = vadd.f32 %v138, %v402
    %v404 = vpop.f32.mrb[0].mxu0
    %405 = vmatprep.mubr.bf16.mxu0 0
    %406 = vmatmul.mubr.bf16.gmra.mrb[0].mxu0 %v208
    %v407 = vpop.f32.mrb[0].mxu0
    %v408 = vadd.f32 %v138, %v407
    %v409 = vpop.f32.mrb[0].mxu0
    %v410 = vpop.f32.mrb[0].mxu0
    %v411 = vadd.f32 %v138, %v410
    %v412 = vpop.f32.mrb[0].mxu0
    %413 = vmatprep.mubr.bf16.mxu0 0
    %414 = vmatmul.mubr.bf16.gmra.mrb[0].mxu0 %v211
    %v415 = vpop.f32.mrb[0].mxu0
    %v416 = vadd.f32 %v138, %v415
    %v417 = vpop.f32.mrb[0].mxu0
    %v418 = vpop.f32.mrb[0].mxu0
    %v419 = vadd.f32 %v138, %v418
    %v420 = vpop.f32.mrb[0].mxu0
    %421 = vmatprep.mubr.bf16.mxu0 0
    %422 = vmatmul.mubr.bf16.gmra.mrb[0].mxu0 %v214
    %v423 = vpop.f32.mrb[0].mxu0
    %v424 = vadd.f32 %v138, %v423
    %v425 = vpop.f32.mrb[0].mxu0
    %v426 = vpop.f32.mrb[0].mxu0
    %v427 = vadd.f32 %v138, %v426
    %v428 = vpop.f32.mrb[0].mxu0
    %429 = vmatprep.mubr.bf16.mxu0 0
    %430 = vmatmul.mubr.bf16.gmra.mrb[0].mxu0 %v217
    %v431 = vpop.f32.mrb[0].mxu0
    %v432 = vadd.f32 %v138, %v431
    %v433 = vpop.f32.mrb[0].mxu0
    %v434 = vpop.f32.mrb[0].mxu0
    %v435 = vadd.f32 %v138, %v434
    %v436 = vpop.f32.mrb[0].mxu0
    %437 = vmatprep.mubr.bf16.mxu0 0
    %438 = vmatmul.mubr.bf16.gmra.mrb[0].mxu0 %v220
    %v439 = vpop.f32.mrb[0].mxu0
    %v440 = vadd.f32 %v138, %v439
    %v441 = vpop.f32.mrb[0].mxu0
    %v442 = vpop.f32.mrb[0].mxu0
    %v443 = vadd.f32 %v138, %v442
    %v444 = vpop.f32.mrb[0].mxu0
    %445 = vmatprep.mubr.bf16.mxu0 0
    %446 = vmatmul.mubr.bf16.gmra.mrb[0].mxu0 %v223
    %v447 = vpop.f32.mrb[0].mxu0
    %v448 = vadd.f32 %v138, %v447
    %v449 = vpop.f32.mrb[0].mxu0
    %v450 = vpop.f32.mrb[0].mxu0
    %v451 = vadd.f32 %v138, %v450
    %v452 = vpop.f32.mrb[0].mxu0
    %453 = vmatprep.mubr.bf16.mxu0 0
    %454 = vmatmul.mubr.bf16.gmra.mrb[0].mxu0 %v226
    %v455 = vpop.f32.mrb[0].mxu0
    %v456 = vadd.f32 %v138, %v455
    %v457 = vpop.f32.mrb[0].mxu0
    %v458 = vpop.f32.mrb[0].mxu0
    %v459 = vadd.f32 %v138, %v458
    %v460 = vpop.f32.mrb[0].mxu0
    %461 = vmatprep.mubr.bf16.mxu0 0
    %462 = vmatmul.mubr.bf16.gmra.mrb[0].mxu0 %v229
    %v463 = vpop.f32.mrb[0].mxu0
    %v464 = vadd.f32 %v138, %v463
    %v465 = vpop.f32.mrb[0].mxu0
    %v466 = vpop.f32.mrb[0].mxu0
    %v467 = vadd.f32 %v138, %v466
    %v468 = vpop.f32.mrb[0].mxu0
    %469 = vmatprep.mubr.bf16.mxu0 0
    %470 = vmatmul.mubr.bf16.gmra.mrb[0].mxu0 %v232
    %v471 = vpop.f32.mrb[0].mxu0
    %v472 = vadd.f32 %v138, %v471
    %v473 = vpop.f32.mrb[0].mxu0
    %v474 = vpop.f32.mrb[0].mxu0
    %v475 = vadd.f32 %v138, %v474
    %v476 = vpop.f32.mrb[0].mxu0
    %477 = vmatprep.mubr.bf16.mxu0 0
    %478 = vmatmul.mubr.bf16.gmra.mrb[0].mxu0 %v235
    %v479 = vpop.f32.mrb[0].mxu0
    %v480 = vadd.f32 %v138, %v479
    %v481 = vpop.f32.mrb[0].mxu0
    %v482 = vpop.f32.mrb[0].mxu0
    %v483 = vadd.f32 %v138, %v482
    %v484 = vpop.f32.mrb[0].mxu0
    %485 = vmatprep.mubr.bf16.mxu0 0
    %486 = vmatmul.mubr.bf16.gmra.mrb[0].mxu0 %v238
    %v487 = vpop.f32.mrb[0].mxu0
    %v488 = vadd.f32 %v138, %v487
    %v489 = vpop.f32.mrb[0].mxu0
    %v490 = vpop.f32.mrb[0].mxu0
    %v491 = vadd.f32 %v138, %v490
    %v492 = vpop.f32.mrb[0].mxu0
    %493 = vmatprep.mubr.bf16.mxu0 0
    %494 = vmatmul.mubr.bf16.gmra.mrb[0].mxu0 %v241
    %v495 = vpop.f32.mrb[0].mxu0
    %v496 = vadd.f32 %v138, %v495
    %v497 = vpop.f32.mrb[0].mxu0
    %v498 = vpop.f32.mrb[0].mxu0
    %v499 = vadd.f32 %v138, %v498
    %v500 = vpop.f32.mrb[0].mxu0
    %501 = vmatprep.mubr.bf16.mxu0 0
    %502 = vmatmul.mubr.bf16.gmra.mrb[0].mxu0 %v244
    %v503 = vpop.f32.mrb[0].mxu0
    %v504 = vadd.f32 %v138, %v503
    %v505 = vpop.f32.mrb[0].mxu0
    %v506 = vpop.f32.mrb[0].mxu0
    %v507 = vadd.f32 %v138, %v506
    %v508 = vpop.f32.mrb[0].mxu0
    %509 = vmatprep.mubr.bf16.mxu0 0
    %510 = vmatmul.mubr.bf16.gmra.mrb[0].mxu0 %v247
    %v511 = vpop.f32.mrb[0].mxu0
    %v512 = vadd.f32 %v138, %v511
    %v513 = vpop.f32.mrb[0].mxu0
    %v514 = vpop.f32.mrb[0].mxu0
    %v515 = vadd.f32 %v138, %v514
    %v516 = vpop.f32.mrb[0].mxu0
    %517 = vmatprep.mubr.bf16.mxu0 0
    %518 = vmatmul.mubr.bf16.gmra.mrb[0].mxu0 %v250
    %v519 = vpop.f32.mrb[0].mxu0
    %v520 = vadd.f32 %v138, %v519
    %v521 = vpop.f32.mrb[0].mxu0
    %v522 = vpop.f32.mrb[0].mxu0
    %v523 = vadd.f32 %v138, %v522
    %v524 = vpop.f32.mrb[0].mxu0
    %525 = vmatprep.mubr.bf16.mxu0 0
    %526 = vmatmul.mubr.bf16.gmra.mrb[0].mxu0 %v253
    %v527 = vpop.f32.mrb[0].mxu0
    %v528 = vadd.f32 %v138, %v527
    %v529 = vpop.f32.mrb[0].mxu0
    %v530 = vpop.f32.mrb[0].mxu0
    %v531 = vadd.f32 %v138, %v530
    %v532 = vpop.f32.mrb[0].mxu0
    %533 = vmatprep.mubr.bf16.mxu0 0
    %534 = vmatmul.mubr.bf16.gmra.mrb[0].mxu0 %v256
    %v535 = vpop.f32.mrb[0].mxu0
    %v536 = vadd.f32 %v138, %v535
    %v537 = vpop.f32.mrb[0].mxu0
    %v538 = vpop.f32.mrb[0].mxu0
    %v539 = vadd.f32 %v138, %v538
    %v540 = vpop.f32.mrb[0].mxu0
    %541 = vmatprep.mubr.bf16.mxu0 0
    %542 = vmatmul.mubr.bf16.gmra.mrb[0].mxu0 %v259
    %v543 = vpop.f32.mrb[0].mxu0
    %v544 = vadd.f32 %v138, %v543
    %v545 = vpop.f32.mrb[0].mxu0
    %v546 = vpop.f32.mrb[0].mxu0
    %v547 = vadd.f32 %v138, %v546
    %v548 = vpop.f32.mrb[0].mxu0
    %549 = vdwg.mxu0
    %v550 = vmax.f32 %v296, 0.0
    %v551 = vmax.f32 %v299, 0.0
    %v552 = vmax.f32 %v304, 0.0
    %v553 = vmax.f32 %v307, 0.0
    %v554 = vmax.f32 %v312, 0.0
    %v555 = vmax.f32 %v315, 0.0
    %v556 = vmax.f32 %v320, 0.0
    %v557 = vmax.f32 %v323, 0.0
    %v558 = vmax.f32 %v328, 0.0
    %v559 = vmax.f32 %v331, 0.0
    %v560 = vmax.f32 %v336, 0.0
    %v561 = vmax.f32 %v339, 0.0
    %v562 = vmax.f32 %v344, 0.0
    %v563 = vmax.f32 %v347, 0.0
    %v564 = vmax.f32 %v352, 0.0
    %v565 = vmax.f32 %v355, 0.0
    %v566 = vmax.f32 %v360, 0.0
    %v567 = vmax.f32 %v363, 0.0
    %v568 = vmax.f32 %v368, 0.0
    %v569 = vmax.f32 %v371, 0.0
    %v570 = vmax.f32 %v376, 0.0
    %v571 = vmax.f32 %v379, 0.0
    %v572 = vmax.f32 %v384, 0.0
    %v573 = vmax.f32 %v387, 0.0
    %v574 = vmax.f32 %v392, 0.0
    %v575 = vmax.f32 %v395, 0.0
    %v576 = vmax.f32 %v400, 0.0
    %v577 = vmax.f32 %v403, 0.0
    %v578 = vmax.f32 %v408, 0.0
    %v579 = vmax.f32 %v411, 0.0
    %v580 = vmax.f32 %v416, 0.0
    %v581 = vmax.f32 %v419, 0.0
    %v582 = vmax.f32 %v424, 0.0
    %v583 = vmax.f32 %v427, 0.0
    %v584 = vmax.f32 %v432, 0.0
    %v585 = vmax.f32 %v435, 0.0
    %v586 = vmax.f32 %v440, 0.0
    %v587 = vmax.f32 %v443, 0.0
    %v588 = vmax.f32 %v448, 0.0
    %v589 = vmax.f32 %v451, 0.0
    %v590 = vmax.f32 %v456, 0.0
    %v591 = vmax.f32 %v459, 0.0
    %v592 = vmax.f32 %v464, 0.0
    %v593 = vmax.f32 %v467, 0.0
    %v594 = vmax.f32 %v472, 0.0
    %v595 = vmax.f32 %v475, 0.0
    %v596 = vmax.f32 %v480, 0.0
    %v597 = vmax.f32 %v483, 0.0
    %v598 = vmax.f32 %v488, 0.0
    %v599 = vmax.f32 %v491, 0.0
    %v600 = vmax.f32 %v496, 0.0
    %v601 = vmax.f32 %v499, 0.0
    %v602 = vmax.f32 %v504, 0.0
    %v603 = vmax.f32 %v507, 0.0
    %v604 = vmax.f32 %v512, 0.0
    %v605 = vmax.f32 %v515, 0.0
    %v606 = vmax.f32 %v520, 0.0
    %v607 = vmax.f32 %v523, 0.0
    %v608 = vmax.f32 %v528, 0.0
    %v609 = vmax.f32 %v531, 0.0
    %v610 = vmax.f32 %v536, 0.0
    %v611 = vmax.f32 %v539, 0.0
    %v612 = vmax.f32 %v544, 0.0
    %v613 = vmax.f32 %v547, 0.0
    %v614 = vpack.c.bf16 %v551, %v550
    %v615 = vpack.c.bf16 %v553, %v552
    %v616 = vpack.c.bf16 %v555, %v554
    %v617 = vpack.c.bf16 %v557, %v556
    %v618 = vpack.c.bf16 %v559, %v558
    %v619 = vpack.c.bf16 %v561, %v560
    %v620 = vpack.c.bf16 %v563, %v562
    %v621 = vpack.c.bf16 %v565, %v564
    %v622 = vpack.c.bf16 %v567, %v566
    %v623 = vpack.c.bf16 %v569, %v568
    %v624 = vpack.c.bf16 %v571, %v570
    %v625 = vpack.c.bf16 %v573, %v572
    %v626 = vpack.c.bf16 %v575, %v574
    %v627 = vpack.c.bf16 %v577, %v576
    %v628 = vpack.c.bf16 %v579, %v578
    %v629 = vpack.c.bf16 %v581, %v580
    %v630 = vpack.c.bf16 %v583, %v582
    %v631 = vpack.c.bf16 %v585, %v584
    %v632 = vpack.c.bf16 %v587, %v586
    %v633 = vpack.c.bf16 %v589, %v588
    %v634 = vpack.c.bf16 %v591, %v590
    %v635 = vpack.c.bf16 %v593, %v592
    %v636 = vpack.c.bf16 %v595, %v594
    %v637 = vpack.c.bf16 %v597, %v596
    %v638 = vpack.c.bf16 %v599, %v598
    %v639 = vpack.c.bf16 %v601, %v600
    %v640 = vpack.c.bf16 %v603, %v602
    %v641 = vpack.c.bf16 %v605, %v604
    %v642 = vpack.c.bf16 %v607, %v606
    %v643 = vpack.c.bf16 %v609, %v608
    %v644 = vpack.c.bf16 %v611, %v610
    %v645 = vpack.c.bf16 %v613, %v612
    %v646 = vld [vmem:[%s3] sm:$0xf]
    %v647 = vld [vmem:[%s3 + $0x4] sm:$0xf]
    %v648 = vld [vmem:[%s3 + $0x8] sm:$0xf]
    %v649 = vld [vmem:[%s3 + $0xc] sm:$0xf]
    %v650 = vld [vmem:[%s3 + $0x10] sm:$0xf]
    %v651 = vld [vmem:[%s3 + $0x14] sm:$0xf]
    %v652 = vld [vmem:[%s3 + $0x18] sm:$0xf]
    %v653 = vld [vmem:[%s3 + $0x1c] sm:$0xf]
    %v654 = vld [vmem:[%s3 + $0x20] sm:$0xf]
    %v655 = vld [vmem:[%s3 + $0x24] sm:$0xf]
    %v656 = vld [vmem:[%s3 + $0x28] sm:$0xf]
    %v657 = vld [vmem:[%s3 + $0x2c] sm:$0xf]
    %v658 = vld [vmem:[%s3 + $0x30] sm:$0xf]
    %v659 = vld [vmem:[%s3 + $0x34] sm:$0xf]
    %v660 = vld [vmem:[%s3 + $0x38] sm:$0xf]
    %v661 = vld [vmem:[%s3 + $0x3c] sm:$0xf]
    %v662 = vld [vmem:[%s4] sm:$0x1]
    %v664 = vlaneseq
    %v665 = vshrl.u32 %v664, 7
    %v666 = vsub.s32 0, %v665
    %v667 = vrot.slane %v662, %v666
    %v685 = vunpack.c.l.b16 %v646
    %v686 = vunpack.c.l.b16 %v647
    %v687 = vunpack.c.l.b16 %v648
    %v688 = vunpack.c.l.b16 %v649
    %v689 = vunpack.c.l.b16 %v650
    %v690 = vunpack.c.l.b16 %v651
    %v691 = vunpack.c.l.b16 %v652
    %v692 = vunpack.c.l.b16 %v653
    %v693 = vunpack.c.l.b16 %v654
    %v694 = vunpack.c.l.b16 %v655
    %v695 = vunpack.c.l.b16 %v656
    %v696 = vunpack.c.l.b16 %v657
    %v697 = vunpack.c.l.b16 %v658
    %v698 = vunpack.c.l.b16 %v659
    %v699 = vunpack.c.l.b16 %v660
    %v700 = vunpack.c.l.b16 %v661
    %v701 = vpack.c.b16 %v686, %v685
    %v702 = vpack.c.b16 %v688, %v687
    %v703 = vpack.c.b16 %v690, %v689
    %v704 = vpack.c.b16 %v692, %v691
    %v705 = vpack.c.b16 %v694, %v693
    %v706 = vpack.c.b16 %v696, %v695
    %v707 = vpack.c.b16 %v698, %v697
    %v708 = vpack.c.b16 %v700, %v699
    %717 = vmatprep.subr.bf16.mxu0 0
    %718 = vmatpush1.bf16.msra.mxu0 %v701
    %719 = vmatprep.subr.bf16.mxu0 0
    %720 = vmatpush1.bf16.msra.mxu0 %v702
    %721 = vmatprep.subr.bf16.mxu0 0
    %722 = vmatpush1.bf16.msra.mxu0 %v703
    %723 = vmatprep.subr.bf16.mxu0 0
    %724 = vmatpush1.bf16.msra.mxu0 %v704
    %725 = vmatprep.subr.bf16.mxu0 0
    %726 = vmatpush1.bf16.msra.mxu0 %v705
    %727 = vmatprep.subr.bf16.mxu0 0
    %728 = vmatpush1.bf16.msra.mxu0 %v706
    %729 = vmatprep.subr.bf16.mxu0 0
    %730 = vmatpush1.bf16.msra.mxu0 %v707
    %731 = vmatprep.subr.bf16.mxu0 0
    %732 = vmatpush1.bf16.msra.mxu0 %v708
    %733 = vmatprep.subr.bf16.mxu0 0
    %734 = vmatpush1.bf16.msra.mxu0 0
    %735 = vmatprep.subr.bf16.mxu0 0
    %736 = vmatpush1.bf16.msra.mxu0 0
    %737 = vmatprep.subr.bf16.mxu0 0
    %738 = vmatpush1.bf16.msra.mxu0 0
    %739 = vmatprep.subr.bf16.mxu0 0
    %740 = vmatpush1.bf16.msra.mxu0 0
    %741 = vmatprep.subr.bf16.mxu0 0
    %742 = vmatpush1.bf16.msra.mxu0 0
    %743 = vmatprep.subr.bf16.mxu0 0
    %744 = vmatpush1.bf16.msra.mxu0 0
    %745 = vmatprep.subr.bf16.mxu0 0
    %746 = vmatpush1.bf16.msra.mxu0 0
    %747 = vmatprep.subr.bf16.mxu0 0
    %748 = vmatpush1.bf16.msra.mxu0 0
    %749 = vmatprep.mubr.bf16.mxu0 0
    %750 = vmatmul.mubr.bf16.gmra.mrb[0].mxu0 %v614
    %v751 = vpop.f32.mrb[0].mxu0
    %v752 = vadd.f32 %v667, %v751
    %v753 = vpop.f32.mrb[0].mxu0
    %v754 = vpop.f32.mrb[0].mxu0
    %v755 = vadd.f32 %v667, %v754
    %v756 = vpop.f32.mrb[0].mxu0
    %757 = vmatprep.mubr.bf16.mxu0 0
    %758 = vmatmul.mubr.bf16.gmra.mrb[0].mxu0 %v615
    %v759 = vpop.f32.mrb[0].mxu0
    %v760 = vadd.f32 %v667, %v759
    %v761 = vpop.f32.mrb[0].mxu0
    %v762 = vpop.f32.mrb[0].mxu0
    %v763 = vadd.f32 %v667, %v762
    %v764 = vpop.f32.mrb[0].mxu0
    %765 = vmatprep.mubr.bf16.mxu0 0
    %766 = vmatmul.mubr.bf16.gmra.mrb[0].mxu0 %v616
    %v767 = vpop.f32.mrb[0].mxu0
    %v768 = vadd.f32 %v667, %v767
    %v769 = vpop.f32.mrb[0].mxu0
    %v770 = vpop.f32.mrb[0].mxu0
    %v771 = vadd.f32 %v667, %v770
    %v772 = vpop.f32.mrb[0].mxu0
    %773 = vmatprep.mubr.bf16.mxu0 0
    %774 = vmatmul.mubr.bf16.gmra.mrb[0].mxu0 %v617
    %v775 = vpop.f32.mrb[0].mxu0
    %v776 = vadd.f32 %v667, %v775
    %v777 = vpop.f32.mrb[0].mxu0
    %v778 = vpop.f32.mrb[0].mxu0
    %v779 = vadd.f32 %v667, %v778
    %v780 = vpop.f32.mrb[0].mxu0
    %781 = vmatprep.mubr.bf16.mxu0 0
    %782 = vmatmul.mubr.bf16.gmra.mrb[0].mxu0 %v618
    %v783 = vpop.f32.mrb[0].mxu0
    %v784 = vadd.f32 %v667, %v783
    %v785 = vpop.f32.mrb[0].mxu0
    %v786 = vpop.f32.mrb[0].mxu0
    %v787 = vadd.f32 %v667, %v786
    %v788 = vpop.f32.mrb[0].mxu0
    %789 = vmatprep.mubr.bf16.mxu0 0
    %790 = vmatmul.mubr.bf16.gmra.mrb[0].mxu0 %v619
    %v791 = vpop.f32.mrb[0].mxu0
    %v792 = vadd.f32 %v667, %v791
    %v793 = vpop.f32.mrb[0].mxu0
    %v794 = vpop.f32.mrb[0].mxu0
    %v795 = vadd.f32 %v667, %v794
    %v796 = vpop.f32.mrb[0].mxu0
    %797 = vmatprep.mubr.bf16.mxu0 0
    %798 = vmatmul.mubr.bf16.gmra.mrb[0].mxu0 %v620
    %v799 = vpop.f32.mrb[0].mxu0
    %v800 = vadd.f32 %v667, %v799
    %v801 = vpop.f32.mrb[0].mxu0
    %v802 = vpop.f32.mrb[0].mxu0
    %v803 = vadd.f32 %v667, %v802
    %v804 = vpop.f32.mrb[0].mxu0
    %805 = vmatprep.mubr.bf16.mxu0 0
    %806 = vmatmul.mubr.bf16.gmra.mrb[0].mxu0 %v621
    %v807 = vpop.f32.mrb[0].mxu0
    %v808 = vadd.f32 %v667, %v807
    %v809 = vpop.f32.mrb[0].mxu0
    %v810 = vpop.f32.mrb[0].mxu0
    %v811 = vadd.f32 %v667, %v810
    %v812 = vpop.f32.mrb[0].mxu0
    %813 = vmatprep.mubr.bf16.mxu0 0
    %814 = vmatmul.mubr.bf16.gmra.mrb[0].mxu0 %v622
    %v815 = vpop.f32.mrb[0].mxu0
    %v816 = vadd.f32 %v667, %v815
    %v817 = vpop.f32.mrb[0].mxu0
    %v818 = vpop.f32.mrb[0].mxu0
    %v819 = vadd.f32 %v667, %v818
    %v820 = vpop.f32.mrb[0].mxu0
    %821 = vmatprep.mubr.bf16.mxu0 0
    %822 = vmatmul.mubr.bf16.gmra.mrb[0].mxu0 %v623
    %v823 = vpop.f32.mrb[0].mxu0
    %v824 = vadd.f32 %v667, %v823
    %v825 = vpop.f32.mrb[0].mxu0
    %v826 = vpop.f32.mrb[0].mxu0
    %v827 = vadd.f32 %v667, %v826
    %v828 = vpop.f32.mrb[0].mxu0
    %829 = vmatprep.mubr.bf16.mxu0 0
    %830 = vmatmul.mubr.bf16.gmra.mrb[0].mxu0 %v624
    %v831 = vpop.f32.mrb[0].mxu0
    %v832 = vadd.f32 %v667, %v831
    %v833 = vpop.f32.mrb[0].mxu0
    %v834 = vpop.f32.mrb[0].mxu0
    %v835 = vadd.f32 %v667, %v834
    %v836 = vpop.f32.mrb[0].mxu0
    %837 = vmatprep.mubr.bf16.mxu0 0
    %838 = vmatmul.mubr.bf16.gmra.mrb[0].mxu0 %v625
    %v839 = vpop.f32.mrb[0].mxu0
    %v840 = vadd.f32 %v667, %v839
    %v841 = vpop.f32.mrb[0].mxu0
    %v842 = vpop.f32.mrb[0].mxu0
    %v843 = vadd.f32 %v667, %v842
    %v844 = vpop.f32.mrb[0].mxu0
    %845 = vmatprep.mubr.bf16.mxu0 0
    %846 = vmatmul.mubr.bf16.gmra.mrb[0].mxu0 %v626
    %v847 = vpop.f32.mrb[0].mxu0
    %v848 = vadd.f32 %v667, %v847
    %v849 = vpop.f32.mrb[0].mxu0
    %v850 = vpop.f32.mrb[0].mxu0
    %v851 = vadd.f32 %v667, %v850
    %v852 = vpop.f32.mrb[0].mxu0
    %853 = vmatprep.mubr.bf16.mxu0 0
    %854 = vmatmul.mubr.bf16.gmra.mrb[0].mxu0 %v627
    %v855 = vpop.f32.mrb[0].mxu0
    %v856 = vadd.f32 %v667, %v855
    %v857 = vpop.f32.mrb[0].mxu0
    %v858 = vpop.f32.mrb[0].mxu0
    %v859 = vadd.f32 %v667, %v858
    %v860 = vpop.f32.mrb[0].mxu0
    %861 = vmatprep.mubr.bf16.mxu0 0
    %862 = vmatmul.mubr.bf16.gmra.mrb[0].mxu0 %v628
    %v863 = vpop.f32.mrb[0].mxu0
    %v864 = vadd.f32 %v667, %v863
    %v865 = vpop.f32.mrb[0].mxu0
    %v866 = vpop.f32.mrb[0].mxu0
    %v867 = vadd.f32 %v667, %v866
    %v868 = vpop.f32.mrb[0].mxu0
    %869 = vmatprep.mubr.bf16.mxu0 0
    %870 = vmatmul.mubr.bf16.gmra.mrb[0].mxu0 %v629
    %v871 = vpop.f32.mrb[0].mxu0
    %v872 = vadd.f32 %v667, %v871
    %v873 = vpop.f32.mrb[0].mxu0
    %v874 = vpop.f32.mrb[0].mxu0
    %v875 = vadd.f32 %v667, %v874
    %v876 = vpop.f32.mrb[0].mxu0
    %877 = vmatprep.mubr.bf16.mxu0 0
    %878 = vmatmul.mubr.bf16.gmra.mrb[0].mxu0 %v630
    %v879 = vpop.f32.mrb[0].mxu0
    %v880 = vadd.f32 %v667, %v879
    %v881 = vpop.f32.mrb[0].mxu0
    %v882 = vpop.f32.mrb[0].mxu0
    %v883 = vadd.f32 %v667, %v882
    %v884 = vpop.f32.mrb[0].mxu0
    %885 = vmatprep.mubr.bf16.mxu0 0
    %886 = vmatmul.mubr.bf16.gmra.mrb[0].mxu0 %v631
    %v887 = vpop.f32.mrb[0].mxu0
    %v888 = vadd.f32 %v667, %v887
    %v889 = vpop.f32.mrb[0].mxu0
    %v890 = vpop.f32.mrb[0].mxu0
    %v891 = vadd.f32 %v667, %v890
    %v892 = vpop.f32.mrb[0].mxu0
    %893 = vmatprep.mubr.bf16.mxu0 0
    %894 = vmatmul.mubr.bf16.gmra.mrb[0].mxu0 %v632
    %v895 = vpop.f32.mrb[0].mxu0
    %v896 = vadd.f32 %v667, %v895
    %v897 = vpop.f32.mrb[0].mxu0
    %v898 = vpop.f32.mrb[0].mxu0
    %v899 = vadd.f32 %v667, %v898
    %v900 = vpop.f32.mrb[0].mxu0
    %901 = vmatprep.mubr.bf16.mxu0 0
    %902 = vmatmul.mubr.bf16.gmra.mrb[0].mxu0 %v633
    %v903 = vpop.f32.mrb[0].mxu0
    %v904 = vadd.f32 %v667, %v903
    %v905 = vpop.f32.mrb[0].mxu0
    %v906 = vpop.f32.mrb[0].mxu0
    %v907 = vadd.f32 %v667, %v906
    %v908 = vpop.f32.mrb[0].mxu0
    %909 = vmatprep.mubr.bf16.mxu0 0
    %910 = vmatmul.mubr.bf16.gmra.mrb[0].mxu0 %v634
    %v911 = vpop.f32.mrb[0].mxu0
    %v912 = vadd.f32 %v667, %v911
    %v913 = vpop.f32.mrb[0].mxu0
    %v914 = vpop.f32.mrb[0].mxu0
    %v915 = vadd.f32 %v667, %v914
    %v916 = vpop.f32.mrb[0].mxu0
    %917 = vmatprep.mubr.bf16.mxu0 0
    %918 = vmatmul.mubr.bf16.gmra.mrb[0].mxu0 %v635
    %v919 = vpop.f32.mrb[0].mxu0
    %v920 = vadd.f32 %v667, %v919
    %v921 = vpop.f32.mrb[0].mxu0
    %v922 = vpop.f32.mrb[0].mxu0
    %v923 = vadd.f32 %v667, %v922
    %v924 = vpop.f32.mrb[0].mxu0
    %925 = vmatprep.mubr.bf16.mxu0 0
    %926 = vmatmul.mubr.bf16.gmra.mrb[0].mxu0 %v636
    %v927 = vpop.f32.mrb[0].mxu0
    %v928 = vadd.f32 %v667, %v927
    %v929 = vpop.f32.mrb[0].mxu0
    %v930 = vpop.f32.mrb[0].mxu0
    %v931 = vadd.f32 %v667, %v930
    %v932 = vpop.f32.mrb[0].mxu0
    %933 = vmatprep.mubr.bf16.mxu0 0
    %934 = vmatmul.mubr.bf16.gmra.mrb[0].mxu0 %v637
    %v935 = vpop.f32.mrb[0].mxu0
    %v936 = vadd.f32 %v667, %v935
    %v937 = vpop.f32.mrb[0].mxu0
    %v938 = vpop.f32.mrb[0].mxu0
    %v939 = vadd.f32 %v667, %v938
    %v940 = vpop.f32.mrb[0].mxu0
    %941 = vmatprep.mubr.bf16.mxu0 0
    %942 = vmatmul.mubr.bf16.gmra.mrb[0].mxu0 %v638
    %v943 = vpop.f32.mrb[0].mxu0
    %v944 = vadd.f32 %v667, %v943
    %v945 = vpop.f32.mrb[0].mxu0
    %v946 = vpop.f32.mrb[0].mxu0
    %v947 = vadd.f32 %v667, %v946
    %v948 = vpop.f32.mrb[0].mxu0
    %949 = vmatprep.mubr.bf16.mxu0 0
    %950 = vmatmul.mubr.bf16.gmra.mrb[0].mxu0 %v639
    %v951 = vpop.f32.mrb[0].mxu0
    %v952 = vadd.f32 %v667, %v951
    %v953 = vpop.f32.mrb[0].mxu0
    %v954 = vpop.f32.mrb[0].mxu0
    %v955 = vadd.f32 %v667, %v954
    %v956 = vpop.f32.mrb[0].mxu0
    %957 = vmatprep.mubr.bf16.mxu0 0
    %958 = vmatmul.mubr.bf16.gmra.mrb[0].mxu0 %v640
    %v959 = vpop.f32.mrb[0].mxu0
    %v960 = vadd.f32 %v667, %v959
    %v961 = vpop.f32.mrb[0].mxu0
    %v962 = vpop.f32.mrb[0].mxu0
    %v963 = vadd.f32 %v667, %v962
    %v964 = vpop.f32.mrb[0].mxu0
    %965 = vmatprep.mubr.bf16.mxu0 0
    %966 = vmatmul.mubr.bf16.gmra.mrb[0].mxu0 %v641
    %v967 = vpop.f32.mrb[0].mxu0
    %v968 = vadd.f32 %v667, %v967
    %v969 = vpop.f32.mrb[0].mxu0
    %v970 = vpop.f32.mrb[0].mxu0
    %v971 = vadd.f32 %v667, %v970
    %v972 = vpop.f32.mrb[0].mxu0
    %973 = vmatprep.mubr.bf16.mxu0 0
    %974 = vmatmul.mubr.bf16.gmra.mrb[0].mxu0 %v642
    %v975 = vpop.f32.mrb[0].mxu0
    %v976 = vadd.f32 %v667, %v975
    %v977 = vpop.f32.mrb[0].mxu0
    %v978 = vpop.f32.mrb[0].mxu0
    %v979 = vadd.f32 %v667, %v978
    %v980 = vpop.f32.mrb[0].mxu0
    %981 = vmatprep.mubr.bf16.mxu0 0
    %982 = vmatmul.mubr.bf16.gmra.mrb[0].mxu0 %v643
    %v983 = vpop.f32.mrb[0].mxu0
    %v984 = vadd.f32 %v667, %v983
    %v985 = vpop.f32.mrb[0].mxu0
    %v986 = vpop.f32.mrb[0].mxu0
    %v987 = vadd.f32 %v667, %v986
    %v988 = vpop.f32.mrb[0].mxu0
    %989 = vmatprep.mubr.bf16.mxu0 0
    %990 = vmatmul.mubr.bf16.gmra.mrb[0].mxu0 %v644
    %v991 = vpop.f32.mrb[0].mxu0
    %v992 = vadd.f32 %v667, %v991
    %v993 = vpop.f32.mrb[0].mxu0
    %v994 = vpop.f32.mrb[0].mxu0
    %v995 = vadd.f32 %v667, %v994
    %v996 = vpop.f32.mrb[0].mxu0
    %997 = vmatprep.mubr.bf16.mxu0 0
    %998 = vmatmul.mubr.bf16.gmra.mrb[0].mxu0 %v645
    %v999 = vpop.f32.mrb[0].mxu0
    %v1000 = vadd.f32 %v667, %v999
    %v1001 = vpop.f32.mrb[0].mxu0
    %v1002 = vpop.f32.mrb[0].mxu0
    %v1003 = vadd.f32 %v667, %v1002
    %v1004 = vpop.f32.mrb[0].mxu0
    %1005 = vdwg.mxu0
    %v1006 = vmax.f32 %v752, 0.0
    %v1007 = vmax.f32 %v755, 0.0
    %v1008 = vmax.f32 %v760, 0.0
    %v1009 = vmax.f32 %v763, 0.0
    %v1010 = vmax.f32 %v768, 0.0
    %v1011 = vmax.f32 %v771, 0.0
    %v1012 = vmax.f32 %v776, 0.0
    %v1013 = vmax.f32 %v779, 0.0
    %v1014 = vmax.f32 %v784, 0.0
    %v1015 = vmax.f32 %v787, 0.0
    %v1016 = vmax.f32 %v792, 0.0
    %v1017 = vmax.f32 %v795, 0.0
    %v1018 = vmax.f32 %v800, 0.0
    %v1019 = vmax.f32 %v803, 0.0
    %v1020 = vmax.f32 %v808, 0.0
    %v1021 = vmax.f32 %v811, 0.0
    %v1022 = vmax.f32 %v816, 0.0
    %v1023 = vmax.f32 %v819, 0.0
    %v1024 = vmax.f32 %v824, 0.0
    %v1025 = vmax.f32 %v827, 0.0
    %v1026 = vmax.f32 %v832, 0.0
    %v1027 = vmax.f32 %v835, 0.0
    %v1028 = vmax.f32 %v840, 0.0
    %v1029 = vmax.f32 %v843, 0.0
    %v1030 = vmax.f32 %v848, 0.0
    %v1031 = vmax.f32 %v851, 0.0
    %v1032 = vmax.f32 %v856, 0.0
    %v1033 = vmax.f32 %v859, 0.0
    %v1034 = vmax.f32 %v864, 0.0
    %v1035 = vmax.f32 %v867, 0.0
    %v1036 = vmax.f32 %v872, 0.0
    %v1037 = vmax.f32 %v875, 0.0
    %v1038 = vmax.f32 %v880, 0.0
    %v1039 = vmax.f32 %v883, 0.0
    %v1040 = vmax.f32 %v888, 0.0
    %v1041 = vmax.f32 %v891, 0.0
    %v1042 = vmax.f32 %v896, 0.0
    %v1043 = vmax.f32 %v899, 0.0
    %v1044 = vmax.f32 %v904, 0.0
    %v1045 = vmax.f32 %v907, 0.0
    %v1046 = vmax.f32 %v912, 0.0
    %v1047 = vmax.f32 %v915, 0.0
    %v1048 = vmax.f32 %v920, 0.0
    %v1049 = vmax.f32 %v923, 0.0
    %v1050 = vmax.f32 %v928, 0.0
    %v1051 = vmax.f32 %v931, 0.0
    %v1052 = vmax.f32 %v936, 0.0
    %v1053 = vmax.f32 %v939, 0.0
    %v1054 = vmax.f32 %v944, 0.0
    %v1055 = vmax.f32 %v947, 0.0
    %v1056 = vmax.f32 %v952, 0.0
    %v1057 = vmax.f32 %v955, 0.0
    %v1058 = vmax.f32 %v960, 0.0
    %v1059 = vmax.f32 %v963, 0.0
    %v1060 = vmax.f32 %v968, 0.0
    %v1061 = vmax.f32 %v971, 0.0
    %v1062 = vmax.f32 %v976, 0.0
    %v1063 = vmax.f32 %v979, 0.0
    %v1064 = vmax.f32 %v984, 0.0
    %v1065 = vmax.f32 %v987, 0.0
    %v1066 = vmax.f32 %v992, 0.0
    %v1067 = vmax.f32 %v995, 0.0
    %v1068 = vmax.f32 %v1000, 0.0
    %v1069 = vmax.f32 %v1003, 0.0
    %v1070 = vld [vmem:[%s5] sm:$0x1]
    %v1072 = vlaneseq
    %v1073 = vshrl.u32 %v1072, 7
    %v1074 = vsub.s32 0, %v1073
    %v1075 = vrot.slane %v1070, %v1074
    %v1077 = vmul.f32 %v1006, %v1075
    %v1078 = vmul.f32 %v1007, %v1075
    %v1079 = vmul.f32 %v1008, %v1075
    %v1080 = vmul.f32 %v1009, %v1075
    %v1081 = vmul.f32 %v1010, %v1075
    %v1082 = vmul.f32 %v1011, %v1075
    %v1083 = vmul.f32 %v1012, %v1075
    %v1084 = vmul.f32 %v1013, %v1075
    %v1085 = vmul.f32 %v1014, %v1075
    %v1086 = vmul.f32 %v1015, %v1075
    %v1087 = vmul.f32 %v1016, %v1075
    %v1088 = vmul.f32 %v1017, %v1075
    %v1089 = vmul.f32 %v1018, %v1075
    %v1090 = vmul.f32 %v1019, %v1075
    %v1091 = vmul.f32 %v1020, %v1075
    %v1092 = vmul.f32 %v1021, %v1075
    %v1093 = vmul.f32 %v1022, %v1075
    %v1094 = vmul.f32 %v1023, %v1075
    %v1095 = vmul.f32 %v1024, %v1075
    %v1096 = vmul.f32 %v1025, %v1075
    %v1097 = vmul.f32 %v1026, %v1075
    %v1098 = vmul.f32 %v1027, %v1075
    %v1099 = vmul.f32 %v1028, %v1075
    %v1100 = vmul.f32 %v1029, %v1075
    %v1101 = vmul.f32 %v1030, %v1075
    %v1102 = vmul.f32 %v1031, %v1075
    %v1103 = vmul.f32 %v1032, %v1075
    %v1104 = vmul.f32 %v1033, %v1075
    %v1105 = vmul.f32 %v1034, %v1075
    %v1106 = vmul.f32 %v1035, %v1075
    %v1107 = vmul.f32 %v1036, %v1075
    %v1108 = vmul.f32 %v1037, %v1075
    %v1109 = vmul.f32 %v1038, %v1075
    %v1110 = vmul.f32 %v1039, %v1075
    %v1111 = vmul.f32 %v1040, %v1075
    %v1112 = vmul.f32 %v1041, %v1075
    %v1113 = vmul.f32 %v1042, %v1075
    %v1114 = vmul.f32 %v1043, %v1075
    %v1115 = vmul.f32 %v1044, %v1075
    %v1116 = vmul.f32 %v1045, %v1075
    %v1117 = vmul.f32 %v1046, %v1075
    %v1118 = vmul.f32 %v1047, %v1075
    %v1119 = vmul.f32 %v1048, %v1075
    %v1120 = vmul.f32 %v1049, %v1075
    %v1121 = vmul.f32 %v1050, %v1075
    %v1122 = vmul.f32 %v1051, %v1075
    %v1123 = vmul.f32 %v1052, %v1075
    %v1124 = vmul.f32 %v1053, %v1075
    %v1125 = vmul.f32 %v1054, %v1075
    %v1126 = vmul.f32 %v1055, %v1075
    %v1127 = vmul.f32 %v1056, %v1075
    %v1128 = vmul.f32 %v1057, %v1075
    %v1129 = vmul.f32 %v1058, %v1075
    %v1130 = vmul.f32 %v1059, %v1075
    %v1131 = vmul.f32 %v1060, %v1075
    %v1132 = vmul.f32 %v1061, %v1075
    %v1133 = vmul.f32 %v1062, %v1075
    %v1134 = vmul.f32 %v1063, %v1075
    %v1135 = vmul.f32 %v1064, %v1075
    %v1136 = vmul.f32 %v1065, %v1075
    %v1137 = vmul.f32 %v1066, %v1075
    %v1138 = vmul.f32 %v1067, %v1075
    %v1139 = vmul.f32 %v1068, %v1075
    %v1140 = vmul.f32 %v1069, %v1075
    %1141 = vadd.xlane.f32.xlu0 %v1077
    %v1142 = vpop.xlane.xlu0 %1141
    %1143 = vadd.xlane.f32.xlu0 %v1078
    %v1144 = vpop.xlane.xlu0 %1143
    %1145 = vadd.xlane.f32.xlu0 %v1079
    %v1146 = vpop.xlane.xlu0 %1145
    %1147 = vadd.xlane.f32.xlu0 %v1080
    %v1148 = vpop.xlane.xlu0 %1147
    %1149 = vadd.xlane.f32.xlu0 %v1081
    %v1150 = vpop.xlane.xlu0 %1149
    %1151 = vadd.xlane.f32.xlu0 %v1082
    %v1152 = vpop.xlane.xlu0 %1151
    %1153 = vadd.xlane.f32.xlu0 %v1083
    %v1154 = vpop.xlane.xlu0 %1153
    %1155 = vadd.xlane.f32.xlu0 %v1084
    %v1156 = vpop.xlane.xlu0 %1155
    %1157 = vadd.xlane.f32.xlu0 %v1085
    %v1158 = vpop.xlane.xlu0 %1157
    %1159 = vadd.xlane.f32.xlu0 %v1086
    %v1160 = vpop.xlane.xlu0 %1159
    %1161 = vadd.xlane.f32.xlu0 %v1087
    %v1162 = vpop.xlane.xlu0 %1161
    %1163 = vadd.xlane.f32.xlu0 %v1088
    %v1164 = vpop.xlane.xlu0 %1163
    %1165 = vadd.xlane.f32.xlu0 %v1089
    %v1166 = vpop.xlane.xlu0 %1165
    %1167 = vadd.xlane.f32.xlu0 %v1090
    %v1168 = vpop.xlane.xlu0 %1167
    %1169 = vadd.xlane.f32.xlu0 %v1091
    %v1170 = vpop.xlane.xlu0 %1169
    %1171 = vadd.xlane.f32.xlu0 %v1092
    %v1172 = vpop.xlane.xlu0 %1171
    %1173 = vadd.xlane.f32.xlu0 %v1093
    %v1174 = vpop.xlane.xlu0 %1173
    %1175 = vadd.xlane.f32.xlu0 %v1094
    %v1176 = vpop.xlane.xlu0 %1175
    %1177 = vadd.xlane.f32.xlu0 %v1095
    %v1178 = vpop.xlane.xlu0 %1177
    %1179 = vadd.xlane.f32.xlu0 %v1096
    %v1180 = vpop.xlane.xlu0 %1179
    %1181 = vadd.xlane.f32.xlu0 %v1097
    %v1182 = vpop.xlane.xlu0 %1181
    %1183 = vadd.xlane.f32.xlu0 %v1098
    %v1184 = vpop.xlane.xlu0 %1183
    %1185 = vadd.xlane.f32.xlu0 %v1099
    %v1186 = vpop.xlane.xlu0 %1185
    %1187 = vadd.xlane.f32.xlu0 %v1100
    %v1188 = vpop.xlane.xlu0 %1187
    %1189 = vadd.xlane.f32.xlu0 %v1101
    %v1190 = vpop.xlane.xlu0 %1189
    %1191 = vadd.xlane.f32.xlu0 %v1102
    %v1192 = vpop.xlane.xlu0 %1191
    %1193 = vadd.xlane.f32.xlu0 %v1103
    %v1194 = vpop.xlane.xlu0 %1193
    %1195 = vadd.xlane.f32.xlu0 %v1104
    %v1196 = vpop.xlane.xlu0 %1195
    %1197 = vadd.xlane.f32.xlu0 %v1105
    %v1198 = vpop.xlane.xlu0 %1197
    %1199 = vadd.xlane.f32.xlu0 %v1106
    %v1200 = vpop.xlane.xlu0 %1199
    %1201 = vadd.xlane.f32.xlu0 %v1107
    %v1202 = vpop.xlane.xlu0 %1201
    %1203 = vadd.xlane.f32.xlu0 %v1108
    %v1204 = vpop.xlane.xlu0 %1203
    %1205 = vadd.xlane.f32.xlu0 %v1109
    %v1206 = vpop.xlane.xlu0 %1205
    %1207 = vadd.xlane.f32.xlu0 %v1110
    %v1208 = vpop.xlane.xlu0 %1207
    %1209 = vadd.xlane.f32.xlu0 %v1111
    %v1210 = vpop.xlane.xlu0 %1209
    %1211 = vadd.xlane.f32.xlu0 %v1112
    %v1212 = vpop.xlane.xlu0 %1211
    %1213 = vadd.xlane.f32.xlu0 %v1113
    %v1214 = vpop.xlane.xlu0 %1213
    %1215 = vadd.xlane.f32.xlu0 %v1114
    %v1216 = vpop.xlane.xlu0 %1215
    %1217 = vadd.xlane.f32.xlu0 %v1115
    %v1218 = vpop.xlane.xlu0 %1217
    %1219 = vadd.xlane.f32.xlu0 %v1116
    %v1220 = vpop.xlane.xlu0 %1219
    %1221 = vadd.xlane.f32.xlu0 %v1117
    %v1222 = vpop.xlane.xlu0 %1221
    %1223 = vadd.xlane.f32.xlu0 %v1118
    %v1224 = vpop.xlane.xlu0 %1223
    %1225 = vadd.xlane.f32.xlu0 %v1119
    %v1226 = vpop.xlane.xlu0 %1225
    %1227 = vadd.xlane.f32.xlu0 %v1120
    %v1228 = vpop.xlane.xlu0 %1227
    %1229 = vadd.xlane.f32.xlu0 %v1121
    %v1230 = vpop.xlane.xlu0 %1229
    %1231 = vadd.xlane.f32.xlu0 %v1122
    %v1232 = vpop.xlane.xlu0 %1231
    %1233 = vadd.xlane.f32.xlu0 %v1123
    %v1234 = vpop.xlane.xlu0 %1233
    %1235 = vadd.xlane.f32.xlu0 %v1124
    %v1236 = vpop.xlane.xlu0 %1235
    %1237 = vadd.xlane.f32.xlu0 %v1125
    %v1238 = vpop.xlane.xlu0 %1237
    %1239 = vadd.xlane.f32.xlu0 %v1126
    %v1240 = vpop.xlane.xlu0 %1239
    %1241 = vadd.xlane.f32.xlu0 %v1127
    %v1242 = vpop.xlane.xlu0 %1241
    %1243 = vadd.xlane.f32.xlu0 %v1128
    %v1244 = vpop.xlane.xlu0 %1243
    %1245 = vadd.xlane.f32.xlu0 %v1129
    %v1246 = vpop.xlane.xlu0 %1245
    %1247 = vadd.xlane.f32.xlu0 %v1130
    %v1248 = vpop.xlane.xlu0 %1247
    %1249 = vadd.xlane.f32.xlu0 %v1131
    %v1250 = vpop.xlane.xlu0 %1249
    %1251 = vadd.xlane.f32.xlu0 %v1132
    %v1252 = vpop.xlane.xlu0 %1251
    %1253 = vadd.xlane.f32.xlu0 %v1133
    %v1254 = vpop.xlane.xlu0 %1253
    %1255 = vadd.xlane.f32.xlu0 %v1134
    %v1256 = vpop.xlane.xlu0 %1255
    %1257 = vadd.xlane.f32.xlu0 %v1135
    %v1258 = vpop.xlane.xlu0 %1257
    %1259 = vadd.xlane.f32.xlu0 %v1136
    %v1260 = vpop.xlane.xlu0 %1259
    %1261 = vadd.xlane.f32.xlu0 %v1137
    %v1262 = vpop.xlane.xlu0 %1261
    %1263 = vadd.xlane.f32.xlu0 %v1138
    %v1264 = vpop.xlane.xlu0 %1263
    %1265 = vadd.xlane.f32.xlu0 %v1139
    %v1266 = vpop.xlane.xlu0 %1265
    %1267 = vadd.xlane.f32.xlu0 %v1140
    %v1268 = vpop.xlane.xlu0 %1267
    %s1269 = sld [smem:[#allocation2]]
    %v1270 = vstv %s1269
    %v1271 = vadd.f32 %v1142, %v1270
    %v1272 = vadd.f32 %v1144, %v1270
    %v1273 = vadd.f32 %v1146, %v1270
    %v1274 = vadd.f32 %v1148, %v1270
    %v1275 = vadd.f32 %v1150, %v1270
    %v1276 = vadd.f32 %v1152, %v1270
    %v1277 = vadd.f32 %v1154, %v1270
    %v1278 = vadd.f32 %v1156, %v1270
    %v1279 = vadd.f32 %v1158, %v1270
    %v1280 = vadd.f32 %v1160, %v1270
    %v1281 = vadd.f32 %v1162, %v1270
    %v1282 = vadd.f32 %v1164, %v1270
    %v1283 = vadd.f32 %v1166, %v1270
    %v1284 = vadd.f32 %v1168, %v1270
    %v1285 = vadd.f32 %v1170, %v1270
    %v1286 = vadd.f32 %v1172, %v1270
    %v1287 = vadd.f32 %v1174, %v1270
    %v1288 = vadd.f32 %v1176, %v1270
    %v1289 = vadd.f32 %v1178, %v1270
    %v1290 = vadd.f32 %v1180, %v1270
    %v1291 = vadd.f32 %v1182, %v1270
    %v1292 = vadd.f32 %v1184, %v1270
    %v1293 = vadd.f32 %v1186, %v1270
    %v1294 = vadd.f32 %v1188, %v1270
    %v1295 = vadd.f32 %v1190, %v1270
    %v1296 = vadd.f32 %v1192, %v1270
    %v1297 = vadd.f32 %v1194, %v1270
    %v1298 = vadd.f32 %v1196, %v1270
    %v1299 = vadd.f32 %v1198, %v1270
    %v1300 = vadd.f32 %v1200, %v1270
    %v1301 = vadd.f32 %v1202, %v1270
    %v1302 = vadd.f32 %v1204, %v1270
    %v1303 = vadd.f32 %v1206, %v1270
    %v1304 = vadd.f32 %v1208, %v1270
    %v1305 = vadd.f32 %v1210, %v1270
    %v1306 = vadd.f32 %v1212, %v1270
    %v1307 = vadd.f32 %v1214, %v1270
    %v1308 = vadd.f32 %v1216, %v1270
    %v1309 = vadd.f32 %v1218, %v1270
    %v1310 = vadd.f32 %v1220, %v1270
    %v1311 = vadd.f32 %v1222, %v1270
    %v1312 = vadd.f32 %v1224, %v1270
    %v1313 = vadd.f32 %v1226, %v1270
    %v1314 = vadd.f32 %v1228, %v1270
    %v1315 = vadd.f32 %v1230, %v1270
    %v1316 = vadd.f32 %v1232, %v1270
    %v1317 = vadd.f32 %v1234, %v1270
    %v1318 = vadd.f32 %v1236, %v1270
    %v1319 = vadd.f32 %v1238, %v1270
    %v1320 = vadd.f32 %v1240, %v1270
    %v1321 = vadd.f32 %v1242, %v1270
    %v1322 = vadd.f32 %v1244, %v1270
    %v1323 = vadd.f32 %v1246, %v1270
    %v1324 = vadd.f32 %v1248, %v1270
    %v1325 = vadd.f32 %v1250, %v1270
    %v1326 = vadd.f32 %v1252, %v1270
    %v1327 = vadd.f32 %v1254, %v1270
    %v1328 = vadd.f32 %v1256, %v1270
    %v1329 = vadd.f32 %v1258, %v1270
    %v1330 = vadd.f32 %v1260, %v1270
    %v1331 = vadd.f32 %v1262, %v1270
    %v1332 = vadd.f32 %v1264, %v1270
    %v1333 = vadd.f32 %v1266, %v1270
    %v1334 = vadd.f32 %v1268, %v1270
    %v1399 = vlaneseq
    %v1400 = vshrl.u32 %v1399, 7
    %v1401 = vsub.s32 0, %v1400
    %v1402 = vrot.slane %v1271, %v1401
    %v1403 = vlaneseq
    %v1404 = vshrl.u32 %v1403, 7
    %v1405 = vsub.s32 1, %v1404
    %v1406 = vrot.slane %v1271, %v1405
    %v1407 = vlaneseq
    %v1408 = vshrl.u32 %v1407, 7
    %v1409 = vsub.s32 2, %v1408
    %v1410 = vrot.slane %v1271, %v1409
    %v1411 = vlaneseq
    %v1412 = vshrl.u32 %v1411, 7
    %v1413 = vsub.s32 3, %v1412
    %v1414 = vrot.slane %v1271, %v1413
    %v1415 = vlaneseq
    %v1416 = vshrl.u32 %v1415, 7
    %v1417 = vsub.s32 4, %v1416
    %v1418 = vrot.slane %v1271, %v1417
    %v1419 = vlaneseq
    %v1420 = vshrl.u32 %v1419, 7
    %v1421 = vsub.s32 5, %v1420
    %v1422 = vrot.slane %v1271, %v1421
    %v1423 = vlaneseq
    %v1424 = vshrl.u32 %v1423, 7
    %v1425 = vsub.s32 6, %v1424
    %v1426 = vrot.slane %v1271, %v1425
    %v1427 = vlaneseq
    %v1428 = vshrl.u32 %v1427, 7
    %v1429 = vsub.s32 7, %v1428
    %v1430 = vrot.slane %v1271, %v1429
    %v1431 = vlaneseq
    %v1432 = vshrl.u32 %v1431, 7
    %v1433 = vsub.s32 0, %v1432
    %v1434 = vrot.slane %v1272, %v1433
    %v1435 = vlaneseq
    %v1436 = vshrl.u32 %v1435, 7
    %v1437 = vsub.s32 1, %v1436
    %v1438 = vrot.slane %v1272, %v1437
    %v1439 = vlaneseq
    %v1440 = vshrl.u32 %v1439, 7
    %v1441 = vsub.s32 2, %v1440
    %v1442 = vrot.slane %v1272, %v1441
    %v1443 = vlaneseq
    %v1444 = vshrl.u32 %v1443, 7
    %v1445 = vsub.s32 3, %v1444
    %v1446 = vrot.slane %v1272, %v1445
    %v1447 = vlaneseq
    %v1448 = vshrl.u32 %v1447, 7
    %v1449 = vsub.s32 4, %v1448
    %v1450 = vrot.slane %v1272, %v1449
    %v1451 = vlaneseq
    %v1452 = vshrl.u32 %v1451, 7
    %v1453 = vsub.s32 5, %v1452
    %v1454 = vrot.slane %v1272, %v1453
    %v1455 = vlaneseq
    %v1456 = vshrl.u32 %v1455, 7
    %v1457 = vsub.s32 6, %v1456
    %v1458 = vrot.slane %v1272, %v1457
    %v1459 = vlaneseq
    %v1460 = vshrl.u32 %v1459, 7
    %v1461 = vsub.s32 7, %v1460
    %v1462 = vrot.slane %v1272, %v1461
    %v1463 = vlaneseq
    %v1464 = vshrl.u32 %v1463, 7
    %v1465 = vsub.s32 0, %v1464
    %v1466 = vrot.slane %v1273, %v1465
    %v1467 = vlaneseq
    %v1468 = vshrl.u32 %v1467, 7
    %v1469 = vsub.s32 1, %v1468
    %v1470 = vrot.slane %v1273, %v1469
    %v1471 = vlaneseq
    %v1472 = vshrl.u32 %v1471, 7
    %v1473 = vsub.s32 2, %v1472
    %v1474 = vrot.slane %v1273, %v1473
    %v1475 = vlaneseq
    %v1476 = vshrl.u32 %v1475, 7
    %v1477 = vsub.s32 3, %v1476
    %v1478 = vrot.slane %v1273, %v1477
    %v1479 = vlaneseq
    %v1480 = vshrl.u32 %v1479, 7
    %v1481 = vsub.s32 4, %v1480
    %v1482 = vrot.slane %v1273, %v1481
    %v1483 = vlaneseq
    %v1484 = vshrl.u32 %v1483, 7
    %v1485 = vsub.s32 5, %v1484
    %v1486 = vrot.slane %v1273, %v1485
    %v1487 = vlaneseq
    %v1488 = vshrl.u32 %v1487, 7
    %v1489 = vsub.s32 6, %v1488
    %v1490 = vrot.slane %v1273, %v1489
    %v1491 = vlaneseq
    %v1492 = vshrl.u32 %v1491, 7
    %v1493 = vsub.s32 7, %v1492
    %v1494 = vrot.slane %v1273, %v1493
    %v1495 = vlaneseq
    %v1496 = vshrl.u32 %v1495, 7
    %v1497 = vsub.s32 0, %v1496
    %v1498 = vrot.slane %v1274, %v1497
    %v1499 = vlaneseq
    %v1500 = vshrl.u32 %v1499, 7
    %v1501 = vsub.s32 1, %v1500
    %v1502 = vrot.slane %v1274, %v1501
    %v1503 = vlaneseq
    %v1504 = vshrl.u32 %v1503, 7
    %v1505 = vsub.s32 2, %v1504
    %v1506 = vrot.slane %v1274, %v1505
    %v1507 = vlaneseq
    %v1508 = vshrl.u32 %v1507, 7
    %v1509 = vsub.s32 3, %v1508
    %v1510 = vrot.slane %v1274, %v1509
    %v1511 = vlaneseq
    %v1512 = vshrl.u32 %v1511, 7
    %v1513 = vsub.s32 4, %v1512
    %v1514 = vrot.slane %v1274, %v1513
    %v1515 = vlaneseq
    %v1516 = vshrl.u32 %v1515, 7
    %v1517 = vsub.s32 5, %v1516
    %v1518 = vrot.slane %v1274, %v1517
    %v1519 = vlaneseq
    %v1520 = vshrl.u32 %v1519, 7
    %v1521 = vsub.s32 6, %v1520
    %v1522 = vrot.slane %v1274, %v1521
    %v1523 = vlaneseq
    %v1524 = vshrl.u32 %v1523, 7
    %v1525 = vsub.s32 7, %v1524
    %v1526 = vrot.slane %v1274, %v1525
    %v1527 = vlaneseq
    %v1528 = vshrl.u32 %v1527, 7
    %v1529 = vsub.s32 0, %v1528
    %v1530 = vrot.slane %v1275, %v1529
    %v1531 = vlaneseq
    %v1532 = vshrl.u32 %v1531, 7
    %v1533 = vsub.s32 1, %v1532
    %v1534 = vrot.slane %v1275, %v1533
    %v1535 = vlaneseq
    %v1536 = vshrl.u32 %v1535, 7
    %v1537 = vsub.s32 2, %v1536
    %v1538 = vrot.slane %v1275, %v1537
    %v1539 = vlaneseq
    %v1540 = vshrl.u32 %v1539, 7
    %v1541 = vsub.s32 3, %v1540
    %v1542 = vrot.slane %v1275, %v1541
    %v1543 = vlaneseq
    %v1544 = vshrl.u32 %v1543, 7
    %v1545 = vsub.s32 4, %v1544
    %v1546 = vrot.slane %v1275, %v1545
    %v1547 = vlaneseq
    %v1548 = vshrl.u32 %v1547, 7
    %v1549 = vsub.s32 5, %v1548
    %v1550 = vrot.slane %v1275, %v1549
    %v1551 = vlaneseq
    %v1552 = vshrl.u32 %v1551, 7
    %v1553 = vsub.s32 6, %v1552
    %v1554 = vrot.slane %v1275, %v1553
    %v1555 = vlaneseq
    %v1556 = vshrl.u32 %v1555, 7
    %v1557 = vsub.s32 7, %v1556
    %v1558 = vrot.slane %v1275, %v1557
    %v1559 = vlaneseq
    %v1560 = vshrl.u32 %v1559, 7
    %v1561 = vsub.s32 0, %v1560
    %v1562 = vrot.slane %v1276, %v1561
    %v1563 = vlaneseq
    %v1564 = vshrl.u32 %v1563, 7
    %v1565 = vsub.s32 1, %v1564
    %v1566 = vrot.slane %v1276, %v1565
    %v1567 = vlaneseq
    %v1568 = vshrl.u32 %v1567, 7
    %v1569 = vsub.s32 2, %v1568
    %v1570 = vrot.slane %v1276, %v1569
    %v1571 = vlaneseq
    %v1572 = vshrl.u32 %v1571, 7
    %v1573 = vsub.s32 3, %v1572
    %v1574 = vrot.slane %v1276, %v1573
    %v1575 = vlaneseq
    %v1576 = vshrl.u32 %v1575, 7
    %v1577 = vsub.s32 4, %v1576
    %v1578 = vrot.slane %v1276, %v1577
    %v1579 = vlaneseq
    %v1580 = vshrl.u32 %v1579, 7
    %v1581 = vsub.s32 5, %v1580
    %v1582 = vrot.slane %v1276, %v1581
    %v1583 = vlaneseq
    %v1584 = vshrl.u32 %v1583, 7
    %v1585 = vsub.s32 6, %v1584
    %v1586 = vrot.slane %v1276, %v1585
    %v1587 = vlaneseq
    %v1588 = vshrl.u32 %v1587, 7
    %v1589 = vsub.s32 7, %v1588
    %v1590 = vrot.slane %v1276, %v1589
    %v1591 = vlaneseq
    %v1592 = vshrl.u32 %v1591, 7
    %v1593 = vsub.s32 0, %v1592
    %v1594 = vrot.slane %v1277, %v1593
    %v1595 = vlaneseq
    %v1596 = vshrl.u32 %v1595, 7
    %v1597 = vsub.s32 1, %v1596
    %v1598 = vrot.slane %v1277, %v1597
    %v1599 = vlaneseq
    %v1600 = vshrl.u32 %v1599, 7
    %v1601 = vsub.s32 2, %v1600
    %v1602 = vrot.slane %v1277, %v1601
    %v1603 = vlaneseq
    %v1604 = vshrl.u32 %v1603, 7
    %v1605 = vsub.s32 3, %v1604
    %v1606 = vrot.slane %v1277, %v1605
    %v1607 = vlaneseq
    %v1608 = vshrl.u32 %v1607, 7
    %v1609 = vsub.s32 4, %v1608
    %v1610 = vrot.slane %v1277, %v1609
    %v1611 = vlaneseq
    %v1612 = vshrl.u32 %v1611, 7
    %v1613 = vsub.s32 5, %v1612
    %v1614 = vrot.slane %v1277, %v1613
    %v1615 = vlaneseq
    %v1616 = vshrl.u32 %v1615, 7
    %v1617 = vsub.s32 6, %v1616
    %v1618 = vrot.slane %v1277, %v1617
    %v1619 = vlaneseq
    %v1620 = vshrl.u32 %v1619, 7
    %v1621 = vsub.s32 7, %v1620
    %v1622 = vrot.slane %v1277, %v1621
    %v1623 = vlaneseq
    %v1624 = vshrl.u32 %v1623, 7
    %v1625 = vsub.s32 0, %v1624
    %v1626 = vrot.slane %v1278, %v1625
    %v1627 = vlaneseq
    %v1628 = vshrl.u32 %v1627, 7
    %v1629 = vsub.s32 1, %v1628
    %v1630 = vrot.slane %v1278, %v1629
    %v1631 = vlaneseq
    %v1632 = vshrl.u32 %v1631, 7
    %v1633 = vsub.s32 2, %v1632
    %v1634 = vrot.slane %v1278, %v1633
    %v1635 = vlaneseq
    %v1636 = vshrl.u32 %v1635, 7
    %v1637 = vsub.s32 3, %v1636
    %v1638 = vrot.slane %v1278, %v1637
    %v1639 = vlaneseq
    %v1640 = vshrl.u32 %v1639, 7
    %v1641 = vsub.s32 4, %v1640
    %v1642 = vrot.slane %v1278, %v1641
    %v1643 = vlaneseq
    %v1644 = vshrl.u32 %v1643, 7
    %v1645 = vsub.s32 5, %v1644
    %v1646 = vrot.slane %v1278, %v1645
    %v1647 = vlaneseq
    %v1648 = vshrl.u32 %v1647, 7
    %v1649 = vsub.s32 6, %v1648
    %v1650 = vrot.slane %v1278, %v1649
    %v1651 = vlaneseq
    %v1652 = vshrl.u32 %v1651, 7
    %v1653 = vsub.s32 7, %v1652
    %v1654 = vrot.slane %v1278, %v1653
    %v1655 = vlaneseq
    %v1656 = vshrl.u32 %v1655, 7
    %v1657 = vsub.s32 0, %v1656
    %v1658 = vrot.slane %v1279, %v1657
    %v1659 = vlaneseq
    %v1660 = vshrl.u32 %v1659, 7
    %v1661 = vsub.s32 1, %v1660
    %v1662 = vrot.slane %v1279, %v1661
    %v1663 = vlaneseq
    %v1664 = vshrl.u32 %v1663, 7
    %v1665 = vsub.s32 2, %v1664
    %v1666 = vrot.slane %v1279, %v1665
    %v1667 = vlaneseq
    %v1668 = vshrl.u32 %v1667, 7
    %v1669 = vsub.s32 3, %v1668
    %v1670 = vrot.slane %v1279, %v1669
    %v1671 = vlaneseq
    %v1672 = vshrl.u32 %v1671, 7
    %v1673 = vsub.s32 4, %v1672
    %v1674 = vrot.slane %v1279, %v1673
    %v1675 = vlaneseq
    %v1676 = vshrl.u32 %v1675, 7
    %v1677 = vsub.s32 5, %v1676
    %v1678 = vrot.slane %v1279, %v1677
    %v1679 = vlaneseq
    %v1680 = vshrl.u32 %v1679, 7
    %v1681 = vsub.s32 6, %v1680
    %v1682 = vrot.slane %v1279, %v1681
    %v1683 = vlaneseq
    %v1684 = vshrl.u32 %v1683, 7
    %v1685 = vsub.s32 7, %v1684
    %v1686 = vrot.slane %v1279, %v1685
    %v1687 = vlaneseq
    %v1688 = vshrl.u32 %v1687, 7
    %v1689 = vsub.s32 0, %v1688
    %v1690 = vrot.slane %v1280, %v1689
    %v1691 = vlaneseq
    %v1692 = vshrl.u32 %v1691, 7
    %v1693 = vsub.s32 1, %v1692
    %v1694 = vrot.slane %v1280, %v1693
    %v1695 = vlaneseq
    %v1696 = vshrl.u32 %v1695, 7
    %v1697 = vsub.s32 2, %v1696
    %v1698 = vrot.slane %v1280, %v1697
    %v1699 = vlaneseq
    %v1700 = vshrl.u32 %v1699, 7
    %v1701 = vsub.s32 3, %v1700
    %v1702 = vrot.slane %v1280, %v1701
    %v1703 = vlaneseq
    %v1704 = vshrl.u32 %v1703, 7
    %v1705 = vsub.s32 4, %v1704
    %v1706 = vrot.slane %v1280, %v1705
    %v1707 = vlaneseq
    %v1708 = vshrl.u32 %v1707, 7
    %v1709 = vsub.s32 5, %v1708
    %v1710 = vrot.slane %v1280, %v1709
    %v1711 = vlaneseq
    %v1712 = vshrl.u32 %v1711, 7
    %v1713 = vsub.s32 6, %v1712
    %v1714 = vrot.slane %v1280, %v1713
    %v1715 = vlaneseq
    %v1716 = vshrl.u32 %v1715, 7
    %v1717 = vsub.s32 7, %v1716
    %v1718 = vrot.slane %v1280, %v1717
    %v1719 = vlaneseq
    %v1720 = vshrl.u32 %v1719, 7
    %v1721 = vsub.s32 0, %v1720
    %v1722 = vrot.slane %v1281, %v1721
    %v1723 = vlaneseq
    %v1724 = vshrl.u32 %v1723, 7
    %v1725 = vsub.s32 1, %v1724
    %v1726 = vrot.slane %v1281, %v1725
    %v1727 = vlaneseq
    %v1728 = vshrl.u32 %v1727, 7
    %v1729 = vsub.s32 2, %v1728
    %v1730 = vrot.slane %v1281, %v1729
    %v1731 = vlaneseq
    %v1732 = vshrl.u32 %v1731, 7
    %v1733 = vsub.s32 3, %v1732
    %v1734 = vrot.slane %v1281, %v1733
    %v1735 = vlaneseq
    %v1736 = vshrl.u32 %v1735, 7
    %v1737 = vsub.s32 4, %v1736
    %v1738 = vrot.slane %v1281, %v1737
    %v1739 = vlaneseq
    %v1740 = vshrl.u32 %v1739, 7
    %v1741 = vsub.s32 5, %v1740
    %v1742 = vrot.slane %v1281, %v1741
    %v1743 = vlaneseq
    %v1744 = vshrl.u32 %v1743, 7
    %v1745 = vsub.s32 6, %v1744
    %v1746 = vrot.slane %v1281, %v1745
    %v1747 = vlaneseq
    %v1748 = vshrl.u32 %v1747, 7
    %v1749 = vsub.s32 7, %v1748
    %v1750 = vrot.slane %v1281, %v1749
    %v1751 = vlaneseq
    %v1752 = vshrl.u32 %v1751, 7
    %v1753 = vsub.s32 0, %v1752
    %v1754 = vrot.slane %v1282, %v1753
    %v1755 = vlaneseq
    %v1756 = vshrl.u32 %v1755, 7
    %v1757 = vsub.s32 1, %v1756
    %v1758 = vrot.slane %v1282, %v1757
    %v1759 = vlaneseq
    %v1760 = vshrl.u32 %v1759, 7
    %v1761 = vsub.s32 2, %v1760
    %v1762 = vrot.slane %v1282, %v1761
    %v1763 = vlaneseq
    %v1764 = vshrl.u32 %v1763, 7
    %v1765 = vsub.s32 3, %v1764
    %v1766 = vrot.slane %v1282, %v1765
    %v1767 = vlaneseq
    %v1768 = vshrl.u32 %v1767, 7
    %v1769 = vsub.s32 4, %v1768
    %v1770 = vrot.slane %v1282, %v1769
    %v1771 = vlaneseq
    %v1772 = vshrl.u32 %v1771, 7
    %v1773 = vsub.s32 5, %v1772
    %v1774 = vrot.slane %v1282, %v1773
    %v1775 = vlaneseq
    %v1776 = vshrl.u32 %v1775, 7
    %v1777 = vsub.s32 6, %v1776
    %v1778 = vrot.slane %v1282, %v1777
    %v1779 = vlaneseq
    %v1780 = vshrl.u32 %v1779, 7
    %v1781 = vsub.s32 7, %v1780
    %v1782 = vrot.slane %v1282, %v1781
    %v1783 = vlaneseq
    %v1784 = vshrl.u32 %v1783, 7
    %v1785 = vsub.s32 0, %v1784
    %v1786 = vrot.slane %v1283, %v1785
    %v1787 = vlaneseq
    %v1788 = vshrl.u32 %v1787, 7
    %v1789 = vsub.s32 1, %v1788
    %v1790 = vrot.slane %v1283, %v1789
    %v1791 = vlaneseq
    %v1792 = vshrl.u32 %v1791, 7
    %v1793 = vsub.s32 2, %v1792
    %v1794 = vrot.slane %v1283, %v1793
    %v1795 = vlaneseq
    %v1796 = vshrl.u32 %v1795, 7
    %v1797 = vsub.s32 3, %v1796
    %v1798 = vrot.slane %v1283, %v1797
    %v1799 = vlaneseq
    %v1800 = vshrl.u32 %v1799, 7
    %v1801 = vsub.s32 4, %v1800
    %v1802 = vrot.slane %v1283, %v1801
    %v1803 = vlaneseq
    %v1804 = vshrl.u32 %v1803, 7
    %v1805 = vsub.s32 5, %v1804
    %v1806 = vrot.slane %v1283, %v1805
    %v1807 = vlaneseq
    %v1808 = vshrl.u32 %v1807, 7
    %v1809 = vsub.s32 6, %v1808
    %v1810 = vrot.slane %v1283, %v1809
    %v1811 = vlaneseq
    %v1812 = vshrl.u32 %v1811, 7
    %v1813 = vsub.s32 7, %v1812
    %v1814 = vrot.slane %v1283, %v1813
    %v1815 = vlaneseq
    %v1816 = vshrl.u32 %v1815, 7
    %v1817 = vsub.s32 0, %v1816
    %v1818 = vrot.slane %v1284, %v1817
    %v1819 = vlaneseq
    %v1820 = vshrl.u32 %v1819, 7
    %v1821 = vsub.s32 1, %v1820
    %v1822 = vrot.slane %v1284, %v1821
    %v1823 = vlaneseq
    %v1824 = vshrl.u32 %v1823, 7
    %v1825 = vsub.s32 2, %v1824
    %v1826 = vrot.slane %v1284, %v1825
    %v1827 = vlaneseq
    %v1828 = vshrl.u32 %v1827, 7
    %v1829 = vsub.s32 3, %v1828
    %v1830 = vrot.slane %v1284, %v1829
    %v1831 = vlaneseq
    %v1832 = vshrl.u32 %v1831, 7
    %v1833 = vsub.s32 4, %v1832
    %v1834 = vrot.slane %v1284, %v1833
    %v1835 = vlaneseq
    %v1836 = vshrl.u32 %v1835, 7
    %v1837 = vsub.s32 5, %v1836
    %v1838 = vrot.slane %v1284, %v1837
    %v1839 = vlaneseq
    %v1840 = vshrl.u32 %v1839, 7
    %v1841 = vsub.s32 6, %v1840
    %v1842 = vrot.slane %v1284, %v1841
    %v1843 = vlaneseq
    %v1844 = vshrl.u32 %v1843, 7
    %v1845 = vsub.s32 7, %v1844
    %v1846 = vrot.slane %v1284, %v1845
    %v1847 = vlaneseq
    %v1848 = vshrl.u32 %v1847, 7
    %v1849 = vsub.s32 0, %v1848
    %v1850 = vrot.slane %v1285, %v1849
    %v1851 = vlaneseq
    %v1852 = vshrl.u32 %v1851, 7
    %v1853 = vsub.s32 1, %v1852
    %v1854 = vrot.slane %v1285, %v1853
    %v1855 = vlaneseq
    %v1856 = vshrl.u32 %v1855, 7
    %v1857 = vsub.s32 2, %v1856
    %v1858 = vrot.slane %v1285, %v1857
    %v1859 = vlaneseq
    %v1860 = vshrl.u32 %v1859, 7
    %v1861 = vsub.s32 3, %v1860
    %v1862 = vrot.slane %v1285, %v1861
    %v1863 = vlaneseq
    %v1864 = vshrl.u32 %v1863, 7
    %v1865 = vsub.s32 4, %v1864
    %v1866 = vrot.slane %v1285, %v1865
    %v1867 = vlaneseq
    %v1868 = vshrl.u32 %v1867, 7
    %v1869 = vsub.s32 5, %v1868
    %v1870 = vrot.slane %v1285, %v1869
    %v1871 = vlaneseq
    %v1872 = vshrl.u32 %v1871, 7
    %v1873 = vsub.s32 6, %v1872
    %v1874 = vrot.slane %v1285, %v1873
    %v1875 = vlaneseq
    %v1876 = vshrl.u32 %v1875, 7
    %v1877 = vsub.s32 7, %v1876
    %v1878 = vrot.slane %v1285, %v1877
    %v1879 = vlaneseq
    %v1880 = vshrl.u32 %v1879, 7
    %v1881 = vsub.s32 0, %v1880
    %v1882 = vrot.slane %v1286, %v1881
    %v1883 = vlaneseq
    %v1884 = vshrl.u32 %v1883, 7
    %v1885 = vsub.s32 1, %v1884
    %v1886 = vrot.slane %v1286, %v1885
    %v1887 = vlaneseq
    %v1888 = vshrl.u32 %v1887, 7
    %v1889 = vsub.s32 2, %v1888
    %v1890 = vrot.slane %v1286, %v1889
    %v1891 = vlaneseq
    %v1892 = vshrl.u32 %v1891, 7
    %v1893 = vsub.s32 3, %v1892
    %v1894 = vrot.slane %v1286, %v1893
    %v1895 = vlaneseq
    %v1896 = vshrl.u32 %v1895, 7
    %v1897 = vsub.s32 4, %v1896
    %v1898 = vrot.slane %v1286, %v1897
    %v1899 = vlaneseq
    %v1900 = vshrl.u32 %v1899, 7
    %v1901 = vsub.s32 5, %v1900
    %v1902 = vrot.slane %v1286, %v1901
    %v1903 = vlaneseq
    %v1904 = vshrl.u32 %v1903, 7
    %v1905 = vsub.s32 6, %v1904
    %v1906 = vrot.slane %v1286, %v1905
    %v1907 = vlaneseq
    %v1908 = vshrl.u32 %v1907, 7
    %v1909 = vsub.s32 7, %v1908
    %v1910 = vrot.slane %v1286, %v1909
    %v1911 = vlaneseq
    %v1912 = vshrl.u32 %v1911, 7
    %v1913 = vsub.s32 0, %v1912
    %v1914 = vrot.slane %v1287, %v1913
    %v1915 = vlaneseq
    %v1916 = vshrl.u32 %v1915, 7
    %v1917 = vsub.s32 1, %v1916
    %v1918 = vrot.slane %v1287, %v1917
    %v1919 = vlaneseq
    %v1920 = vshrl.u32 %v1919, 7
    %v1921 = vsub.s32 2, %v1920
    %v1922 = vrot.slane %v1287, %v1921
    %v1923 = vlaneseq
    %v1924 = vshrl.u32 %v1923, 7
    %v1925 = vsub.s32 3, %v1924
    %v1926 = vrot.slane %v1287, %v1925
    %v1927 = vlaneseq
    %v1928 = vshrl.u32 %v1927, 7
    %v1929 = vsub.s32 4, %v1928
    %v1930 = vrot.slane %v1287, %v1929
    %v1931 = vlaneseq
    %v1932 = vshrl.u32 %v1931, 7
    %v1933 = vsub.s32 5, %v1932
    %v1934 = vrot.slane %v1287, %v1933
    %v1935 = vlaneseq
    %v1936 = vshrl.u32 %v1935, 7
    %v1937 = vsub.s32 6, %v1936
    %v1938 = vrot.slane %v1287, %v1937
    %v1939 = vlaneseq
    %v1940 = vshrl.u32 %v1939, 7
    %v1941 = vsub.s32 7, %v1940
    %v1942 = vrot.slane %v1287, %v1941
    %v1943 = vlaneseq
    %v1944 = vshrl.u32 %v1943, 7
    %v1945 = vsub.s32 0, %v1944
    %v1946 = vrot.slane %v1288, %v1945
    %v1947 = vlaneseq
    %v1948 = vshrl.u32 %v1947, 7
    %v1949 = vsub.s32 1, %v1948
    %v1950 = vrot.slane %v1288, %v1949
    %v1951 = vlaneseq
    %v1952 = vshrl.u32 %v1951, 7
    %v1953 = vsub.s32 2, %v1952
    %v1954 = vrot.slane %v1288, %v1953
    %v1955 = vlaneseq
    %v1956 = vshrl.u32 %v1955, 7
    %v1957 = vsub.s32 3, %v1956
    %v1958 = vrot.slane %v1288, %v1957
    %v1959 = vlaneseq
    %v1960 = vshrl.u32 %v1959, 7
    %v1961 = vsub.s32 4, %v1960
    %v1962 = vrot.slane %v1288, %v1961
    %v1963 = vlaneseq
    %v1964 = vshrl.u32 %v1963, 7
    %v1965 = vsub.s32 5, %v1964
    %v1966 = vrot.slane %v1288, %v1965
    %v1967 = vlaneseq
    %v1968 = vshrl.u32 %v1967, 7
    %v1969 = vsub.s32 6, %v1968
    %v1970 = vrot.slane %v1288, %v1969
    %v1971 = vlaneseq
    %v1972 = vshrl.u32 %v1971, 7
    %v1973 = vsub.s32 7, %v1972
    %v1974 = vrot.slane %v1288, %v1973
    %v1975 = vlaneseq
    %v1976 = vshrl.u32 %v1975, 7
    %v1977 = vsub.s32 0, %v1976
    %v1978 = vrot.slane %v1289, %v1977
    %v1979 = vlaneseq
    %v1980 = vshrl.u32 %v1979, 7
    %v1981 = vsub.s32 1, %v1980
    %v1982 = vrot.slane %v1289, %v1981
    %v1983 = vlaneseq
    %v1984 = vshrl.u32 %v1983, 7
    %v1985 = vsub.s32 2, %v1984
    %v1986 = vrot.slane %v1289, %v1985
    %v1987 = vlaneseq
    %v1988 = vshrl.u32 %v1987, 7
    %v1989 = vsub.s32 3, %v1988
    %v1990 = vrot.slane %v1289, %v1989
    %v1991 = vlaneseq
    %v1992 = vshrl.u32 %v1991, 7
    %v1993 = vsub.s32 4, %v1992
    %v1994 = vrot.slane %v1289, %v1993
    %v1995 = vlaneseq
    %v1996 = vshrl.u32 %v1995, 7
    %v1997 = vsub.s32 5, %v1996
    %v1998 = vrot.slane %v1289, %v1997
    %v1999 = vlaneseq
    %v2000 = vshrl.u32 %v1999, 7
    %v2001 = vsub.s32 6, %v2000
    %v2002 = vrot.slane %v1289, %v2001
    %v2003 = vlaneseq
    %v2004 = vshrl.u32 %v2003, 7
    %v2005 = vsub.s32 7, %v2004
    %v2006 = vrot.slane %v1289, %v2005
    %v2007 = vlaneseq
    %v2008 = vshrl.u32 %v2007, 7
    %v2009 = vsub.s32 0, %v2008
    %v2010 = vrot.slane %v1290, %v2009
    %v2011 = vlaneseq
    %v2012 = vshrl.u32 %v2011, 7
    %v2013 = vsub.s32 1, %v2012
    %v2014 = vrot.slane %v1290, %v2013
    %v2015 = vlaneseq
    %v2016 = vshrl.u32 %v2015, 7
    %v2017 = vsub.s32 2, %v2016
    %v2018 = vrot.slane %v1290, %v2017
    %v2019 = vlaneseq
    %v2020 = vshrl.u32 %v2019, 7
    %v2021 = vsub.s32 3, %v2020
    %v2022 = vrot.slane %v1290, %v2021
    %v2023 = vlaneseq
    %v2024 = vshrl.u32 %v2023, 7
    %v2025 = vsub.s32 4, %v2024
    %v2026 = vrot.slane %v1290, %v2025
    %v2027 = vlaneseq
    %v2028 = vshrl.u32 %v2027, 7
    %v2029 = vsub.s32 5, %v2028
    %v2030 = vrot.slane %v1290, %v2029
    %v2031 = vlaneseq
    %v2032 = vshrl.u32 %v2031, 7
    %v2033 = vsub.s32 6, %v2032
    %v2034 = vrot.slane %v1290, %v2033
    %v2035 = vlaneseq
    %v2036 = vshrl.u32 %v2035, 7
    %v2037 = vsub.s32 7, %v2036
    %v2038 = vrot.slane %v1290, %v2037
    %v2039 = vlaneseq
    %v2040 = vshrl.u32 %v2039, 7
    %v2041 = vsub.s32 0, %v2040
    %v2042 = vrot.slane %v1291, %v2041
    %v2043 = vlaneseq
    %v2044 = vshrl.u32 %v2043, 7
    %v2045 = vsub.s32 1, %v2044
    %v2046 = vrot.slane %v1291, %v2045
    %v2047 = vlaneseq
    %v2048 = vshrl.u32 %v2047, 7
    %v2049 = vsub.s32 2, %v2048
    %v2050 = vrot.slane %v1291, %v2049
    %v2051 = vlaneseq
    %v2052 = vshrl.u32 %v2051, 7
    %v2053 = vsub.s32 3, %v2052
    %v2054 = vrot.slane %v1291, %v2053
    %v2055 = vlaneseq
    %v2056 = vshrl.u32 %v2055, 7
    %v2057 = vsub.s32 4, %v2056
    %v2058 = vrot.slane %v1291, %v2057
    %v2059 = vlaneseq
    %v2060 = vshrl.u32 %v2059, 7
    %v2061 = vsub.s32 5, %v2060
    %v2062 = vrot.slane %v1291, %v2061
    %v2063 = vlaneseq
    %v2064 = vshrl.u32 %v2063, 7
    %v2065 = vsub.s32 6, %v2064
    %v2066 = vrot.slane %v1291, %v2065
    %v2067 = vlaneseq
    %v2068 = vshrl.u32 %v2067, 7
    %v2069 = vsub.s32 7, %v2068
    %v2070 = vrot.slane %v1291, %v2069
    %v2071 = vlaneseq
    %v2072 = vshrl.u32 %v2071, 7
    %v2073 = vsub.s32 0, %v2072
    %v2074 = vrot.slane %v1292, %v2073
    %v2075 = vlaneseq
    %v2076 = vshrl.u32 %v2075, 7
    %v2077 = vsub.s32 1, %v2076
    %v2078 = vrot.slane %v1292, %v2077
    %v2079 = vlaneseq
    %v2080 = vshrl.u32 %v2079, 7
    %v2081 = vsub.s32 2, %v2080
    %v2082 = vrot.slane %v1292, %v2081
    %v2083 = vlaneseq
    %v2084 = vshrl.u32 %v2083, 7
    %v2085 = vsub.s32 3, %v2084
    %v2086 = vrot.slane %v1292, %v2085
    %v2087 = vlaneseq
    %v2088 = vshrl.u32 %v2087, 7
    %v2089 = vsub.s32 4, %v2088
    %v2090 = vrot.slane %v1292, %v2089
    %v2091 = vlaneseq
    %v2092 = vshrl.u32 %v2091, 7
    %v2093 = vsub.s32 5, %v2092
    %v2094 = vrot.slane %v1292, %v2093
    %v2095 = vlaneseq
    %v2096 = vshrl.u32 %v2095, 7
    %v2097 = vsub.s32 6, %v2096
    %v2098 = vrot.slane %v1292, %v2097
    %v2099 = vlaneseq
    %v2100 = vshrl.u32 %v2099, 7
    %v2101 = vsub.s32 7, %v2100
    %v2102 = vrot.slane %v1292, %v2101
    %v2103 = vlaneseq
    %v2104 = vshrl.u32 %v2103, 7
    %v2105 = vsub.s32 0, %v2104
    %v2106 = vrot.slane %v1293, %v2105
    %v2107 = vlaneseq
    %v2108 = vshrl.u32 %v2107, 7
    %v2109 = vsub.s32 1, %v2108
    %v2110 = vrot.slane %v1293, %v2109
    %v2111 = vlaneseq
    %v2112 = vshrl.u32 %v2111, 7
    %v2113 = vsub.s32 2, %v2112
    %v2114 = vrot.slane %v1293, %v2113
    %v2115 = vlaneseq
    %v2116 = vshrl.u32 %v2115, 7
    %v2117 = vsub.s32 3, %v2116
    %v2118 = vrot.slane %v1293, %v2117
    %v2119 = vlaneseq
    %v2120 = vshrl.u32 %v2119, 7
    %v2121 = vsub.s32 4, %v2120
    %v2122 = vrot.slane %v1293, %v2121
    %v2123 = vlaneseq
    %v2124 = vshrl.u32 %v2123, 7
    %v2125 = vsub.s32 5, %v2124
    %v2126 = vrot.slane %v1293, %v2125
    %v2127 = vlaneseq
    %v2128 = vshrl.u32 %v2127, 7
    %v2129 = vsub.s32 6, %v2128
    %v2130 = vrot.slane %v1293, %v2129
    %v2131 = vlaneseq
    %v2132 = vshrl.u32 %v2131, 7
    %v2133 = vsub.s32 7, %v2132
    %v2134 = vrot.slane %v1293, %v2133
    %v2135 = vlaneseq
    %v2136 = vshrl.u32 %v2135, 7
    %v2137 = vsub.s32 0, %v2136
    %v2138 = vrot.slane %v1294, %v2137
    %v2139 = vlaneseq
    %v2140 = vshrl.u32 %v2139, 7
    %v2141 = vsub.s32 1, %v2140
    %v2142 = vrot.slane %v1294, %v2141
    %v2143 = vlaneseq
    %v2144 = vshrl.u32 %v2143, 7
    %v2145 = vsub.s32 2, %v2144
    %v2146 = vrot.slane %v1294, %v2145
    %v2147 = vlaneseq
    %v2148 = vshrl.u32 %v2147, 7
    %v2149 = vsub.s32 3, %v2148
    %v2150 = vrot.slane %v1294, %v2149
    %v2151 = vlaneseq
    %v2152 = vshrl.u32 %v2151, 7
    %v2153 = vsub.s32 4, %v2152
    %v2154 = vrot.slane %v1294, %v2153
    %v2155 = vlaneseq
    %v2156 = vshrl.u32 %v2155, 7
    %v2157 = vsub.s32 5, %v2156
    %v2158 = vrot.slane %v1294, %v2157
    %v2159 = vlaneseq
    %v2160 = vshrl.u32 %v2159, 7
    %v2161 = vsub.s32 6, %v2160
    %v2162 = vrot.slane %v1294, %v2161
    %v2163 = vlaneseq
    %v2164 = vshrl.u32 %v2163, 7
    %v2165 = vsub.s32 7, %v2164
    %v2166 = vrot.slane %v1294, %v2165
    %v2167 = vlaneseq
    %v2168 = vshrl.u32 %v2167, 7
    %v2169 = vsub.s32 0, %v2168
    %v2170 = vrot.slane %v1295, %v2169
    %v2171 = vlaneseq
    %v2172 = vshrl.u32 %v2171, 7
    %v2173 = vsub.s32 1, %v2172
    %v2174 = vrot.slane %v1295, %v2173
    %v2175 = vlaneseq
    %v2176 = vshrl.u32 %v2175, 7
    %v2177 = vsub.s32 2, %v2176
    %v2178 = vrot.slane %v1295, %v2177
    %v2179 = vlaneseq
    %v2180 = vshrl.u32 %v2179, 7
    %v2181 = vsub.s32 3, %v2180
    %v2182 = vrot.slane %v1295, %v2181
    %v2183 = vlaneseq
    %v2184 = vshrl.u32 %v2183, 7
    %v2185 = vsub.s32 4, %v2184
    %v2186 = vrot.slane %v1295, %v2185
    %v2187 = vlaneseq
    %v2188 = vshrl.u32 %v2187, 7
    %v2189 = vsub.s32 5, %v2188
    %v2190 = vrot.slane %v1295, %v2189
    %v2191 = vlaneseq
    %v2192 = vshrl.u32 %v2191, 7
    %v2193 = vsub.s32 6, %v2192
    %v2194 = vrot.slane %v1295, %v2193
    %v2195 = vlaneseq
    %v2196 = vshrl.u32 %v2195, 7
    %v2197 = vsub.s32 7, %v2196
    %v2198 = vrot.slane %v1295, %v2197
    %v2199 = vlaneseq
    %v2200 = vshrl.u32 %v2199, 7
    %v2201 = vsub.s32 0, %v2200
    %v2202 = vrot.slane %v1296, %v2201
    %v2203 = vlaneseq
    %v2204 = vshrl.u32 %v2203, 7
    %v2205 = vsub.s32 1, %v2204
    %v2206 = vrot.slane %v1296, %v2205
    %v2207 = vlaneseq
    %v2208 = vshrl.u32 %v2207, 7
    %v2209 = vsub.s32 2, %v2208
    %v2210 = vrot.slane %v1296, %v2209
    %v2211 = vlaneseq
    %v2212 = vshrl.u32 %v2211, 7
    %v2213 = vsub.s32 3, %v2212
    %v2214 = vrot.slane %v1296, %v2213
    %v2215 = vlaneseq
    %v2216 = vshrl.u32 %v2215, 7
    %v2217 = vsub.s32 4, %v2216
    %v2218 = vrot.slane %v1296, %v2217
    %v2219 = vlaneseq
    %v2220 = vshrl.u32 %v2219, 7
    %v2221 = vsub.s32 5, %v2220
    %v2222 = vrot.slane %v1296, %v2221
    %v2223 = vlaneseq
    %v2224 = vshrl.u32 %v2223, 7
    %v2225 = vsub.s32 6, %v2224
    %v2226 = vrot.slane %v1296, %v2225
    %v2227 = vlaneseq
    %v2228 = vshrl.u32 %v2227, 7
    %v2229 = vsub.s32 7, %v2228
    %v2230 = vrot.slane %v1296, %v2229
    %v2231 = vlaneseq
    %v2232 = vshrl.u32 %v2231, 7
    %v2233 = vsub.s32 0, %v2232
    %v2234 = vrot.slane %v1297, %v2233
    %v2235 = vlaneseq
    %v2236 = vshrl.u32 %v2235, 7
    %v2237 = vsub.s32 1, %v2236
    %v2238 = vrot.slane %v1297, %v2237
    %v2239 = vlaneseq
    %v2240 = vshrl.u32 %v2239, 7
    %v2241 = vsub.s32 2, %v2240
    %v2242 = vrot.slane %v1297, %v2241
    %v2243 = vlaneseq
    %v2244 = vshrl.u32 %v2243, 7
    %v2245 = vsub.s32 3, %v2244
    %v2246 = vrot.slane %v1297, %v2245
    %v2247 = vlaneseq
    %v2248 = vshrl.u32 %v2247, 7
    %v2249 = vsub.s32 4, %v2248
    %v2250 = vrot.slane %v1297, %v2249
    %v2251 = vlaneseq
    %v2252 = vshrl.u32 %v2251, 7
    %v2253 = vsub.s32 5, %v2252
    %v2254 = vrot.slane %v1297, %v2253
    %v2255 = vlaneseq
    %v2256 = vshrl.u32 %v2255, 7
    %v2257 = vsub.s32 6, %v2256
    %v2258 = vrot.slane %v1297, %v2257
    %v2259 = vlaneseq
    %v2260 = vshrl.u32 %v2259, 7
    %v2261 = vsub.s32 7, %v2260
    %v2262 = vrot.slane %v1297, %v2261
    %v2263 = vlaneseq
    %v2264 = vshrl.u32 %v2263, 7
    %v2265 = vsub.s32 0, %v2264
    %v2266 = vrot.slane %v1298, %v2265
    %v2267 = vlaneseq
    %v2268 = vshrl.u32 %v2267, 7
    %v2269 = vsub.s32 1, %v2268
    %v2270 = vrot.slane %v1298, %v2269
    %v2271 = vlaneseq
    %v2272 = vshrl.u32 %v2271, 7
    %v2273 = vsub.s32 2, %v2272
    %v2274 = vrot.slane %v1298, %v2273
    %v2275 = vlaneseq
    %v2276 = vshrl.u32 %v2275, 7
    %v2277 = vsub.s32 3, %v2276
    %v2278 = vrot.slane %v1298, %v2277
    %v2279 = vlaneseq
    %v2280 = vshrl.u32 %v2279, 7
    %v2281 = vsub.s32 4, %v2280
    %v2282 = vrot.slane %v1298, %v2281
    %v2283 = vlaneseq
    %v2284 = vshrl.u32 %v2283, 7
    %v2285 = vsub.s32 5, %v2284
    %v2286 = vrot.slane %v1298, %v2285
    %v2287 = vlaneseq
    %v2288 = vshrl.u32 %v2287, 7
    %v2289 = vsub.s32 6, %v2288
    %v2290 = vrot.slane %v1298, %v2289
    %v2291 = vlaneseq
    %v2292 = vshrl.u32 %v2291, 7
    %v2293 = vsub.s32 7, %v2292
    %v2294 = vrot.slane %v1298, %v2293
    %v2295 = vlaneseq
    %v2296 = vshrl.u32 %v2295, 7
    %v2297 = vsub.s32 0, %v2296
    %v2298 = vrot.slane %v1299, %v2297
    %v2299 = vlaneseq
    %v2300 = vshrl.u32 %v2299, 7
    %v2301 = vsub.s32 1, %v2300
    %v2302 = vrot.slane %v1299, %v2301
    %v2303 = vlaneseq
    %v2304 = vshrl.u32 %v2303, 7
    %v2305 = vsub.s32 2, %v2304
    %v2306 = vrot.slane %v1299, %v2305
    %v2307 = vlaneseq
    %v2308 = vshrl.u32 %v2307, 7
    %v2309 = vsub.s32 3, %v2308
    %v2310 = vrot.slane %v1299, %v2309
    %v2311 = vlaneseq
    %v2312 = vshrl.u32 %v2311, 7
    %v2313 = vsub.s32 4, %v2312
    %v2314 = vrot.slane %v1299, %v2313
    %v2315 = vlaneseq
    %v2316 = vshrl.u32 %v2315, 7
    %v2317 = vsub.s32 5, %v2316
    %v2318 = vrot.slane %v1299, %v2317
    %v2319 = vlaneseq
    %v2320 = vshrl.u32 %v2319, 7
    %v2321 = vsub.s32 6, %v2320
    %v2322 = vrot.slane %v1299, %v2321
    %v2323 = vlaneseq
    %v2324 = vshrl.u32 %v2323, 7
    %v2325 = vsub.s32 7, %v2324
    %v2326 = vrot.slane %v1299, %v2325
    %v2327 = vlaneseq
    %v2328 = vshrl.u32 %v2327, 7
    %v2329 = vsub.s32 0, %v2328
    %v2330 = vrot.slane %v1300, %v2329
    %v2331 = vlaneseq
    %v2332 = vshrl.u32 %v2331, 7
    %v2333 = vsub.s32 1, %v2332
    %v2334 = vrot.slane %v1300, %v2333
    %v2335 = vlaneseq
    %v2336 = vshrl.u32 %v2335, 7
    %v2337 = vsub.s32 2, %v2336
    %v2338 = vrot.slane %v1300, %v2337
    %v2339 = vlaneseq
    %v2340 = vshrl.u32 %v2339, 7
    %v2341 = vsub.s32 3, %v2340
    %v2342 = vrot.slane %v1300, %v2341
    %v2343 = vlaneseq
    %v2344 = vshrl.u32 %v2343, 7
    %v2345 = vsub.s32 4, %v2344
    %v2346 = vrot.slane %v1300, %v2345
    %v2347 = vlaneseq
    %v2348 = vshrl.u32 %v2347, 7
    %v2349 = vsub.s32 5, %v2348
    %v2350 = vrot.slane %v1300, %v2349
    %v2351 = vlaneseq
    %v2352 = vshrl.u32 %v2351, 7
    %v2353 = vsub.s32 6, %v2352
    %v2354 = vrot.slane %v1300, %v2353
    %v2355 = vlaneseq
    %v2356 = vshrl.u32 %v2355, 7
    %v2357 = vsub.s32 7, %v2356
    %v2358 = vrot.slane %v1300, %v2357
    %v2359 = vlaneseq
    %v2360 = vshrl.u32 %v2359, 7
    %v2361 = vsub.s32 0, %v2360
    %v2362 = vrot.slane %v1301, %v2361
    %v2363 = vlaneseq
    %v2364 = vshrl.u32 %v2363, 7
    %v2365 = vsub.s32 1, %v2364
    %v2366 = vrot.slane %v1301, %v2365
    %v2367 = vlaneseq
    %v2368 = vshrl.u32 %v2367, 7
    %v2369 = vsub.s32 2, %v2368
    %v2370 = vrot.slane %v1301, %v2369
    %v2371 = vlaneseq
    %v2372 = vshrl.u32 %v2371, 7
    %v2373 = vsub.s32 3, %v2372
    %v2374 = vrot.slane %v1301, %v2373
    %v2375 = vlaneseq
    %v2376 = vshrl.u32 %v2375, 7
    %v2377 = vsub.s32 4, %v2376
    %v2378 = vrot.slane %v1301, %v2377
    %v2379 = vlaneseq
    %v2380 = vshrl.u32 %v2379, 7
    %v2381 = vsub.s32 5, %v2380
    %v2382 = vrot.slane %v1301, %v2381
    %v2383 = vlaneseq
    %v2384 = vshrl.u32 %v2383, 7
    %v2385 = vsub.s32 6, %v2384
    %v2386 = vrot.slane %v1301, %v2385
    %v2387 = vlaneseq
    %v2388 = vshrl.u32 %v2387, 7
    %v2389 = vsub.s32 7, %v2388
    %v2390 = vrot.slane %v1301, %v2389
    %v2391 = vlaneseq
    %v2392 = vshrl.u32 %v2391, 7
    %v2393 = vsub.s32 0, %v2392
    %v2394 = vrot.slane %v1302, %v2393
    %v2395 = vlaneseq
    %v2396 = vshrl.u32 %v2395, 7
    %v2397 = vsub.s32 1, %v2396
    %v2398 = vrot.slane %v1302, %v2397
    %v2399 = vlaneseq
    %v2400 = vshrl.u32 %v2399, 7
    %v2401 = vsub.s32 2, %v2400
    %v2402 = vrot.slane %v1302, %v2401
    %v2403 = vlaneseq
    %v2404 = vshrl.u32 %v2403, 7
    %v2405 = vsub.s32 3, %v2404
    %v2406 = vrot.slane %v1302, %v2405
    %v2407 = vlaneseq
    %v2408 = vshrl.u32 %v2407, 7
    %v2409 = vsub.s32 4, %v2408
    %v2410 = vrot.slane %v1302, %v2409
    %v2411 = vlaneseq
    %v2412 = vshrl.u32 %v2411, 7
    %v2413 = vsub.s32 5, %v2412
    %v2414 = vrot.slane %v1302, %v2413
    %v2415 = vlaneseq
    %v2416 = vshrl.u32 %v2415, 7
    %v2417 = vsub.s32 6, %v2416
    %v2418 = vrot.slane %v1302, %v2417
    %v2419 = vlaneseq
    %v2420 = vshrl.u32 %v2419, 7
    %v2421 = vsub.s32 7, %v2420
    %v2422 = vrot.slane %v1302, %v2421
    %v2423 = vlaneseq
    %v2424 = vshrl.u32 %v2423, 7
    %v2425 = vsub.s32 0, %v2424
    %v2426 = vrot.slane %v1303, %v2425
    %v2427 = vlaneseq
    %v2428 = vshrl.u32 %v2427, 7
    %v2429 = vsub.s32 1, %v2428
    %v2430 = vrot.slane %v1303, %v2429
    %v2431 = vlaneseq
    %v2432 = vshrl.u32 %v2431, 7
    %v2433 = vsub.s32 2, %v2432
    %v2434 = vrot.slane %v1303, %v2433
    %v2435 = vlaneseq
    %v2436 = vshrl.u32 %v2435, 7
    %v2437 = vsub.s32 3, %v2436
    %v2438 = vrot.slane %v1303, %v2437
    %v2439 = vlaneseq
    %v2440 = vshrl.u32 %v2439, 7
    %v2441 = vsub.s32 4, %v2440
    %v2442 = vrot.slane %v1303, %v2441
    %v2443 = vlaneseq
    %v2444 = vshrl.u32 %v2443, 7
    %v2445 = vsub.s32 5, %v2444
    %v2446 = vrot.slane %v1303, %v2445
    %v2447 = vlaneseq
    %v2448 = vshrl.u32 %v2447, 7
    %v2449 = vsub.s32 6, %v2448
    %v2450 = vrot.slane %v1303, %v2449
    %v2451 = vlaneseq
    %v2452 = vshrl.u32 %v2451, 7
    %v2453 = vsub.s32 7, %v2452
    %v2454 = vrot.slane %v1303, %v2453
    %v2455 = vlaneseq
    %v2456 = vshrl.u32 %v2455, 7
    %v2457 = vsub.s32 0, %v2456
    %v2458 = vrot.slane %v1304, %v2457
    %v2459 = vlaneseq
    %v2460 = vshrl.u32 %v2459, 7
    %v2461 = vsub.s32 1, %v2460
    %v2462 = vrot.slane %v1304, %v2461
    %v2463 = vlaneseq
    %v2464 = vshrl.u32 %v2463, 7
    %v2465 = vsub.s32 2, %v2464
    %v2466 = vrot.slane %v1304, %v2465
    %v2467 = vlaneseq
    %v2468 = vshrl.u32 %v2467, 7
    %v2469 = vsub.s32 3, %v2468
    %v2470 = vrot.slane %v1304, %v2469
    %v2471 = vlaneseq
    %v2472 = vshrl.u32 %v2471, 7
    %v2473 = vsub.s32 4, %v2472
    %v2474 = vrot.slane %v1304, %v2473
    %v2475 = vlaneseq
    %v2476 = vshrl.u32 %v2475, 7
    %v2477 = vsub.s32 5, %v2476
    %v2478 = vrot.slane %v1304, %v2477
    %v2479 = vlaneseq
    %v2480 = vshrl.u32 %v2479, 7
    %v2481 = vsub.s32 6, %v2480
    %v2482 = vrot.slane %v1304, %v2481
    %v2483 = vlaneseq
    %v2484 = vshrl.u32 %v2483, 7
    %v2485 = vsub.s32 7, %v2484
    %v2486 = vrot.slane %v1304, %v2485
    %v2487 = vlaneseq
    %v2488 = vshrl.u32 %v2487, 7
    %v2489 = vsub.s32 0, %v2488
    %v2490 = vrot.slane %v1305, %v2489
    %v2491 = vlaneseq
    %v2492 = vshrl.u32 %v2491, 7
    %v2493 = vsub.s32 1, %v2492
    %v2494 = vrot.slane %v1305, %v2493
    %v2495 = vlaneseq
    %v2496 = vshrl.u32 %v2495, 7
    %v2497 = vsub.s32 2, %v2496
    %v2498 = vrot.slane %v1305, %v2497
    %v2499 = vlaneseq
    %v2500 = vshrl.u32 %v2499, 7
    %v2501 = vsub.s32 3, %v2500
    %v2502 = vrot.slane %v1305, %v2501
    %v2503 = vlaneseq
    %v2504 = vshrl.u32 %v2503, 7
    %v2505 = vsub.s32 4, %v2504
    %v2506 = vrot.slane %v1305, %v2505
    %v2507 = vlaneseq
    %v2508 = vshrl.u32 %v2507, 7
    %v2509 = vsub.s32 5, %v2508
    %v2510 = vrot.slane %v1305, %v2509
    %v2511 = vlaneseq
    %v2512 = vshrl.u32 %v2511, 7
    %v2513 = vsub.s32 6, %v2512
    %v2514 = vrot.slane %v1305, %v2513
    %v2515 = vlaneseq
    %v2516 = vshrl.u32 %v2515, 7
    %v2517 = vsub.s32 7, %v2516
    %v2518 = vrot.slane %v1305, %v2517
    %v2519 = vlaneseq
    %v2520 = vshrl.u32 %v2519, 7
    %v2521 = vsub.s32 0, %v2520
    %v2522 = vrot.slane %v1306, %v2521
    %v2523 = vlaneseq
    %v2524 = vshrl.u32 %v2523, 7
    %v2525 = vsub.s32 1, %v2524
    %v2526 = vrot.slane %v1306, %v2525
    %v2527 = vlaneseq
    %v2528 = vshrl.u32 %v2527, 7
    %v2529 = vsub.s32 2, %v2528
    %v2530 = vrot.slane %v1306, %v2529
    %v2531 = vlaneseq
    %v2532 = vshrl.u32 %v2531, 7
    %v2533 = vsub.s32 3, %v2532
    %v2534 = vrot.slane %v1306, %v2533
    %v2535 = vlaneseq
    %v2536 = vshrl.u32 %v2535, 7
    %v2537 = vsub.s32 4, %v2536
    %v2538 = vrot.slane %v1306, %v2537
    %v2539 = vlaneseq
    %v2540 = vshrl.u32 %v2539, 7
    %v2541 = vsub.s32 5, %v2540
    %v2542 = vrot.slane %v1306, %v2541
    %v2543 = vlaneseq
    %v2544 = vshrl.u32 %v2543, 7
    %v2545 = vsub.s32 6, %v2544
    %v2546 = vrot.slane %v1306, %v2545
    %v2547 = vlaneseq
    %v2548 = vshrl.u32 %v2547, 7
    %v2549 = vsub.s32 7, %v2548
    %v2550 = vrot.slane %v1306, %v2549
    %v2551 = vlaneseq
    %v2552 = vshrl.u32 %v2551, 7
    %v2553 = vsub.s32 0, %v2552
    %v2554 = vrot.slane %v1307, %v2553
    %v2555 = vlaneseq
    %v2556 = vshrl.u32 %v2555, 7
    %v2557 = vsub.s32 1, %v2556
    %v2558 = vrot.slane %v1307, %v2557
    %v2559 = vlaneseq
    %v2560 = vshrl.u32 %v2559, 7
    %v2561 = vsub.s32 2, %v2560
    %v2562 = vrot.slane %v1307, %v2561
    %v2563 = vlaneseq
    %v2564 = vshrl.u32 %v2563, 7
    %v2565 = vsub.s32 3, %v2564
    %v2566 = vrot.slane %v1307, %v2565
    %v2567 = vlaneseq
    %v2568 = vshrl.u32 %v2567, 7
    %v2569 = vsub.s32 4, %v2568
    %v2570 = vrot.slane %v1307, %v2569
    %v2571 = vlaneseq
    %v2572 = vshrl.u32 %v2571, 7
    %v2573 = vsub.s32 5, %v2572
    %v2574 = vrot.slane %v1307, %v2573
    %v2575 = vlaneseq
    %v2576 = vshrl.u32 %v2575, 7
    %v2577 = vsub.s32 6, %v2576
    %v2578 = vrot.slane %v1307, %v2577
    %v2579 = vlaneseq
    %v2580 = vshrl.u32 %v2579, 7
    %v2581 = vsub.s32 7, %v2580
    %v2582 = vrot.slane %v1307, %v2581
    %v2583 = vlaneseq
    %v2584 = vshrl.u32 %v2583, 7
    %v2585 = vsub.s32 0, %v2584
    %v2586 = vrot.slane %v1308, %v2585
    %v2587 = vlaneseq
    %v2588 = vshrl.u32 %v2587, 7
    %v2589 = vsub.s32 1, %v2588
    %v2590 = vrot.slane %v1308, %v2589
    %v2591 = vlaneseq
    %v2592 = vshrl.u32 %v2591, 7
    %v2593 = vsub.s32 2, %v2592
    %v2594 = vrot.slane %v1308, %v2593
    %v2595 = vlaneseq
    %v2596 = vshrl.u32 %v2595, 7
    %v2597 = vsub.s32 3, %v2596
    %v2598 = vrot.slane %v1308, %v2597
    %v2599 = vlaneseq
    %v2600 = vshrl.u32 %v2599, 7
    %v2601 = vsub.s32 4, %v2600
    %v2602 = vrot.slane %v1308, %v2601
    %v2603 = vlaneseq
    %v2604 = vshrl.u32 %v2603, 7
    %v2605 = vsub.s32 5, %v2604
    %v2606 = vrot.slane %v1308, %v2605
    %v2607 = vlaneseq
    %v2608 = vshrl.u32 %v2607, 7
    %v2609 = vsub.s32 6, %v2608
    %v2610 = vrot.slane %v1308, %v2609
    %v2611 = vlaneseq
    %v2612 = vshrl.u32 %v2611, 7
    %v2613 = vsub.s32 7, %v2612
    %v2614 = vrot.slane %v1308, %v2613
    %v2615 = vlaneseq
    %v2616 = vshrl.u32 %v2615, 7
    %v2617 = vsub.s32 0, %v2616
    %v2618 = vrot.slane %v1309, %v2617
    %v2619 = vlaneseq
    %v2620 = vshrl.u32 %v2619, 7
    %v2621 = vsub.s32 1, %v2620
    %v2622 = vrot.slane %v1309, %v2621
    %v2623 = vlaneseq
    %v2624 = vshrl.u32 %v2623, 7
    %v2625 = vsub.s32 2, %v2624
    %v2626 = vrot.slane %v1309, %v2625
    %v2627 = vlaneseq
    %v2628 = vshrl.u32 %v2627, 7
    %v2629 = vsub.s32 3, %v2628
    %v2630 = vrot.slane %v1309, %v2629
    %v2631 = vlaneseq
    %v2632 = vshrl.u32 %v2631, 7
    %v2633 = vsub.s32 4, %v2632
    %v2634 = vrot.slane %v1309, %v2633
    %v2635 = vlaneseq
    %v2636 = vshrl.u32 %v2635, 7
    %v2637 = vsub.s32 5, %v2636
    %v2638 = vrot.slane %v1309, %v2637
    %v2639 = vlaneseq
    %v2640 = vshrl.u32 %v2639, 7
    %v2641 = vsub.s32 6, %v2640
    %v2642 = vrot.slane %v1309, %v2641
    %v2643 = vlaneseq
    %v2644 = vshrl.u32 %v2643, 7
    %v2645 = vsub.s32 7, %v2644
    %v2646 = vrot.slane %v1309, %v2645
    %v2647 = vlaneseq
    %v2648 = vshrl.u32 %v2647, 7
    %v2649 = vsub.s32 0, %v2648
    %v2650 = vrot.slane %v1310, %v2649
    %v2651 = vlaneseq
    %v2652 = vshrl.u32 %v2651, 7
    %v2653 = vsub.s32 1, %v2652
    %v2654 = vrot.slane %v1310, %v2653
    %v2655 = vlaneseq
    %v2656 = vshrl.u32 %v2655, 7
    %v2657 = vsub.s32 2, %v2656
    %v2658 = vrot.slane %v1310, %v2657
    %v2659 = vlaneseq
    %v2660 = vshrl.u32 %v2659, 7
    %v2661 = vsub.s32 3, %v2660
    %v2662 = vrot.slane %v1310, %v2661
    %v2663 = vlaneseq
    %v2664 = vshrl.u32 %v2663, 7
    %v2665 = vsub.s32 4, %v2664
    %v2666 = vrot.slane %v1310, %v2665
    %v2667 = vlaneseq
    %v2668 = vshrl.u32 %v2667, 7
    %v2669 = vsub.s32 5, %v2668
    %v2670 = vrot.slane %v1310, %v2669
    %v2671 = vlaneseq
    %v2672 = vshrl.u32 %v2671, 7
    %v2673 = vsub.s32 6, %v2672
    %v2674 = vrot.slane %v1310, %v2673
    %v2675 = vlaneseq
    %v2676 = vshrl.u32 %v2675, 7
    %v2677 = vsub.s32 7, %v2676
    %v2678 = vrot.slane %v1310, %v2677
    %v2679 = vlaneseq
    %v2680 = vshrl.u32 %v2679, 7
    %v2681 = vsub.s32 0, %v2680
    %v2682 = vrot.slane %v1311, %v2681
    %v2683 = vlaneseq
    %v2684 = vshrl.u32 %v2683, 7
    %v2685 = vsub.s32 1, %v2684
    %v2686 = vrot.slane %v1311, %v2685
    %v2687 = vlaneseq
    %v2688 = vshrl.u32 %v2687, 7
    %v2689 = vsub.s32 2, %v2688
    %v2690 = vrot.slane %v1311, %v2689
    %v2691 = vlaneseq
    %v2692 = vshrl.u32 %v2691, 7
    %v2693 = vsub.s32 3, %v2692
    %v2694 = vrot.slane %v1311, %v2693
    %v2695 = vlaneseq
    %v2696 = vshrl.u32 %v2695, 7
    %v2697 = vsub.s32 4, %v2696
    %v2698 = vrot.slane %v1311, %v2697
    %v2699 = vlaneseq
    %v2700 = vshrl.u32 %v2699, 7
    %v2701 = vsub.s32 5, %v2700
    %v2702 = vrot.slane %v1311, %v2701
    %v2703 = vlaneseq
    %v2704 = vshrl.u32 %v2703, 7
    %v2705 = vsub.s32 6, %v2704
    %v2706 = vrot.slane %v1311, %v2705
    %v2707 = vlaneseq
    %v2708 = vshrl.u32 %v2707, 7
    %v2709 = vsub.s32 7, %v2708
    %v2710 = vrot.slane %v1311, %v2709
    %v2711 = vlaneseq
    %v2712 = vshrl.u32 %v2711, 7
    %v2713 = vsub.s32 0, %v2712
    %v2714 = vrot.slane %v1312, %v2713
    %v2715 = vlaneseq
    %v2716 = vshrl.u32 %v2715, 7
    %v2717 = vsub.s32 1, %v2716
    %v2718 = vrot.slane %v1312, %v2717
    %v2719 = vlaneseq
    %v2720 = vshrl.u32 %v2719, 7
    %v2721 = vsub.s32 2, %v2720
    %v2722 = vrot.slane %v1312, %v2721
    %v2723 = vlaneseq
    %v2724 = vshrl.u32 %v2723, 7
    %v2725 = vsub.s32 3, %v2724
    %v2726 = vrot.slane %v1312, %v2725
    %v2727 = vlaneseq
    %v2728 = vshrl.u32 %v2727, 7
    %v2729 = vsub.s32 4, %v2728
    %v2730 = vrot.slane %v1312, %v2729
    %v2731 = vlaneseq
    %v2732 = vshrl.u32 %v2731, 7
    %v2733 = vsub.s32 5, %v2732
    %v2734 = vrot.slane %v1312, %v2733
    %v2735 = vlaneseq
    %v2736 = vshrl.u32 %v2735, 7
    %v2737 = vsub.s32 6, %v2736
    %v2738 = vrot.slane %v1312, %v2737
    %v2739 = vlaneseq
    %v2740 = vshrl.u32 %v2739, 7
    %v2741 = vsub.s32 7, %v2740
    %v2742 = vrot.slane %v1312, %v2741
    %v2743 = vlaneseq
    %v2744 = vshrl.u32 %v2743, 7
    %v2745 = vsub.s32 0, %v2744
    %v2746 = vrot.slane %v1313, %v2745
    %v2747 = vlaneseq
    %v2748 = vshrl.u32 %v2747, 7
    %v2749 = vsub.s32 1, %v2748
    %v2750 = vrot.slane %v1313, %v2749
    %v2751 = vlaneseq
    %v2752 = vshrl.u32 %v2751, 7
    %v2753 = vsub.s32 2, %v2752
    %v2754 = vrot.slane %v1313, %v2753
    %v2755 = vlaneseq
    %v2756 = vshrl.u32 %v2755, 7
    %v2757 = vsub.s32 3, %v2756
    %v2758 = vrot.slane %v1313, %v2757
    %v2759 = vlaneseq
    %v2760 = vshrl.u32 %v2759, 7
    %v2761 = vsub.s32 4, %v2760
    %v2762 = vrot.slane %v1313, %v2761
    %v2763 = vlaneseq
    %v2764 = vshrl.u32 %v2763, 7
    %v2765 = vsub.s32 5, %v2764
    %v2766 = vrot.slane %v1313, %v2765
    %v2767 = vlaneseq
    %v2768 = vshrl.u32 %v2767, 7
    %v2769 = vsub.s32 6, %v2768
    %v2770 = vrot.slane %v1313, %v2769
    %v2771 = vlaneseq
    %v2772 = vshrl.u32 %v2771, 7
    %v2773 = vsub.s32 7, %v2772
    %v2774 = vrot.slane %v1313, %v2773
    %v2775 = vlaneseq
    %v2776 = vshrl.u32 %v2775, 7
    %v2777 = vsub.s32 0, %v2776
    %v2778 = vrot.slane %v1314, %v2777
    %v2779 = vlaneseq
    %v2780 = vshrl.u32 %v2779, 7
    %v2781 = vsub.s32 1, %v2780
    %v2782 = vrot.slane %v1314, %v2781
    %v2783 = vlaneseq
    %v2784 = vshrl.u32 %v2783, 7
    %v2785 = vsub.s32 2, %v2784
    %v2786 = vrot.slane %v1314, %v2785
    %v2787 = vlaneseq
    %v2788 = vshrl.u32 %v2787, 7
    %v2789 = vsub.s32 3, %v2788
    %v2790 = vrot.slane %v1314, %v2789
    %v2791 = vlaneseq
    %v2792 = vshrl.u32 %v2791, 7
    %v2793 = vsub.s32 4, %v2792
    %v2794 = vrot.slane %v1314, %v2793
    %v2795 = vlaneseq
    %v2796 = vshrl.u32 %v2795, 7
    %v2797 = vsub.s32 5, %v2796
    %v2798 = vrot.slane %v1314, %v2797
    %v2799 = vlaneseq
    %v2800 = vshrl.u32 %v2799, 7
    %v2801 = vsub.s32 6, %v2800
    %v2802 = vrot.slane %v1314, %v2801
    %v2803 = vlaneseq
    %v2804 = vshrl.u32 %v2803, 7
    %v2805 = vsub.s32 7, %v2804
    %v2806 = vrot.slane %v1314, %v2805
    %v2807 = vlaneseq
    %v2808 = vshrl.u32 %v2807, 7
    %v2809 = vsub.s32 0, %v2808
    %v2810 = vrot.slane %v1315, %v2809
    %v2811 = vlaneseq
    %v2812 = vshrl.u32 %v2811, 7
    %v2813 = vsub.s32 1, %v2812
    %v2814 = vrot.slane %v1315, %v2813
    %v2815 = vlaneseq
    %v2816 = vshrl.u32 %v2815, 7
    %v2817 = vsub.s32 2, %v2816
    %v2818 = vrot.slane %v1315, %v2817
    %v2819 = vlaneseq
    %v2820 = vshrl.u32 %v2819, 7
    %v2821 = vsub.s32 3, %v2820
    %v2822 = vrot.slane %v1315, %v2821
    %v2823 = vlaneseq
    %v2824 = vshrl.u32 %v2823, 7
    %v2825 = vsub.s32 4, %v2824
    %v2826 = vrot.slane %v1315, %v2825
    %v2827 = vlaneseq
    %v2828 = vshrl.u32 %v2827, 7
    %v2829 = vsub.s32 5, %v2828
    %v2830 = vrot.slane %v1315, %v2829
    %v2831 = vlaneseq
    %v2832 = vshrl.u32 %v2831, 7
    %v2833 = vsub.s32 6, %v2832
    %v2834 = vrot.slane %v1315, %v2833
    %v2835 = vlaneseq
    %v2836 = vshrl.u32 %v2835, 7
    %v2837 = vsub.s32 7, %v2836
    %v2838 = vrot.slane %v1315, %v2837
    %v2839 = vlaneseq
    %v2840 = vshrl.u32 %v2839, 7
    %v2841 = vsub.s32 0, %v2840
    %v2842 = vrot.slane %v1316, %v2841
    %v2843 = vlaneseq
    %v2844 = vshrl.u32 %v2843, 7
    %v2845 = vsub.s32 1, %v2844
    %v2846 = vrot.slane %v1316, %v2845
    %v2847 = vlaneseq
    %v2848 = vshrl.u32 %v2847, 7
    %v2849 = vsub.s32 2, %v2848
    %v2850 = vrot.slane %v1316, %v2849
    %v2851 = vlaneseq
    %v2852 = vshrl.u32 %v2851, 7
    %v2853 = vsub.s32 3, %v2852
    %v2854 = vrot.slane %v1316, %v2853
    %v2855 = vlaneseq
    %v2856 = vshrl.u32 %v2855, 7
    %v2857 = vsub.s32 4, %v2856
    %v2858 = vrot.slane %v1316, %v2857
    %v2859 = vlaneseq
    %v2860 = vshrl.u32 %v2859, 7
    %v2861 = vsub.s32 5, %v2860
    %v2862 = vrot.slane %v1316, %v2861
    %v2863 = vlaneseq
    %v2864 = vshrl.u32 %v2863, 7
    %v2865 = vsub.s32 6, %v2864
    %v2866 = vrot.slane %v1316, %v2865
    %v2867 = vlaneseq
    %v2868 = vshrl.u32 %v2867, 7
    %v2869 = vsub.s32 7, %v2868
    %v2870 = vrot.slane %v1316, %v2869
    %v2871 = vlaneseq
    %v2872 = vshrl.u32 %v2871, 7
    %v2873 = vsub.s32 0, %v2872
    %v2874 = vrot.slane %v1317, %v2873
    %v2875 = vlaneseq
    %v2876 = vshrl.u32 %v2875, 7
    %v2877 = vsub.s32 1, %v2876
    %v2878 = vrot.slane %v1317, %v2877
    %v2879 = vlaneseq
    %v2880 = vshrl.u32 %v2879, 7
    %v2881 = vsub.s32 2, %v2880
    %v2882 = vrot.slane %v1317, %v2881
    %v2883 = vlaneseq
    %v2884 = vshrl.u32 %v2883, 7
    %v2885 = vsub.s32 3, %v2884
    %v2886 = vrot.slane %v1317, %v2885
    %v2887 = vlaneseq
    %v2888 = vshrl.u32 %v2887, 7
    %v2889 = vsub.s32 4, %v2888
    %v2890 = vrot.slane %v1317, %v2889
    %v2891 = vlaneseq
    %v2892 = vshrl.u32 %v2891, 7
    %v2893 = vsub.s32 5, %v2892
    %v2894 = vrot.slane %v1317, %v2893
    %v2895 = vlaneseq
    %v2896 = vshrl.u32 %v2895, 7
    %v2897 = vsub.s32 6, %v2896
    %v2898 = vrot.slane %v1317, %v2897
    %v2899 = vlaneseq
    %v2900 = vshrl.u32 %v2899, 7
    %v2901 = vsub.s32 7, %v2900
    %v2902 = vrot.slane %v1317, %v2901
    %v2903 = vlaneseq
    %v2904 = vshrl.u32 %v2903, 7
    %v2905 = vsub.s32 0, %v2904
    %v2906 = vrot.slane %v1318, %v2905
    %v2907 = vlaneseq
    %v2908 = vshrl.u32 %v2907, 7
    %v2909 = vsub.s32 1, %v2908
    %v2910 = vrot.slane %v1318, %v2909
    %v2911 = vlaneseq
    %v2912 = vshrl.u32 %v2911, 7
    %v2913 = vsub.s32 2, %v2912
    %v2914 = vrot.slane %v1318, %v2913
    %v2915 = vlaneseq
    %v2916 = vshrl.u32 %v2915, 7
    %v2917 = vsub.s32 3, %v2916
    %v2918 = vrot.slane %v1318, %v2917
    %v2919 = vlaneseq
    %v2920 = vshrl.u32 %v2919, 7
    %v2921 = vsub.s32 4, %v2920
    %v2922 = vrot.slane %v1318, %v2921
    %v2923 = vlaneseq
    %v2924 = vshrl.u32 %v2923, 7
    %v2925 = vsub.s32 5, %v2924
    %v2926 = vrot.slane %v1318, %v2925
    %v2927 = vlaneseq
    %v2928 = vshrl.u32 %v2927, 7
    %v2929 = vsub.s32 6, %v2928
    %v2930 = vrot.slane %v1318, %v2929
    %v2931 = vlaneseq
    %v2932 = vshrl.u32 %v2931, 7
    %v2933 = vsub.s32 7, %v2932
    %v2934 = vrot.slane %v1318, %v2933
    %v2935 = vlaneseq
    %v2936 = vshrl.u32 %v2935, 7
    %v2937 = vsub.s32 0, %v2936
    %v2938 = vrot.slane %v1319, %v2937
    %v2939 = vlaneseq
    %v2940 = vshrl.u32 %v2939, 7
    %v2941 = vsub.s32 1, %v2940
    %v2942 = vrot.slane %v1319, %v2941
    %v2943 = vlaneseq
    %v2944 = vshrl.u32 %v2943, 7
    %v2945 = vsub.s32 2, %v2944
    %v2946 = vrot.slane %v1319, %v2945
    %v2947 = vlaneseq
    %v2948 = vshrl.u32 %v2947, 7
    %v2949 = vsub.s32 3, %v2948
    %v2950 = vrot.slane %v1319, %v2949
    %v2951 = vlaneseq
    %v2952 = vshrl.u32 %v2951, 7
    %v2953 = vsub.s32 4, %v2952
    %v2954 = vrot.slane %v1319, %v2953
    %v2955 = vlaneseq
    %v2956 = vshrl.u32 %v2955, 7
    %v2957 = vsub.s32 5, %v2956
    %v2958 = vrot.slane %v1319, %v2957
    %v2959 = vlaneseq
    %v2960 = vshrl.u32 %v2959, 7
    %v2961 = vsub.s32 6, %v2960
    %v2962 = vrot.slane %v1319, %v2961
    %v2963 = vlaneseq
    %v2964 = vshrl.u32 %v2963, 7
    %v2965 = vsub.s32 7, %v2964
    %v2966 = vrot.slane %v1319, %v2965
    %v2967 = vlaneseq
    %v2968 = vshrl.u32 %v2967, 7
    %v2969 = vsub.s32 0, %v2968
    %v2970 = vrot.slane %v1320, %v2969
    %v2971 = vlaneseq
    %v2972 = vshrl.u32 %v2971, 7
    %v2973 = vsub.s32 1, %v2972
    %v2974 = vrot.slane %v1320, %v2973
    %v2975 = vlaneseq
    %v2976 = vshrl.u32 %v2975, 7
    %v2977 = vsub.s32 2, %v2976
    %v2978 = vrot.slane %v1320, %v2977
    %v2979 = vlaneseq
    %v2980 = vshrl.u32 %v2979, 7
    %v2981 = vsub.s32 3, %v2980
    %v2982 = vrot.slane %v1320, %v2981
    %v2983 = vlaneseq
    %v2984 = vshrl.u32 %v2983, 7
    %v2985 = vsub.s32 4, %v2984
    %v2986 = vrot.slane %v1320, %v2985
    %v2987 = vlaneseq
    %v2988 = vshrl.u32 %v2987, 7
    %v2989 = vsub.s32 5, %v2988
    %v2990 = vrot.slane %v1320, %v2989
    %v2991 = vlaneseq
    %v2992 = vshrl.u32 %v2991, 7
    %v2993 = vsub.s32 6, %v2992
    %v2994 = vrot.slane %v1320, %v2993
    %v2995 = vlaneseq
    %v2996 = vshrl.u32 %v2995, 7
    %v2997 = vsub.s32 7, %v2996
    %v2998 = vrot.slane %v1320, %v2997
    %v2999 = vlaneseq
    %v3000 = vshrl.u32 %v2999, 7
    %v3001 = vsub.s32 0, %v3000
    %v3002 = vrot.slane %v1321, %v3001
    %v3003 = vlaneseq
    %v3004 = vshrl.u32 %v3003, 7
    %v3005 = vsub.s32 1, %v3004
    %v3006 = vrot.slane %v1321, %v3005
    %v3007 = vlaneseq
    %v3008 = vshrl.u32 %v3007, 7
    %v3009 = vsub.s32 2, %v3008
    %v3010 = vrot.slane %v1321, %v3009
    %v3011 = vlaneseq
    %v3012 = vshrl.u32 %v3011, 7
    %v3013 = vsub.s32 3, %v3012
    %v3014 = vrot.slane %v1321, %v3013
    %v3015 = vlaneseq
    %v3016 = vshrl.u32 %v3015, 7
    %v3017 = vsub.s32 4, %v3016
    %v3018 = vrot.slane %v1321, %v3017
    %v3019 = vlaneseq
    %v3020 = vshrl.u32 %v3019, 7
    %v3021 = vsub.s32 5, %v3020
    %v3022 = vrot.slane %v1321, %v3021
    %v3023 = vlaneseq
    %v3024 = vshrl.u32 %v3023, 7
    %v3025 = vsub.s32 6, %v3024
    %v3026 = vrot.slane %v1321, %v3025
    %v3027 = vlaneseq
    %v3028 = vshrl.u32 %v3027, 7
    %v3029 = vsub.s32 7, %v3028
    %v3030 = vrot.slane %v1321, %v3029
    %v3031 = vlaneseq
    %v3032 = vshrl.u32 %v3031, 7
    %v3033 = vsub.s32 0, %v3032
    %v3034 = vrot.slane %v1322, %v3033
    %v3035 = vlaneseq
    %v3036 = vshrl.u32 %v3035, 7
    %v3037 = vsub.s32 1, %v3036
    %v3038 = vrot.slane %v1322, %v3037
    %v3039 = vlaneseq
    %v3040 = vshrl.u32 %v3039, 7
    %v3041 = vsub.s32 2, %v3040
    %v3042 = vrot.slane %v1322, %v3041
    %v3043 = vlaneseq
    %v3044 = vshrl.u32 %v3043, 7
    %v3045 = vsub.s32 3, %v3044
    %v3046 = vrot.slane %v1322, %v3045
    %v3047 = vlaneseq
    %v3048 = vshrl.u32 %v3047, 7
    %v3049 = vsub.s32 4, %v3048
    %v3050 = vrot.slane %v1322, %v3049
    %v3051 = vlaneseq
    %v3052 = vshrl.u32 %v3051, 7
    %v3053 = vsub.s32 5, %v3052
    %v3054 = vrot.slane %v1322, %v3053
    %v3055 = vlaneseq
    %v3056 = vshrl.u32 %v3055, 7
    %v3057 = vsub.s32 6, %v3056
    %v3058 = vrot.slane %v1322, %v3057
    %v3059 = vlaneseq
    %v3060 = vshrl.u32 %v3059, 7
    %v3061 = vsub.s32 7, %v3060
    %v3062 = vrot.slane %v1322, %v3061
    %v3063 = vlaneseq
    %v3064 = vshrl.u32 %v3063, 7
    %v3065 = vsub.s32 0, %v3064
    %v3066 = vrot.slane %v1323, %v3065
    %v3067 = vlaneseq
    %v3068 = vshrl.u32 %v3067, 7
    %v3069 = vsub.s32 1, %v3068
    %v3070 = vrot.slane %v1323, %v3069
    %v3071 = vlaneseq
    %v3072 = vshrl.u32 %v3071, 7
    %v3073 = vsub.s32 2, %v3072
    %v3074 = vrot.slane %v1323, %v3073
    %v3075 = vlaneseq
    %v3076 = vshrl.u32 %v3075, 7
    %v3077 = vsub.s32 3, %v3076
    %v3078 = vrot.slane %v1323, %v3077
    %v3079 = vlaneseq
    %v3080 = vshrl.u32 %v3079, 7
    %v3081 = vsub.s32 4, %v3080
    %v3082 = vrot.slane %v1323, %v3081
    %v3083 = vlaneseq
    %v3084 = vshrl.u32 %v3083, 7
    %v3085 = vsub.s32 5, %v3084
    %v3086 = vrot.slane %v1323, %v3085
    %v3087 = vlaneseq
    %v3088 = vshrl.u32 %v3087, 7
    %v3089 = vsub.s32 6, %v3088
    %v3090 = vrot.slane %v1323, %v3089
    %v3091 = vlaneseq
    %v3092 = vshrl.u32 %v3091, 7
    %v3093 = vsub.s32 7, %v3092
    %v3094 = vrot.slane %v1323, %v3093
    %v3095 = vlaneseq
    %v3096 = vshrl.u32 %v3095, 7
    %v3097 = vsub.s32 0, %v3096
    %v3098 = vrot.slane %v1324, %v3097
    %v3099 = vlaneseq
    %v3100 = vshrl.u32 %v3099, 7
    %v3101 = vsub.s32 1, %v3100
    %v3102 = vrot.slane %v1324, %v3101
    %v3103 = vlaneseq
    %v3104 = vshrl.u32 %v3103, 7
    %v3105 = vsub.s32 2, %v3104
    %v3106 = vrot.slane %v1324, %v3105
    %v3107 = vlaneseq
    %v3108 = vshrl.u32 %v3107, 7
    %v3109 = vsub.s32 3, %v3108
    %v3110 = vrot.slane %v1324, %v3109
    %v3111 = vlaneseq
    %v3112 = vshrl.u32 %v3111, 7
    %v3113 = vsub.s32 4, %v3112
    %v3114 = vrot.slane %v1324, %v3113
    %v3115 = vlaneseq
    %v3116 = vshrl.u32 %v3115, 7
    %v3117 = vsub.s32 5, %v3116
    %v3118 = vrot.slane %v1324, %v3117
    %v3119 = vlaneseq
    %v3120 = vshrl.u32 %v3119, 7
    %v3121 = vsub.s32 6, %v3120
    %v3122 = vrot.slane %v1324, %v3121
    %v3123 = vlaneseq
    %v3124 = vshrl.u32 %v3123, 7
    %v3125 = vsub.s32 7, %v3124
    %v3126 = vrot.slane %v1324, %v3125
    %v3127 = vlaneseq
    %v3128 = vshrl.u32 %v3127, 7
    %v3129 = vsub.s32 0, %v3128
    %v3130 = vrot.slane %v1325, %v3129
    %v3131 = vlaneseq
    %v3132 = vshrl.u32 %v3131, 7
    %v3133 = vsub.s32 1, %v3132
    %v3134 = vrot.slane %v1325, %v3133
    %v3135 = vlaneseq
    %v3136 = vshrl.u32 %v3135, 7
    %v3137 = vsub.s32 2, %v3136
    %v3138 = vrot.slane %v1325, %v3137
    %v3139 = vlaneseq
    %v3140 = vshrl.u32 %v3139, 7
    %v3141 = vsub.s32 3, %v3140
    %v3142 = vrot.slane %v1325, %v3141
    %v3143 = vlaneseq
    %v3144 = vshrl.u32 %v3143, 7
    %v3145 = vsub.s32 4, %v3144
    %v3146 = vrot.slane %v1325, %v3145
    %v3147 = vlaneseq
    %v3148 = vshrl.u32 %v3147, 7
    %v3149 = vsub.s32 5, %v3148
    %v3150 = vrot.slane %v1325, %v3149
    %v3151 = vlaneseq
    %v3152 = vshrl.u32 %v3151, 7
    %v3153 = vsub.s32 6, %v3152
    %v3154 = vrot.slane %v1325, %v3153
    %v3155 = vlaneseq
    %v3156 = vshrl.u32 %v3155, 7
    %v3157 = vsub.s32 7, %v3156
    %v3158 = vrot.slane %v1325, %v3157
    %v3159 = vlaneseq
    %v3160 = vshrl.u32 %v3159, 7
    %v3161 = vsub.s32 0, %v3160
    %v3162 = vrot.slane %v1326, %v3161
    %v3163 = vlaneseq
    %v3164 = vshrl.u32 %v3163, 7
    %v3165 = vsub.s32 1, %v3164
    %v3166 = vrot.slane %v1326, %v3165
    %v3167 = vlaneseq
    %v3168 = vshrl.u32 %v3167, 7
    %v3169 = vsub.s32 2, %v3168
    %v3170 = vrot.slane %v1326, %v3169
    %v3171 = vlaneseq
    %v3172 = vshrl.u32 %v3171, 7
    %v3173 = vsub.s32 3, %v3172
    %v3174 = vrot.slane %v1326, %v3173
    %v3175 = vlaneseq
    %v3176 = vshrl.u32 %v3175, 7
    %v3177 = vsub.s32 4, %v3176
    %v3178 = vrot.slane %v1326, %v3177
    %v3179 = vlaneseq
    %v3180 = vshrl.u32 %v3179, 7
    %v3181 = vsub.s32 5, %v3180
    %v3182 = vrot.slane %v1326, %v3181
    %v3183 = vlaneseq
    %v3184 = vshrl.u32 %v3183, 7
    %v3185 = vsub.s32 6, %v3184
    %v3186 = vrot.slane %v1326, %v3185
    %v3187 = vlaneseq
    %v3188 = vshrl.u32 %v3187, 7
    %v3189 = vsub.s32 7, %v3188
    %v3190 = vrot.slane %v1326, %v3189
    %v3191 = vlaneseq
    %v3192 = vshrl.u32 %v3191, 7
    %v3193 = vsub.s32 0, %v3192
    %v3194 = vrot.slane %v1327, %v3193
    %v3195 = vlaneseq
    %v3196 = vshrl.u32 %v3195, 7
    %v3197 = vsub.s32 1, %v3196
    %v3198 = vrot.slane %v1327, %v3197
    %v3199 = vlaneseq
    %v3200 = vshrl.u32 %v3199, 7
    %v3201 = vsub.s32 2, %v3200
    %v3202 = vrot.slane %v1327, %v3201
    %v3203 = vlaneseq
    %v3204 = vshrl.u32 %v3203, 7
    %v3205 = vsub.s32 3, %v3204
    %v3206 = vrot.slane %v1327, %v3205
    %v3207 = vlaneseq
    %v3208 = vshrl.u32 %v3207, 7
    %v3209 = vsub.s32 4, %v3208
    %v3210 = vrot.slane %v1327, %v3209
    %v3211 = vlaneseq
    %v3212 = vshrl.u32 %v3211, 7
    %v3213 = vsub.s32 5, %v3212
    %v3214 = vrot.slane %v1327, %v3213
    %v3215 = vlaneseq
    %v3216 = vshrl.u32 %v3215, 7
    %v3217 = vsub.s32 6, %v3216
    %v3218 = vrot.slane %v1327, %v3217
    %v3219 = vlaneseq
    %v3220 = vshrl.u32 %v3219, 7
    %v3221 = vsub.s32 7, %v3220
    %v3222 = vrot.slane %v1327, %v3221
    %v3223 = vlaneseq
    %v3224 = vshrl.u32 %v3223, 7
    %v3225 = vsub.s32 0, %v3224
    %v3226 = vrot.slane %v1328, %v3225
    %v3227 = vlaneseq
    %v3228 = vshrl.u32 %v3227, 7
    %v3229 = vsub.s32 1, %v3228
    %v3230 = vrot.slane %v1328, %v3229
    %v3231 = vlaneseq
    %v3232 = vshrl.u32 %v3231, 7
    %v3233 = vsub.s32 2, %v3232
    %v3234 = vrot.slane %v1328, %v3233
    %v3235 = vlaneseq
    %v3236 = vshrl.u32 %v3235, 7
    %v3237 = vsub.s32 3, %v3236
    %v3238 = vrot.slane %v1328, %v3237
    %v3239 = vlaneseq
    %v3240 = vshrl.u32 %v3239, 7
    %v3241 = vsub.s32 4, %v3240
    %v3242 = vrot.slane %v1328, %v3241
    %v3243 = vlaneseq
    %v3244 = vshrl.u32 %v3243, 7
    %v3245 = vsub.s32 5, %v3244
    %v3246 = vrot.slane %v1328, %v3245
    %v3247 = vlaneseq
    %v3248 = vshrl.u32 %v3247, 7
    %v3249 = vsub.s32 6, %v3248
    %v3250 = vrot.slane %v1328, %v3249
    %v3251 = vlaneseq
    %v3252 = vshrl.u32 %v3251, 7
    %v3253 = vsub.s32 7, %v3252
    %v3254 = vrot.slane %v1328, %v3253
    %v3255 = vlaneseq
    %v3256 = vshrl.u32 %v3255, 7
    %v3257 = vsub.s32 0, %v3256
    %v3258 = vrot.slane %v1329, %v3257
    %v3259 = vlaneseq
    %v3260 = vshrl.u32 %v3259, 7
    %v3261 = vsub.s32 1, %v3260
    %v3262 = vrot.slane %v1329, %v3261
    %v3263 = vlaneseq
    %v3264 = vshrl.u32 %v3263, 7
    %v3265 = vsub.s32 2, %v3264
    %v3266 = vrot.slane %v1329, %v3265
    %v3267 = vlaneseq
    %v3268 = vshrl.u32 %v3267, 7
    %v3269 = vsub.s32 3, %v3268
    %v3270 = vrot.slane %v1329, %v3269
    %v3271 = vlaneseq
    %v3272 = vshrl.u32 %v3271, 7
    %v3273 = vsub.s32 4, %v3272
    %v3274 = vrot.slane %v1329, %v3273
    %v3275 = vlaneseq
    %v3276 = vshrl.u32 %v3275, 7
    %v3277 = vsub.s32 5, %v3276
    %v3278 = vrot.slane %v1329, %v3277
    %v3279 = vlaneseq
    %v3280 = vshrl.u32 %v3279, 7
    %v3281 = vsub.s32 6, %v3280
    %v3282 = vrot.slane %v1329, %v3281
    %v3283 = vlaneseq
    %v3284 = vshrl.u32 %v3283, 7
    %v3285 = vsub.s32 7, %v3284
    %v3286 = vrot.slane %v1329, %v3285
    %v3287 = vlaneseq
    %v3288 = vshrl.u32 %v3287, 7
    %v3289 = vsub.s32 0, %v3288
    %v3290 = vrot.slane %v1330, %v3289
    %v3291 = vlaneseq
    %v3292 = vshrl.u32 %v3291, 7
    %v3293 = vsub.s32 1, %v3292
    %v3294 = vrot.slane %v1330, %v3293
    %v3295 = vlaneseq
    %v3296 = vshrl.u32 %v3295, 7
    %v3297 = vsub.s32 2, %v3296
    %v3298 = vrot.slane %v1330, %v3297
    %v3299 = vlaneseq
    %v3300 = vshrl.u32 %v3299, 7
    %v3301 = vsub.s32 3, %v3300
    %v3302 = vrot.slane %v1330, %v3301
    %v3303 = vlaneseq
    %v3304 = vshrl.u32 %v3303, 7
    %v3305 = vsub.s32 4, %v3304
    %v3306 = vrot.slane %v1330, %v3305
    %v3307 = vlaneseq
    %v3308 = vshrl.u32 %v3307, 7
    %v3309 = vsub.s32 5, %v3308
    %v3310 = vrot.slane %v1330, %v3309
    %v3311 = vlaneseq
    %v3312 = vshrl.u32 %v3311, 7
    %v3313 = vsub.s32 6, %v3312
    %v3314 = vrot.slane %v1330, %v3313
    %v3315 = vlaneseq
    %v3316 = vshrl.u32 %v3315, 7
    %v3317 = vsub.s32 7, %v3316
    %v3318 = vrot.slane %v1330, %v3317
    %v3319 = vlaneseq
    %v3320 = vshrl.u32 %v3319, 7
    %v3321 = vsub.s32 0, %v3320
    %v3322 = vrot.slane %v1331, %v3321
    %v3323 = vlaneseq
    %v3324 = vshrl.u32 %v3323, 7
    %v3325 = vsub.s32 1, %v3324
    %v3326 = vrot.slane %v1331, %v3325
    %v3327 = vlaneseq
    %v3328 = vshrl.u32 %v3327, 7
    %v3329 = vsub.s32 2, %v3328
    %v3330 = vrot.slane %v1331, %v3329
    %v3331 = vlaneseq
    %v3332 = vshrl.u32 %v3331, 7
    %v3333 = vsub.s32 3, %v3332
    %v3334 = vrot.slane %v1331, %v3333
    %v3335 = vlaneseq
    %v3336 = vshrl.u32 %v3335, 7
    %v3337 = vsub.s32 4, %v3336
    %v3338 = vrot.slane %v1331, %v3337
    %v3339 = vlaneseq
    %v3340 = vshrl.u32 %v3339, 7
    %v3341 = vsub.s32 5, %v3340
    %v3342 = vrot.slane %v1331, %v3341
    %v3343 = vlaneseq
    %v3344 = vshrl.u32 %v3343, 7
    %v3345 = vsub.s32 6, %v3344
    %v3346 = vrot.slane %v1331, %v3345
    %v3347 = vlaneseq
    %v3348 = vshrl.u32 %v3347, 7
    %v3349 = vsub.s32 7, %v3348
    %v3350 = vrot.slane %v1331, %v3349
    %v3351 = vlaneseq
    %v3352 = vshrl.u32 %v3351, 7
    %v3353 = vsub.s32 0, %v3352
    %v3354 = vrot.slane %v1332, %v3353
    %v3355 = vlaneseq
    %v3356 = vshrl.u32 %v3355, 7
    %v3357 = vsub.s32 1, %v3356
    %v3358 = vrot.slane %v1332, %v3357
    %v3359 = vlaneseq
    %v3360 = vshrl.u32 %v3359, 7
    %v3361 = vsub.s32 2, %v3360
    %v3362 = vrot.slane %v1332, %v3361
    %v3363 = vlaneseq
    %v3364 = vshrl.u32 %v3363, 7
    %v3365 = vsub.s32 3, %v3364
    %v3366 = vrot.slane %v1332, %v3365
    %v3367 = vlaneseq
    %v3368 = vshrl.u32 %v3367, 7
    %v3369 = vsub.s32 4, %v3368
    %v3370 = vrot.slane %v1332, %v3369
    %v3371 = vlaneseq
    %v3372 = vshrl.u32 %v3371, 7
    %v3373 = vsub.s32 5, %v3372
    %v3374 = vrot.slane %v1332, %v3373
    %v3375 = vlaneseq
    %v3376 = vshrl.u32 %v3375, 7
    %v3377 = vsub.s32 6, %v3376
    %v3378 = vrot.slane %v1332, %v3377
    %v3379 = vlaneseq
    %v3380 = vshrl.u32 %v3379, 7
    %v3381 = vsub.s32 7, %v3380
    %v3382 = vrot.slane %v1332, %v3381
    %v3383 = vlaneseq
    %v3384 = vshrl.u32 %v3383, 7
    %v3385 = vsub.s32 0, %v3384
    %v3386 = vrot.slane %v1333, %v3385
    %v3387 = vlaneseq
    %v3388 = vshrl.u32 %v3387, 7
    %v3389 = vsub.s32 1, %v3388
    %v3390 = vrot.slane %v1333, %v3389
    %v3391 = vlaneseq
    %v3392 = vshrl.u32 %v3391, 7
    %v3393 = vsub.s32 2, %v3392
    %v3394 = vrot.slane %v1333, %v3393
    %v3395 = vlaneseq
    %v3396 = vshrl.u32 %v3395, 7
    %v3397 = vsub.s32 3, %v3396
    %v3398 = vrot.slane %v1333, %v3397
    %v3399 = vlaneseq
    %v3400 = vshrl.u32 %v3399, 7
    %v3401 = vsub.s32 4, %v3400
    %v3402 = vrot.slane %v1333, %v3401
    %v3403 = vlaneseq
    %v3404 = vshrl.u32 %v3403, 7
    %v3405 = vsub.s32 5, %v3404
    %v3406 = vrot.slane %v1333, %v3405
    %v3407 = vlaneseq
    %v3408 = vshrl.u32 %v3407, 7
    %v3409 = vsub.s32 6, %v3408
    %v3410 = vrot.slane %v1333, %v3409
    %v3411 = vlaneseq
    %v3412 = vshrl.u32 %v3411, 7
    %v3413 = vsub.s32 7, %v3412
    %v3414 = vrot.slane %v1333, %v3413
    %v3415 = vlaneseq
    %v3416 = vshrl.u32 %v3415, 7
    %v3417 = vsub.s32 0, %v3416
    %v3418 = vrot.slane %v1334, %v3417
    %v3419 = vlaneseq
    %v3420 = vshrl.u32 %v3419, 7
    %v3421 = vsub.s32 1, %v3420
    %v3422 = vrot.slane %v1334, %v3421
    %v3423 = vlaneseq
    %v3424 = vshrl.u32 %v3423, 7
    %v3425 = vsub.s32 2, %v3424
    %v3426 = vrot.slane %v1334, %v3425
    %v3427 = vlaneseq
    %v3428 = vshrl.u32 %v3427, 7
    %v3429 = vsub.s32 3, %v3428
    %v3430 = vrot.slane %v1334, %v3429
    %v3431 = vlaneseq
    %v3432 = vshrl.u32 %v3431, 7
    %v3433 = vsub.s32 4, %v3432
    %v3434 = vrot.slane %v1334, %v3433
    %v3435 = vlaneseq
    %v3436 = vshrl.u32 %v3435, 7
    %v3437 = vsub.s32 5, %v3436
    %v3438 = vrot.slane %v1334, %v3437
    %v3439 = vlaneseq
    %v3440 = vshrl.u32 %v3439, 7
    %v3441 = vsub.s32 6, %v3440
    %v3442 = vrot.slane %v1334, %v3441
    %v3443 = vlaneseq
    %v3444 = vshrl.u32 %v3443, 7
    %v3445 = vsub.s32 7, %v3444
    %v3446 = vrot.slane %v1334, %v3445
    %v3447 = vcombine.low %v1402, %v1406
    %v3448 = vcombine.low %v1410, %v1414
    %v3449 = vcombine.low %v1418, %v1422
    %v3450 = vcombine.low %v1426, %v1430
    %v3452 = vunpack.c.l.s4 1966171168
    %v3453 = vunpack.c.0.s8 %v3452
    %v3454 = vlaneseq
    %v3455 = vshrl.u32 %v3454, 7
    %v3456 = vsub.s32 %v3453, %v3455
    %v3457 = vrot.slane %v3447, %v3456
    %v3459 = vunpack.c.l.s4 1966171168
    %v3460 = vunpack.c.0.s8 %v3459
    %v3461 = vlaneseq
    %v3462 = vshrl.u32 %v3461, 7
    %v3463 = vsub.s32 %v3460, %v3462
    %v3464 = vrot.slane %v3448, %v3463
    %v3466 = vunpack.c.l.s4 1966171168
    %v3467 = vunpack.c.0.s8 %v3466
    %v3468 = vlaneseq
    %v3469 = vshrl.u32 %v3468, 7
    %v3470 = vsub.s32 %v3467, %v3469
    %v3471 = vrot.slane %v3449, %v3470
    %v3473 = vunpack.c.l.s4 1966171168
    %v3474 = vunpack.c.0.s8 %v3473
    %v3475 = vlaneseq
    %v3476 = vshrl.u32 %v3475, 7
    %v3477 = vsub.s32 %v3474, %v3476
    %v3478 = vrot.slane %v3450, %v3477
    %v3479 = vcombine.low %v3457, %v3464
    %v3480 = vcombine.low %v3471, %v3478
    %v3482 = vunpack.c.l.s4 1966171168
    %v3483 = vunpack.c.0.s8 %v3482
    %v3484 = vlaneseq
    %v3485 = vshrl.u32 %v3484, 7
    %v3486 = vsub.s32 %v3483, %v3485
    %v3487 = vrot.slane %v3479, %v3486
    %v3489 = vunpack.c.l.s4 1966171168
    %v3490 = vunpack.c.0.s8 %v3489
    %v3491 = vlaneseq
    %v3492 = vshrl.u32 %v3491, 7
    %v3493 = vsub.s32 %v3490, %v3492
    %v3494 = vrot.slane %v3480, %v3493
    %v3495 = vcombine.low %v3487, %v3494
    %v3496 = vcombine.low %v1434, %v1438
    %v3497 = vcombine.low %v1442, %v1446
    %v3498 = vcombine.low %v1450, %v1454
    %v3499 = vcombine.low %v1458, %v1462
    %v3501 = vunpack.c.l.s4 1966171168
    %v3502 = vunpack.c.0.s8 %v3501
    %v3503 = vlaneseq
    %v3504 = vshrl.u32 %v3503, 7
    %v3505 = vsub.s32 %v3502, %v3504
    %v3506 = vrot.slane %v3496, %v3505
    %v3508 = vunpack.c.l.s4 1966171168
    %v3509 = vunpack.c.0.s8 %v3508
    %v3510 = vlaneseq
    %v3511 = vshrl.u32 %v3510, 7
    %v3512 = vsub.s32 %v3509, %v3511
    %v3513 = vrot.slane %v3497, %v3512
    %v3515 = vunpack.c.l.s4 1966171168
    %v3516 = vunpack.c.0.s8 %v3515
    %v3517 = vlaneseq
    %v3518 = vshrl.u32 %v3517, 7
    %v3519 = vsub.s32 %v3516, %v3518
    %v3520 = vrot.slane %v3498, %v3519
    %v3522 = vunpack.c.l.s4 1966171168
    %v3523 = vunpack.c.0.s8 %v3522
    %v3524 = vlaneseq
    %v3525 = vshrl.u32 %v3524, 7
    %v3526 = vsub.s32 %v3523, %v3525
    %v3527 = vrot.slane %v3499, %v3526
    %v3528 = vcombine.low %v3506, %v3513
    %v3529 = vcombine.low %v3520, %v3527
    %v3531 = vunpack.c.l.s4 1966171168
    %v3532 = vunpack.c.0.s8 %v3531
    %v3533 = vlaneseq
    %v3534 = vshrl.u32 %v3533, 7
    %v3535 = vsub.s32 %v3532, %v3534
    %v3536 = vrot.slane %v3528, %v3535
    %v3538 = vunpack.c.l.s4 1966171168
    %v3539 = vunpack.c.0.s8 %v3538
    %v3540 = vlaneseq
    %v3541 = vshrl.u32 %v3540, 7
    %v3542 = vsub.s32 %v3539, %v3541
    %v3543 = vrot.slane %v3529, %v3542
    %v3544 = vcombine.low %v3536, %v3543
    %v3545 = vcombine.low %v1466, %v1470
    %v3546 = vcombine.low %v1474, %v1478
    %v3547 = vcombine.low %v1482, %v1486
    %v3548 = vcombine.low %v1490, %v1494
    %v3550 = vunpack.c.l.s4 1966171168
    %v3551 = vunpack.c.0.s8 %v3550
    %v3552 = vlaneseq
    %v3553 = vshrl.u32 %v3552, 7
    %v3554 = vsub.s32 %v3551, %v3553
    %v3555 = vrot.slane %v3545, %v3554
    %v3557 = vunpack.c.l.s4 1966171168
    %v3558 = vunpack.c.0.s8 %v3557
    %v3559 = vlaneseq
    %v3560 = vshrl.u32 %v3559, 7
    %v3561 = vsub.s32 %v3558, %v3560
    %v3562 = vrot.slane %v3546, %v3561
    %v3564 = vunpack.c.l.s4 1966171168
    %v3565 = vunpack.c.0.s8 %v3564
    %v3566 = vlaneseq
    %v3567 = vshrl.u32 %v3566, 7
    %v3568 = vsub.s32 %v3565, %v3567
    %v3569 = vrot.slane %v3547, %v3568
    %v3571 = vunpack.c.l.s4 1966171168
    %v3572 = vunpack.c.0.s8 %v3571
    %v3573 = vlaneseq
    %v3574 = vshrl.u32 %v3573, 7
    %v3575 = vsub.s32 %v3572, %v3574
    %v3576 = vrot.slane %v3548, %v3575
    %v3577 = vcombine.low %v3555, %v3562
    %v3578 = vcombine.low %v3569, %v3576
    %v3580 = vunpack.c.l.s4 1966171168
    %v3581 = vunpack.c.0.s8 %v3580
    %v3582 = vlaneseq
    %v3583 = vshrl.u32 %v3582, 7
    %v3584 = vsub.s32 %v3581, %v3583
    %v3585 = vrot.slane %v3577, %v3584
    %v3587 = vunpack.c.l.s4 1966171168
    %v3588 = vunpack.c.0.s8 %v3587
    %v3589 = vlaneseq
    %v3590 = vshrl.u32 %v3589, 7
    %v3591 = vsub.s32 %v3588, %v3590
    %v3592 = vrot.slane %v3578, %v3591
    %v3593 = vcombine.low %v3585, %v3592
    %v3594 = vcombine.low %v1498, %v1502
    %v3595 = vcombine.low %v1506, %v1510
    %v3596 = vcombine.low %v1514, %v1518
    %v3597 = vcombine.low %v1522, %v1526
    %v3599 = vunpack.c.l.s4 1966171168
    %v3600 = vunpack.c.0.s8 %v3599
    %v3601 = vlaneseq
    %v3602 = vshrl.u32 %v3601, 7
    %v3603 = vsub.s32 %v3600, %v3602
    %v3604 = vrot.slane %v3594, %v3603
    %v3606 = vunpack.c.l.s4 1966171168
    %v3607 = vunpack.c.0.s8 %v3606
    %v3608 = vlaneseq
    %v3609 = vshrl.u32 %v3608, 7
    %v3610 = vsub.s32 %v3607, %v3609
    %v3611 = vrot.slane %v3595, %v3610
    %v3613 = vunpack.c.l.s4 1966171168
    %v3614 = vunpack.c.0.s8 %v3613
    %v3615 = vlaneseq
    %v3616 = vshrl.u32 %v3615, 7
    %v3617 = vsub.s32 %v3614, %v3616
    %v3618 = vrot.slane %v3596, %v3617
    %v3620 = vunpack.c.l.s4 1966171168
    %v3621 = vunpack.c.0.s8 %v3620
    %v3622 = vlaneseq
    %v3623 = vshrl.u32 %v3622, 7
    %v3624 = vsub.s32 %v3621, %v3623
    %v3625 = vrot.slane %v3597, %v3624
    %v3626 = vcombine.low %v3604, %v3611
    %v3627 = vcombine.low %v3618, %v3625
    %v3629 = vunpack.c.l.s4 1966171168
    %v3630 = vunpack.c.0.s8 %v3629
    %v3631 = vlaneseq
    %v3632 = vshrl.u32 %v3631, 7
    %v3633 = vsub.s32 %v3630, %v3632
    %v3634 = vrot.slane %v3626, %v3633
    %v3636 = vunpack.c.l.s4 1966171168
    %v3637 = vunpack.c.0.s8 %v3636
    %v3638 = vlaneseq
    %v3639 = vshrl.u32 %v3638, 7
    %v3640 = vsub.s32 %v3637, %v3639
    %v3641 = vrot.slane %v3627, %v3640
    %v3642 = vcombine.low %v3634, %v3641
    %v3643 = vcombine.low %v1530, %v1534
    %v3644 = vcombine.low %v1538, %v1542
    %v3645 = vcombine.low %v1546, %v1550
    %v3646 = vcombine.low %v1554, %v1558
    %v3648 = vunpack.c.l.s4 1966171168
    %v3649 = vunpack.c.0.s8 %v3648
    %v3650 = vlaneseq
    %v3651 = vshrl.u32 %v3650, 7
    %v3652 = vsub.s32 %v3649, %v3651
    %v3653 = vrot.slane %v3643, %v3652
    %v3655 = vunpack.c.l.s4 1966171168
    %v3656 = vunpack.c.0.s8 %v3655
    %v3657 = vlaneseq
    %v3658 = vshrl.u32 %v3657, 7
    %v3659 = vsub.s32 %v3656, %v3658
    %v3660 = vrot.slane %v3644, %v3659
    %v3662 = vunpack.c.l.s4 1966171168
    %v3663 = vunpack.c.0.s8 %v3662
    %v3664 = vlaneseq
    %v3665 = vshrl.u32 %v3664, 7
    %v3666 = vsub.s32 %v3663, %v3665
    %v3667 = vrot.slane %v3645, %v3666
    %v3669 = vunpack.c.l.s4 1966171168
    %v3670 = vunpack.c.0.s8 %v3669
    %v3671 = vlaneseq
    %v3672 = vshrl.u32 %v3671, 7
    %v3673 = vsub.s32 %v3670, %v3672
    %v3674 = vrot.slane %v3646, %v3673
    %v3675 = vcombine.low %v3653, %v3660
    %v3676 = vcombine.low %v3667, %v3674
    %v3678 = vunpack.c.l.s4 1966171168
    %v3679 = vunpack.c.0.s8 %v3678
    %v3680 = vlaneseq
    %v3681 = vshrl.u32 %v3680, 7
    %v3682 = vsub.s32 %v3679, %v3681
    %v3683 = vrot.slane %v3675, %v3682
    %v3685 = vunpack.c.l.s4 1966171168
    %v3686 = vunpack.c.0.s8 %v3685
    %v3687 = vlaneseq
    %v3688 = vshrl.u32 %v3687, 7
    %v3689 = vsub.s32 %v3686, %v3688
    %v3690 = vrot.slane %v3676, %v3689
    %v3691 = vcombine.low %v3683, %v3690
    %v3692 = vcombine.low %v1562, %v1566
    %v3693 = vcombine.low %v1570, %v1574
    %v3694 = vcombine.low %v1578, %v1582
    %v3695 = vcombine.low %v1586, %v1590
    %v3697 = vunpack.c.l.s4 1966171168
    %v3698 = vunpack.c.0.s8 %v3697
    %v3699 = vlaneseq
    %v3700 = vshrl.u32 %v3699, 7
    %v3701 = vsub.s32 %v3698, %v3700
    %v3702 = vrot.slane %v3692, %v3701
    %v3704 = vunpack.c.l.s4 1966171168
    %v3705 = vunpack.c.0.s8 %v3704
    %v3706 = vlaneseq
    %v3707 = vshrl.u32 %v3706, 7
    %v3708 = vsub.s32 %v3705, %v3707
    %v3709 = vrot.slane %v3693, %v3708
    %v3711 = vunpack.c.l.s4 1966171168
    %v3712 = vunpack.c.0.s8 %v3711
    %v3713 = vlaneseq
    %v3714 = vshrl.u32 %v3713, 7
    %v3715 = vsub.s32 %v3712, %v3714
    %v3716 = vrot.slane %v3694, %v3715
    %v3718 = vunpack.c.l.s4 1966171168
    %v3719 = vunpack.c.0.s8 %v3718
    %v3720 = vlaneseq
    %v3721 = vshrl.u32 %v3720, 7
    %v3722 = vsub.s32 %v3719, %v3721
    %v3723 = vrot.slane %v3695, %v3722
    %v3724 = vcombine.low %v3702, %v3709
    %v3725 = vcombine.low %v3716, %v3723
    %v3727 = vunpack.c.l.s4 1966171168
    %v3728 = vunpack.c.0.s8 %v3727
    %v3729 = vlaneseq
    %v3730 = vshrl.u32 %v3729, 7
    %v3731 = vsub.s32 %v3728, %v3730
    %v3732 = vrot.slane %v3724, %v3731
    %v3734 = vunpack.c.l.s4 1966171168
    %v3735 = vunpack.c.0.s8 %v3734
    %v3736 = vlaneseq
    %v3737 = vshrl.u32 %v3736, 7
    %v3738 = vsub.s32 %v3735, %v3737
    %v3739 = vrot.slane %v3725, %v3738
    %v3740 = vcombine.low %v3732, %v3739
    %v3741 = vcombine.low %v1594, %v1598
    %v3742 = vcombine.low %v1602, %v1606
    %v3743 = vcombine.low %v1610, %v1614
    %v3744 = vcombine.low %v1618, %v1622
    %v3746 = vunpack.c.l.s4 1966171168
    %v3747 = vunpack.c.0.s8 %v3746
    %v3748 = vlaneseq
    %v3749 = vshrl.u32 %v3748, 7
    %v3750 = vsub.s32 %v3747, %v3749
    %v3751 = vrot.slane %v3741, %v3750
    %v3753 = vunpack.c.l.s4 1966171168
    %v3754 = vunpack.c.0.s8 %v3753
    %v3755 = vlaneseq
    %v3756 = vshrl.u32 %v3755, 7
    %v3757 = vsub.s32 %v3754, %v3756
    %v3758 = vrot.slane %v3742, %v3757
    %v3760 = vunpack.c.l.s4 1966171168
    %v3761 = vunpack.c.0.s8 %v3760
    %v3762 = vlaneseq
    %v3763 = vshrl.u32 %v3762, 7
    %v3764 = vsub.s32 %v3761, %v3763
    %v3765 = vrot.slane %v3743, %v3764
    %v3767 = vunpack.c.l.s4 1966171168
    %v3768 = vunpack.c.0.s8 %v3767
    %v3769 = vlaneseq
    %v3770 = vshrl.u32 %v3769, 7
    %v3771 = vsub.s32 %v3768, %v3770
    %v3772 = vrot.slane %v3744, %v3771
    %v3773 = vcombine.low %v3751, %v3758
    %v3774 = vcombine.low %v3765, %v3772
    %v3776 = vunpack.c.l.s4 1966171168
    %v3777 = vunpack.c.0.s8 %v3776
    %v3778 = vlaneseq
    %v3779 = vshrl.u32 %v3778, 7
    %v3780 = vsub.s32 %v3777, %v3779
    %v3781 = vrot.slane %v3773, %v3780
    %v3783 = vunpack.c.l.s4 1966171168
    %v3784 = vunpack.c.0.s8 %v3783
    %v3785 = vlaneseq
    %v3786 = vshrl.u32 %v3785, 7
    %v3787 = vsub.s32 %v3784, %v3786
    %v3788 = vrot.slane %v3774, %v3787
    %v3789 = vcombine.low %v3781, %v3788
    %v3790 = vcombine.low %v1626, %v1630
    %v3791 = vcombine.low %v1634, %v1638
    %v3792 = vcombine.low %v1642, %v1646
    %v3793 = vcombine.low %v1650, %v1654
    %v3795 = vunpack.c.l.s4 1966171168
    %v3796 = vunpack.c.0.s8 %v3795
    %v3797 = vlaneseq
    %v3798 = vshrl.u32 %v3797, 7
    %v3799 = vsub.s32 %v3796, %v3798
    %v3800 = vrot.slane %v3790, %v3799
    %v3802 = vunpack.c.l.s4 1966171168
    %v3803 = vunpack.c.0.s8 %v3802
    %v3804 = vlaneseq
    %v3805 = vshrl.u32 %v3804, 7
    %v3806 = vsub.s32 %v3803, %v3805
    %v3807 = vrot.slane %v3791, %v3806
    %v3809 = vunpack.c.l.s4 1966171168
    %v3810 = vunpack.c.0.s8 %v3809
    %v3811 = vlaneseq
    %v3812 = vshrl.u32 %v3811, 7
    %v3813 = vsub.s32 %v3810, %v3812
    %v3814 = vrot.slane %v3792, %v3813
    %v3816 = vunpack.c.l.s4 1966171168
    %v3817 = vunpack.c.0.s8 %v3816
    %v3818 = vlaneseq
    %v3819 = vshrl.u32 %v3818, 7
    %v3820 = vsub.s32 %v3817, %v3819
    %v3821 = vrot.slane %v3793, %v3820
    %v3822 = vcombine.low %v3800, %v3807
    %v3823 = vcombine.low %v3814, %v3821
    %v3825 = vunpack.c.l.s4 1966171168
    %v3826 = vunpack.c.0.s8 %v3825
    %v3827 = vlaneseq
    %v3828 = vshrl.u32 %v3827, 7
    %v3829 = vsub.s32 %v3826, %v3828
    %v3830 = vrot.slane %v3822, %v3829
    %v3832 = vunpack.c.l.s4 1966171168
    %v3833 = vunpack.c.0.s8 %v3832
    %v3834 = vlaneseq
    %v3835 = vshrl.u32 %v3834, 7
    %v3836 = vsub.s32 %v3833, %v3835
    %v3837 = vrot.slane %v3823, %v3836
    %v3838 = vcombine.low %v3830, %v3837
    %v3839 = vcombine.low %v1658, %v1662
    %v3840 = vcombine.low %v1666, %v1670
    %v3841 = vcombine.low %v1674, %v1678
    %v3842 = vcombine.low %v1682, %v1686
    %v3844 = vunpack.c.l.s4 1966171168
    %v3845 = vunpack.c.0.s8 %v3844
    %v3846 = vlaneseq
    %v3847 = vshrl.u32 %v3846, 7
    %v3848 = vsub.s32 %v3845, %v3847
    %v3849 = vrot.slane %v3839, %v3848
    %v3851 = vunpack.c.l.s4 1966171168
    %v3852 = vunpack.c.0.s8 %v3851
    %v3853 = vlaneseq
    %v3854 = vshrl.u32 %v3853, 7
    %v3855 = vsub.s32 %v3852, %v3854
    %v3856 = vrot.slane %v3840, %v3855
    %v3858 = vunpack.c.l.s4 1966171168
    %v3859 = vunpack.c.0.s8 %v3858
    %v3860 = vlaneseq
    %v3861 = vshrl.u32 %v3860, 7
    %v3862 = vsub.s32 %v3859, %v3861
    %v3863 = vrot.slane %v3841, %v3862
    %v3865 = vunpack.c.l.s4 1966171168
    %v3866 = vunpack.c.0.s8 %v3865
    %v3867 = vlaneseq
    %v3868 = vshrl.u32 %v3867, 7
    %v3869 = vsub.s32 %v3866, %v3868
    %v3870 = vrot.slane %v3842, %v3869
    %v3871 = vcombine.low %v3849, %v3856
    %v3872 = vcombine.low %v3863, %v3870
    %v3874 = vunpack.c.l.s4 1966171168
    %v3875 = vunpack.c.0.s8 %v3874
    %v3876 = vlaneseq
    %v3877 = vshrl.u32 %v3876, 7
    %v3878 = vsub.s32 %v3875, %v3877
    %v3879 = vrot.slane %v3871, %v3878
    %v3881 = vunpack.c.l.s4 1966171168
    %v3882 = vunpack.c.0.s8 %v3881
    %v3883 = vlaneseq
    %v3884 = vshrl.u32 %v3883, 7
    %v3885 = vsub.s32 %v3882, %v3884
    %v3886 = vrot.slane %v3872, %v3885
    %v3887 = vcombine.low %v3879, %v3886
    %v3888 = vcombine.low %v1690, %v1694
    %v3889 = vcombine.low %v1698, %v1702
    %v3890 = vcombine.low %v1706, %v1710
    %v3891 = vcombine.low %v1714, %v1718
    %v3893 = vunpack.c.l.s4 1966171168
    %v3894 = vunpack.c.0.s8 %v3893
    %v3895 = vlaneseq
    %v3896 = vshrl.u32 %v3895, 7
    %v3897 = vsub.s32 %v3894, %v3896
    %v3898 = vrot.slane %v3888, %v3897
    %v3900 = vunpack.c.l.s4 1966171168
    %v3901 = vunpack.c.0.s8 %v3900
    %v3902 = vlaneseq
    %v3903 = vshrl.u32 %v3902, 7
    %v3904 = vsub.s32 %v3901, %v3903
    %v3905 = vrot.slane %v3889, %v3904
    %v3907 = vunpack.c.l.s4 1966171168
    %v3908 = vunpack.c.0.s8 %v3907
    %v3909 = vlaneseq
    %v3910 = vshrl.u32 %v3909, 7
    %v3911 = vsub.s32 %v3908, %v3910
    %v3912 = vrot.slane %v3890, %v3911
    %v3914 = vunpack.c.l.s4 1966171168
    %v3915 = vunpack.c.0.s8 %v3914
    %v3916 = vlaneseq
    %v3917 = vshrl.u32 %v3916, 7
    %v3918 = vsub.s32 %v3915, %v3917
    %v3919 = vrot.slane %v3891, %v3918
    %v3920 = vcombine.low %v3898, %v3905
    %v3921 = vcombine.low %v3912, %v3919
    %v3923 = vunpack.c.l.s4 1966171168
    %v3924 = vunpack.c.0.s8 %v3923
    %v3925 = vlaneseq
    %v3926 = vshrl.u32 %v3925, 7
    %v3927 = vsub.s32 %v3924, %v3926
    %v3928 = vrot.slane %v3920, %v3927
    %v3930 = vunpack.c.l.s4 1966171168
    %v3931 = vunpack.c.0.s8 %v3930
    %v3932 = vlaneseq
    %v3933 = vshrl.u32 %v3932, 7
    %v3934 = vsub.s32 %v3931, %v3933
    %v3935 = vrot.slane %v3921, %v3934
    %v3936 = vcombine.low %v3928, %v3935
    %v3937 = vcombine.low %v1722, %v1726
    %v3938 = vcombine.low %v1730, %v1734
    %v3939 = vcombine.low %v1738, %v1742
    %v3940 = vcombine.low %v1746, %v1750
    %v3942 = vunpack.c.l.s4 1966171168
    %v3943 = vunpack.c.0.s8 %v3942
    %v3944 = vlaneseq
    %v3945 = vshrl.u32 %v3944, 7
    %v3946 = vsub.s32 %v3943, %v3945
    %v3947 = vrot.slane %v3937, %v3946
    %v3949 = vunpack.c.l.s4 1966171168
    %v3950 = vunpack.c.0.s8 %v3949
    %v3951 = vlaneseq
    %v3952 = vshrl.u32 %v3951, 7
    %v3953 = vsub.s32 %v3950, %v3952
    %v3954 = vrot.slane %v3938, %v3953
    %v3956 = vunpack.c.l.s4 1966171168
    %v3957 = vunpack.c.0.s8 %v3956
    %v3958 = vlaneseq
    %v3959 = vshrl.u32 %v3958, 7
    %v3960 = vsub.s32 %v3957, %v3959
    %v3961 = vrot.slane %v3939, %v3960
    %v3963 = vunpack.c.l.s4 1966171168
    %v3964 = vunpack.c.0.s8 %v3963
    %v3965 = vlaneseq
    %v3966 = vshrl.u32 %v3965, 7
    %v3967 = vsub.s32 %v3964, %v3966
    %v3968 = vrot.slane %v3940, %v3967
    %v3969 = vcombine.low %v3947, %v3954
    %v3970 = vcombine.low %v3961, %v3968
    %v3972 = vunpack.c.l.s4 1966171168
    %v3973 = vunpack.c.0.s8 %v3972
    %v3974 = vlaneseq
    %v3975 = vshrl.u32 %v3974, 7
    %v3976 = vsub.s32 %v3973, %v3975
    %v3977 = vrot.slane %v3969, %v3976
    %v3979 = vunpack.c.l.s4 1966171168
    %v3980 = vunpack.c.0.s8 %v3979
    %v3981 = vlaneseq
    %v3982 = vshrl.u32 %v3981, 7
    %v3983 = vsub.s32 %v3980, %v3982
    %v3984 = vrot.slane %v3970, %v3983
    %v3985 = vcombine.low %v3977, %v3984
    %v3986 = vcombine.low %v1754, %v1758
    %v3987 = vcombine.low %v1762, %v1766
    %v3988 = vcombine.low %v1770, %v1774
    %v3989 = vcombine.low %v1778, %v1782
    %v3991 = vunpack.c.l.s4 1966171168
    %v3992 = vunpack.c.0.s8 %v3991
    %v3993 = vlaneseq
    %v3994 = vshrl.u32 %v3993, 7
    %v3995 = vsub.s32 %v3992, %v3994
    %v3996 = vrot.slane %v3986, %v3995
    %v3998 = vunpack.c.l.s4 1966171168
    %v3999 = vunpack.c.0.s8 %v3998
    %v4000 = vlaneseq
    %v4001 = vshrl.u32 %v4000, 7
    %v4002 = vsub.s32 %v3999, %v4001
    %v4003 = vrot.slane %v3987, %v4002
    %v4005 = vunpack.c.l.s4 1966171168
    %v4006 = vunpack.c.0.s8 %v4005
    %v4007 = vlaneseq
    %v4008 = vshrl.u32 %v4007, 7
    %v4009 = vsub.s32 %v4006, %v4008
    %v4010 = vrot.slane %v3988, %v4009
    %v4012 = vunpack.c.l.s4 1966171168
    %v4013 = vunpack.c.0.s8 %v4012
    %v4014 = vlaneseq
    %v4015 = vshrl.u32 %v4014, 7
    %v4016 = vsub.s32 %v4013, %v4015
    %v4017 = vrot.slane %v3989, %v4016
    %v4018 = vcombine.low %v3996, %v4003
    %v4019 = vcombine.low %v4010, %v4017
    %v4021 = vunpack.c.l.s4 1966171168
    %v4022 = vunpack.c.0.s8 %v4021
    %v4023 = vlaneseq
    %v4024 = vshrl.u32 %v4023, 7
    %v4025 = vsub.s32 %v4022, %v4024
    %v4026 = vrot.slane %v4018, %v4025
    %v4028 = vunpack.c.l.s4 1966171168
    %v4029 = vunpack.c.0.s8 %v4028
    %v4030 = vlaneseq
    %v4031 = vshrl.u32 %v4030, 7
    %v4032 = vsub.s32 %v4029, %v4031
    %v4033 = vrot.slane %v4019, %v4032
    %v4034 = vcombine.low %v4026, %v4033
    %v4035 = vcombine.low %v1786, %v1790
    %v4036 = vcombine.low %v1794, %v1798
    %v4037 = vcombine.low %v1802, %v1806
    %v4038 = vcombine.low %v1810, %v1814
    %v4040 = vunpack.c.l.s4 1966171168
    %v4041 = vunpack.c.0.s8 %v4040
    %v4042 = vlaneseq
    %v4043 = vshrl.u32 %v4042, 7
    %v4044 = vsub.s32 %v4041, %v4043
    %v4045 = vrot.slane %v4035, %v4044
    %v4047 = vunpack.c.l.s4 1966171168
    %v4048 = vunpack.c.0.s8 %v4047
    %v4049 = vlaneseq
    %v4050 = vshrl.u32 %v4049, 7
    %v4051 = vsub.s32 %v4048, %v4050
    %v4052 = vrot.slane %v4036, %v4051
    %v4054 = vunpack.c.l.s4 1966171168
    %v4055 = vunpack.c.0.s8 %v4054
    %v4056 = vlaneseq
    %v4057 = vshrl.u32 %v4056, 7
    %v4058 = vsub.s32 %v4055, %v4057
    %v4059 = vrot.slane %v4037, %v4058
    %v4061 = vunpack.c.l.s4 1966171168
    %v4062 = vunpack.c.0.s8 %v4061
    %v4063 = vlaneseq
    %v4064 = vshrl.u32 %v4063, 7
    %v4065 = vsub.s32 %v4062, %v4064
    %v4066 = vrot.slane %v4038, %v4065
    %v4067 = vcombine.low %v4045, %v4052
    %v4068 = vcombine.low %v4059, %v4066
    %v4070 = vunpack.c.l.s4 1966171168
    %v4071 = vunpack.c.0.s8 %v4070
    %v4072 = vlaneseq
    %v4073 = vshrl.u32 %v4072, 7
    %v4074 = vsub.s32 %v4071, %v4073
    %v4075 = vrot.slane %v4067, %v4074
    %v4077 = vunpack.c.l.s4 1966171168
    %v4078 = vunpack.c.0.s8 %v4077
    %v4079 = vlaneseq
    %v4080 = vshrl.u32 %v4079, 7
    %v4081 = vsub.s32 %v4078, %v4080
    %v4082 = vrot.slane %v4068, %v4081
    %v4083 = vcombine.low %v4075, %v4082
    %v4084 = vcombine.low %v1818, %v1822
    %v4085 = vcombine.low %v1826, %v1830
    %v4086 = vcombine.low %v1834, %v1838
    %v4087 = vcombine.low %v1842, %v1846
    %v4089 = vunpack.c.l.s4 1966171168
    %v4090 = vunpack.c.0.s8 %v4089
    %v4091 = vlaneseq
    %v4092 = vshrl.u32 %v4091, 7
    %v4093 = vsub.s32 %v4090, %v4092
    %v4094 = vrot.slane %v4084, %v4093
    %v4096 = vunpack.c.l.s4 1966171168
    %v4097 = vunpack.c.0.s8 %v4096
    %v4098 = vlaneseq
    %v4099 = vshrl.u32 %v4098, 7
    %v4100 = vsub.s32 %v4097, %v4099
    %v4101 = vrot.slane %v4085, %v4100
    %v4103 = vunpack.c.l.s4 1966171168
    %v4104 = vunpack.c.0.s8 %v4103
    %v4105 = vlaneseq
    %v4106 = vshrl.u32 %v4105, 7
    %v4107 = vsub.s32 %v4104, %v4106
    %v4108 = vrot.slane %v4086, %v4107
    %v4110 = vunpack.c.l.s4 1966171168
    %v4111 = vunpack.c.0.s8 %v4110
    %v4112 = vlaneseq
    %v4113 = vshrl.u32 %v4112, 7
    %v4114 = vsub.s32 %v4111, %v4113
    %v4115 = vrot.slane %v4087, %v4114
    %v4116 = vcombine.low %v4094, %v4101
    %v4117 = vcombine.low %v4108, %v4115
    %v4119 = vunpack.c.l.s4 1966171168
    %v4120 = vunpack.c.0.s8 %v4119
    %v4121 = vlaneseq
    %v4122 = vshrl.u32 %v4121, 7
    %v4123 = vsub.s32 %v4120, %v4122
    %v4124 = vrot.slane %v4116, %v4123
    %v4126 = vunpack.c.l.s4 1966171168
    %v4127 = vunpack.c.0.s8 %v4126
    %v4128 = vlaneseq
    %v4129 = vshrl.u32 %v4128, 7
    %v4130 = vsub.s32 %v4127, %v4129
    %v4131 = vrot.slane %v4117, %v4130
    %v4132 = vcombine.low %v4124, %v4131
    %v4133 = vcombine.low %v1850, %v1854
    %v4134 = vcombine.low %v1858, %v1862
    %v4135 = vcombine.low %v1866, %v1870
    %v4136 = vcombine.low %v1874, %v1878
    %v4138 = vunpack.c.l.s4 1966171168
    %v4139 = vunpack.c.0.s8 %v4138
    %v4140 = vlaneseq
    %v4141 = vshrl.u32 %v4140, 7
    %v4142 = vsub.s32 %v4139, %v4141
    %v4143 = vrot.slane %v4133, %v4142
    %v4145 = vunpack.c.l.s4 1966171168
    %v4146 = vunpack.c.0.s8 %v4145
    %v4147 = vlaneseq
    %v4148 = vshrl.u32 %v4147, 7
    %v4149 = vsub.s32 %v4146, %v4148
    %v4150 = vrot.slane %v4134, %v4149
    %v4152 = vunpack.c.l.s4 1966171168
    %v4153 = vunpack.c.0.s8 %v4152
    %v4154 = vlaneseq
    %v4155 = vshrl.u32 %v4154, 7
    %v4156 = vsub.s32 %v4153, %v4155
    %v4157 = vrot.slane %v4135, %v4156
    %v4159 = vunpack.c.l.s4 1966171168
    %v4160 = vunpack.c.0.s8 %v4159
    %v4161 = vlaneseq
    %v4162 = vshrl.u32 %v4161, 7
    %v4163 = vsub.s32 %v4160, %v4162
    %v4164 = vrot.slane %v4136, %v4163
    %v4165 = vcombine.low %v4143, %v4150
    %v4166 = vcombine.low %v4157, %v4164
    %v4168 = vunpack.c.l.s4 1966171168
    %v4169 = vunpack.c.0.s8 %v4168
    %v4170 = vlaneseq
    %v4171 = vshrl.u32 %v4170, 7
    %v4172 = vsub.s32 %v4169, %v4171
    %v4173 = vrot.slane %v4165, %v4172
    %v4175 = vunpack.c.l.s4 1966171168
    %v4176 = vunpack.c.0.s8 %v4175
    %v4177 = vlaneseq
    %v4178 = vshrl.u32 %v4177, 7
    %v4179 = vsub.s32 %v4176, %v4178
    %v4180 = vrot.slane %v4166, %v4179
    %v4181 = vcombine.low %v4173, %v4180
    %v4182 = vcombine.low %v1882, %v1886
    %v4183 = vcombine.low %v1890, %v1894
    %v4184 = vcombine.low %v1898, %v1902
    %v4185 = vcombine.low %v1906, %v1910
    %v4187 = vunpack.c.l.s4 1966171168
    %v4188 = vunpack.c.0.s8 %v4187
    %v4189 = vlaneseq
    %v4190 = vshrl.u32 %v4189, 7
    %v4191 = vsub.s32 %v4188, %v4190
    %v4192 = vrot.slane %v4182, %v4191
    %v4194 = vunpack.c.l.s4 1966171168
    %v4195 = vunpack.c.0.s8 %v4194
    %v4196 = vlaneseq
    %v4197 = vshrl.u32 %v4196, 7
    %v4198 = vsub.s32 %v4195, %v4197
    %v4199 = vrot.slane %v4183, %v4198
    %v4201 = vunpack.c.l.s4 1966171168
    %v4202 = vunpack.c.0.s8 %v4201
    %v4203 = vlaneseq
    %v4204 = vshrl.u32 %v4203, 7
    %v4205 = vsub.s32 %v4202, %v4204
    %v4206 = vrot.slane %v4184, %v4205
    %v4208 = vunpack.c.l.s4 1966171168
    %v4209 = vunpack.c.0.s8 %v4208
    %v4210 = vlaneseq
    %v4211 = vshrl.u32 %v4210, 7
    %v4212 = vsub.s32 %v4209, %v4211
    %v4213 = vrot.slane %v4185, %v4212
    %v4214 = vcombine.low %v4192, %v4199
    %v4215 = vcombine.low %v4206, %v4213
    %v4217 = vunpack.c.l.s4 1966171168
    %v4218 = vunpack.c.0.s8 %v4217
    %v4219 = vlaneseq
    %v4220 = vshrl.u32 %v4219, 7
    %v4221 = vsub.s32 %v4218, %v4220
    %v4222 = vrot.slane %v4214, %v4221
    %v4224 = vunpack.c.l.s4 1966171168
    %v4225 = vunpack.c.0.s8 %v4224
    %v4226 = vlaneseq
    %v4227 = vshrl.u32 %v4226, 7
    %v4228 = vsub.s32 %v4225, %v4227
    %v4229 = vrot.slane %v4215, %v4228
    %v4230 = vcombine.low %v4222, %v4229
    %v4231 = vcombine.low %v1914, %v1918
    %v4232 = vcombine.low %v1922, %v1926
    %v4233 = vcombine.low %v1930, %v1934
    %v4234 = vcombine.low %v1938, %v1942
    %v4236 = vunpack.c.l.s4 1966171168
    %v4237 = vunpack.c.0.s8 %v4236
    %v4238 = vlaneseq
    %v4239 = vshrl.u32 %v4238, 7
    %v4240 = vsub.s32 %v4237, %v4239
    %v4241 = vrot.slane %v4231, %v4240
    %v4243 = vunpack.c.l.s4 1966171168
    %v4244 = vunpack.c.0.s8 %v4243
    %v4245 = vlaneseq
    %v4246 = vshrl.u32 %v4245, 7
    %v4247 = vsub.s32 %v4244, %v4246
    %v4248 = vrot.slane %v4232, %v4247
    %v4250 = vunpack.c.l.s4 1966171168
    %v4251 = vunpack.c.0.s8 %v4250
    %v4252 = vlaneseq
    %v4253 = vshrl.u32 %v4252, 7
    %v4254 = vsub.s32 %v4251, %v4253
    %v4255 = vrot.slane %v4233, %v4254
    %v4257 = vunpack.c.l.s4 1966171168
    %v4258 = vunpack.c.0.s8 %v4257
    %v4259 = vlaneseq
    %v4260 = vshrl.u32 %v4259, 7
    %v4261 = vsub.s32 %v4258, %v4260
    %v4262 = vrot.slane %v4234, %v4261
    %v4263 = vcombine.low %v4241, %v4248
    %v4264 = vcombine.low %v4255, %v4262
    %v4266 = vunpack.c.l.s4 1966171168
    %v4267 = vunpack.c.0.s8 %v4266
    %v4268 = vlaneseq
    %v4269 = vshrl.u32 %v4268, 7
    %v4270 = vsub.s32 %v4267, %v4269
    %v4271 = vrot.slane %v4263, %v4270
    %v4273 = vunpack.c.l.s4 1966171168
    %v4274 = vunpack.c.0.s8 %v4273
    %v4275 = vlaneseq
    %v4276 = vshrl.u32 %v4275, 7
    %v4277 = vsub.s32 %v4274, %v4276
    %v4278 = vrot.slane %v4264, %v4277
    %v4279 = vcombine.low %v4271, %v4278
    %v4280 = vcombine.low %v1946, %v1950
    %v4281 = vcombine.low %v1954, %v1958
    %v4282 = vcombine.low %v1962, %v1966
    %v4283 = vcombine.low %v1970, %v1974
    %v4285 = vunpack.c.l.s4 1966171168
    %v4286 = vunpack.c.0.s8 %v4285
    %v4287 = vlaneseq
    %v4288 = vshrl.u32 %v4287, 7
    %v4289 = vsub.s32 %v4286, %v4288
    %v4290 = vrot.slane %v4280, %v4289
    %v4292 = vunpack.c.l.s4 1966171168
    %v4293 = vunpack.c.0.s8 %v4292
    %v4294 = vlaneseq
    %v4295 = vshrl.u32 %v4294, 7
    %v4296 = vsub.s32 %v4293, %v4295
    %v4297 = vrot.slane %v4281, %v4296
    %v4299 = vunpack.c.l.s4 1966171168
    %v4300 = vunpack.c.0.s8 %v4299
    %v4301 = vlaneseq
    %v4302 = vshrl.u32 %v4301, 7
    %v4303 = vsub.s32 %v4300, %v4302
    %v4304 = vrot.slane %v4282, %v4303
    %v4306 = vunpack.c.l.s4 1966171168
    %v4307 = vunpack.c.0.s8 %v4306
    %v4308 = vlaneseq
    %v4309 = vshrl.u32 %v4308, 7
    %v4310 = vsub.s32 %v4307, %v4309
    %v4311 = vrot.slane %v4283, %v4310
    %v4312 = vcombine.low %v4290, %v4297
    %v4313 = vcombine.low %v4304, %v4311
    %v4315 = vunpack.c.l.s4 1966171168
    %v4316 = vunpack.c.0.s8 %v4315
    %v4317 = vlaneseq
    %v4318 = vshrl.u32 %v4317, 7
    %v4319 = vsub.s32 %v4316, %v4318
    %v4320 = vrot.slane %v4312, %v4319
    %v4322 = vunpack.c.l.s4 1966171168
    %v4323 = vunpack.c.0.s8 %v4322
    %v4324 = vlaneseq
    %v4325 = vshrl.u32 %v4324, 7
    %v4326 = vsub.s32 %v4323, %v4325
    %v4327 = vrot.slane %v4313, %v4326
    %v4328 = vcombine.low %v4320, %v4327
    %v4329 = vcombine.low %v1978, %v1982
    %v4330 = vcombine.low %v1986, %v1990
    %v4331 = vcombine.low %v1994, %v1998
    %v4332 = vcombine.low %v2002, %v2006
    %v4334 = vunpack.c.l.s4 1966171168
    %v4335 = vunpack.c.0.s8 %v4334
    %v4336 = vlaneseq
    %v4337 = vshrl.u32 %v4336, 7
    %v4338 = vsub.s32 %v4335, %v4337
    %v4339 = vrot.slane %v4329, %v4338
    %v4341 = vunpack.c.l.s4 1966171168
    %v4342 = vunpack.c.0.s8 %v4341
    %v4343 = vlaneseq
    %v4344 = vshrl.u32 %v4343, 7
    %v4345 = vsub.s32 %v4342, %v4344
    %v4346 = vrot.slane %v4330, %v4345
    %v4348 = vunpack.c.l.s4 1966171168
    %v4349 = vunpack.c.0.s8 %v4348
    %v4350 = vlaneseq
    %v4351 = vshrl.u32 %v4350, 7
    %v4352 = vsub.s32 %v4349, %v4351
    %v4353 = vrot.slane %v4331, %v4352
    %v4355 = vunpack.c.l.s4 1966171168
    %v4356 = vunpack.c.0.s8 %v4355
    %v4357 = vlaneseq
    %v4358 = vshrl.u32 %v4357, 7
    %v4359 = vsub.s32 %v4356, %v4358
    %v4360 = vrot.slane %v4332, %v4359
    %v4361 = vcombine.low %v4339, %v4346
    %v4362 = vcombine.low %v4353, %v4360
    %v4364 = vunpack.c.l.s4 1966171168
    %v4365 = vunpack.c.0.s8 %v4364
    %v4366 = vlaneseq
    %v4367 = vshrl.u32 %v4366, 7
    %v4368 = vsub.s32 %v4365, %v4367
    %v4369 = vrot.slane %v4361, %v4368
    %v4371 = vunpack.c.l.s4 1966171168
    %v4372 = vunpack.c.0.s8 %v4371
    %v4373 = vlaneseq
    %v4374 = vshrl.u32 %v4373, 7
    %v4375 = vsub.s32 %v4372, %v4374
    %v4376 = vrot.slane %v4362, %v4375
    %v4377 = vcombine.low %v4369, %v4376
    %v4378 = vcombine.low %v2010, %v2014
    %v4379 = vcombine.low %v2018, %v2022
    %v4380 = vcombine.low %v2026, %v2030
    %v4381 = vcombine.low %v2034, %v2038
    %v4383 = vunpack.c.l.s4 1966171168
    %v4384 = vunpack.c.0.s8 %v4383
    %v4385 = vlaneseq
    %v4386 = vshrl.u32 %v4385, 7
    %v4387 = vsub.s32 %v4384, %v4386
    %v4388 = vrot.slane %v4378, %v4387
    %v4390 = vunpack.c.l.s4 1966171168
    %v4391 = vunpack.c.0.s8 %v4390
    %v4392 = vlaneseq
    %v4393 = vshrl.u32 %v4392, 7
    %v4394 = vsub.s32 %v4391, %v4393
    %v4395 = vrot.slane %v4379, %v4394
    %v4397 = vunpack.c.l.s4 1966171168
    %v4398 = vunpack.c.0.s8 %v4397
    %v4399 = vlaneseq
    %v4400 = vshrl.u32 %v4399, 7
    %v4401 = vsub.s32 %v4398, %v4400
    %v4402 = vrot.slane %v4380, %v4401
    %v4404 = vunpack.c.l.s4 1966171168
    %v4405 = vunpack.c.0.s8 %v4404
    %v4406 = vlaneseq
    %v4407 = vshrl.u32 %v4406, 7
    %v4408 = vsub.s32 %v4405, %v4407
    %v4409 = vrot.slane %v4381, %v4408
    %v4410 = vcombine.low %v4388, %v4395
    %v4411 = vcombine.low %v4402, %v4409
    %v4413 = vunpack.c.l.s4 1966171168
    %v4414 = vunpack.c.0.s8 %v4413
    %v4415 = vlaneseq
    %v4416 = vshrl.u32 %v4415, 7
    %v4417 = vsub.s32 %v4414, %v4416
    %v4418 = vrot.slane %v4410, %v4417
    %v4420 = vunpack.c.l.s4 1966171168
    %v4421 = vunpack.c.0.s8 %v4420
    %v4422 = vlaneseq
    %v4423 = vshrl.u32 %v4422, 7
    %v4424 = vsub.s32 %v4421, %v4423
    %v4425 = vrot.slane %v4411, %v4424
    %v4426 = vcombine.low %v4418, %v4425
    %v4427 = vcombine.low %v2042, %v2046
    %v4428 = vcombine.low %v2050, %v2054
    %v4429 = vcombine.low %v2058, %v2062
    %v4430 = vcombine.low %v2066, %v2070
    %v4432 = vunpack.c.l.s4 1966171168
    %v4433 = vunpack.c.0.s8 %v4432
    %v4434 = vlaneseq
    %v4435 = vshrl.u32 %v4434, 7
    %v4436 = vsub.s32 %v4433, %v4435
    %v4437 = vrot.slane %v4427, %v4436
    %v4439 = vunpack.c.l.s4 1966171168
    %v4440 = vunpack.c.0.s8 %v4439
    %v4441 = vlaneseq
    %v4442 = vshrl.u32 %v4441, 7
    %v4443 = vsub.s32 %v4440, %v4442
    %v4444 = vrot.slane %v4428, %v4443
    %v4446 = vunpack.c.l.s4 1966171168
    %v4447 = vunpack.c.0.s8 %v4446
    %v4448 = vlaneseq
    %v4449 = vshrl.u32 %v4448, 7
    %v4450 = vsub.s32 %v4447, %v4449
    %v4451 = vrot.slane %v4429, %v4450
    %v4453 = vunpack.c.l.s4 1966171168
    %v4454 = vunpack.c.0.s8 %v4453
    %v4455 = vlaneseq
    %v4456 = vshrl.u32 %v4455, 7
    %v4457 = vsub.s32 %v4454, %v4456
    %v4458 = vrot.slane %v4430, %v4457
    %v4459 = vcombine.low %v4437, %v4444
    %v4460 = vcombine.low %v4451, %v4458
    %v4462 = vunpack.c.l.s4 1966171168
    %v4463 = vunpack.c.0.s8 %v4462
    %v4464 = vlaneseq
    %v4465 = vshrl.u32 %v4464, 7
    %v4466 = vsub.s32 %v4463, %v4465
    %v4467 = vrot.slane %v4459, %v4466
    %v4469 = vunpack.c.l.s4 1966171168
    %v4470 = vunpack.c.0.s8 %v4469
    %v4471 = vlaneseq
    %v4472 = vshrl.u32 %v4471, 7
    %v4473 = vsub.s32 %v4470, %v4472
    %v4474 = vrot.slane %v4460, %v4473
    %v4475 = vcombine.low %v4467, %v4474
    %v4476 = vcombine.low %v2074, %v2078
    %v4477 = vcombine.low %v2082, %v2086
    %v4478 = vcombine.low %v2090, %v2094
    %v4479 = vcombine.low %v2098, %v2102
    %v4481 = vunpack.c.l.s4 1966171168
    %v4482 = vunpack.c.0.s8 %v4481
    %v4483 = vlaneseq
    %v4484 = vshrl.u32 %v4483, 7
    %v4485 = vsub.s32 %v4482, %v4484
    %v4486 = vrot.slane %v4476, %v4485
    %v4488 = vunpack.c.l.s4 1966171168
    %v4489 = vunpack.c.0.s8 %v4488
    %v4490 = vlaneseq
    %v4491 = vshrl.u32 %v4490, 7
    %v4492 = vsub.s32 %v4489, %v4491
    %v4493 = vrot.slane %v4477, %v4492
    %v4495 = vunpack.c.l.s4 1966171168
    %v4496 = vunpack.c.0.s8 %v4495
    %v4497 = vlaneseq
    %v4498 = vshrl.u32 %v4497, 7
    %v4499 = vsub.s32 %v4496, %v4498
    %v4500 = vrot.slane %v4478, %v4499
    %v4502 = vunpack.c.l.s4 1966171168
    %v4503 = vunpack.c.0.s8 %v4502
    %v4504 = vlaneseq
    %v4505 = vshrl.u32 %v4504, 7
    %v4506 = vsub.s32 %v4503, %v4505
    %v4507 = vrot.slane %v4479, %v4506
    %v4508 = vcombine.low %v4486, %v4493
    %v4509 = vcombine.low %v4500, %v4507
    %v4511 = vunpack.c.l.s4 1966171168
    %v4512 = vunpack.c.0.s8 %v4511
    %v4513 = vlaneseq
    %v4514 = vshrl.u32 %v4513, 7
    %v4515 = vsub.s32 %v4512, %v4514
    %v4516 = vrot.slane %v4508, %v4515
    %v4518 = vunpack.c.l.s4 1966171168
    %v4519 = vunpack.c.0.s8 %v4518
    %v4520 = vlaneseq
    %v4521 = vshrl.u32 %v4520, 7
    %v4522 = vsub.s32 %v4519, %v4521
    %v4523 = vrot.slane %v4509, %v4522
    %v4524 = vcombine.low %v4516, %v4523
    %v4525 = vcombine.low %v2106, %v2110
    %v4526 = vcombine.low %v2114, %v2118
    %v4527 = vcombine.low %v2122, %v2126
    %v4528 = vcombine.low %v2130, %v2134
    %v4530 = vunpack.c.l.s4 1966171168
    %v4531 = vunpack.c.0.s8 %v4530
    %v4532 = vlaneseq
    %v4533 = vshrl.u32 %v4532, 7
    %v4534 = vsub.s32 %v4531, %v4533
    %v4535 = vrot.slane %v4525, %v4534
    %v4537 = vunpack.c.l.s4 1966171168
    %v4538 = vunpack.c.0.s8 %v4537
    %v4539 = vlaneseq
    %v4540 = vshrl.u32 %v4539, 7
    %v4541 = vsub.s32 %v4538, %v4540
    %v4542 = vrot.slane %v4526, %v4541
    %v4544 = vunpack.c.l.s4 1966171168
    %v4545 = vunpack.c.0.s8 %v4544
    %v4546 = vlaneseq
    %v4547 = vshrl.u32 %v4546, 7
    %v4548 = vsub.s32 %v4545, %v4547
    %v4549 = vrot.slane %v4527, %v4548
    %v4551 = vunpack.c.l.s4 1966171168
    %v4552 = vunpack.c.0.s8 %v4551
    %v4553 = vlaneseq
    %v4554 = vshrl.u32 %v4553, 7
    %v4555 = vsub.s32 %v4552, %v4554
    %v4556 = vrot.slane %v4528, %v4555
    %v4557 = vcombine.low %v4535, %v4542
    %v4558 = vcombine.low %v4549, %v4556
    %v4560 = vunpack.c.l.s4 1966171168
    %v4561 = vunpack.c.0.s8 %v4560
    %v4562 = vlaneseq
    %v4563 = vshrl.u32 %v4562, 7
    %v4564 = vsub.s32 %v4561, %v4563
    %v4565 = vrot.slane %v4557, %v4564
    %v4567 = vunpack.c.l.s4 1966171168
    %v4568 = vunpack.c.0.s8 %v4567
    %v4569 = vlaneseq
    %v4570 = vshrl.u32 %v4569, 7
    %v4571 = vsub.s32 %v4568, %v4570
    %v4572 = vrot.slane %v4558, %v4571
    %v4573 = vcombine.low %v4565, %v4572
    %v4574 = vcombine.low %v2138, %v2142
    %v4575 = vcombine.low %v2146, %v2150
    %v4576 = vcombine.low %v2154, %v2158
    %v4577 = vcombine.low %v2162, %v2166
    %v4579 = vunpack.c.l.s4 1966171168
    %v4580 = vunpack.c.0.s8 %v4579
    %v4581 = vlaneseq
    %v4582 = vshrl.u32 %v4581, 7
    %v4583 = vsub.s32 %v4580, %v4582
    %v4584 = vrot.slane %v4574, %v4583
    %v4586 = vunpack.c.l.s4 1966171168
    %v4587 = vunpack.c.0.s8 %v4586
    %v4588 = vlaneseq
    %v4589 = vshrl.u32 %v4588, 7
    %v4590 = vsub.s32 %v4587, %v4589
    %v4591 = vrot.slane %v4575, %v4590
    %v4593 = vunpack.c.l.s4 1966171168
    %v4594 = vunpack.c.0.s8 %v4593
    %v4595 = vlaneseq
    %v4596 = vshrl.u32 %v4595, 7
    %v4597 = vsub.s32 %v4594, %v4596
    %v4598 = vrot.slane %v4576, %v4597
    %v4600 = vunpack.c.l.s4 1966171168
    %v4601 = vunpack.c.0.s8 %v4600
    %v4602 = vlaneseq
    %v4603 = vshrl.u32 %v4602, 7
    %v4604 = vsub.s32 %v4601, %v4603
    %v4605 = vrot.slane %v4577, %v4604
    %v4606 = vcombine.low %v4584, %v4591
    %v4607 = vcombine.low %v4598, %v4605
    %v4609 = vunpack.c.l.s4 1966171168
    %v4610 = vunpack.c.0.s8 %v4609
    %v4611 = vlaneseq
    %v4612 = vshrl.u32 %v4611, 7
    %v4613 = vsub.s32 %v4610, %v4612
    %v4614 = vrot.slane %v4606, %v4613
    %v4616 = vunpack.c.l.s4 1966171168
    %v4617 = vunpack.c.0.s8 %v4616
    %v4618 = vlaneseq
    %v4619 = vshrl.u32 %v4618, 7
    %v4620 = vsub.s32 %v4617, %v4619
    %v4621 = vrot.slane %v4607, %v4620
    %v4622 = vcombine.low %v4614, %v4621
    %v4623 = vcombine.low %v2170, %v2174
    %v4624 = vcombine.low %v2178, %v2182
    %v4625 = vcombine.low %v2186, %v2190
    %v4626 = vcombine.low %v2194, %v2198
    %v4628 = vunpack.c.l.s4 1966171168
    %v4629 = vunpack.c.0.s8 %v4628
    %v4630 = vlaneseq
    %v4631 = vshrl.u32 %v4630, 7
    %v4632 = vsub.s32 %v4629, %v4631
    %v4633 = vrot.slane %v4623, %v4632
    %v4635 = vunpack.c.l.s4 1966171168
    %v4636 = vunpack.c.0.s8 %v4635
    %v4637 = vlaneseq
    %v4638 = vshrl.u32 %v4637, 7
    %v4639 = vsub.s32 %v4636, %v4638
    %v4640 = vrot.slane %v4624, %v4639
    %v4642 = vunpack.c.l.s4 1966171168
    %v4643 = vunpack.c.0.s8 %v4642
    %v4644 = vlaneseq
    %v4645 = vshrl.u32 %v4644, 7
    %v4646 = vsub.s32 %v4643, %v4645
    %v4647 = vrot.slane %v4625, %v4646
    %v4649 = vunpack.c.l.s4 1966171168
    %v4650 = vunpack.c.0.s8 %v4649
    %v4651 = vlaneseq
    %v4652 = vshrl.u32 %v4651, 7
    %v4653 = vsub.s32 %v4650, %v4652
    %v4654 = vrot.slane %v4626, %v4653
    %v4655 = vcombine.low %v4633, %v4640
    %v4656 = vcombine.low %v4647, %v4654
    %v4658 = vunpack.c.l.s4 1966171168
    %v4659 = vunpack.c.0.s8 %v4658
    %v4660 = vlaneseq
    %v4661 = vshrl.u32 %v4660, 7
    %v4662 = vsub.s32 %v4659, %v4661
    %v4663 = vrot.slane %v4655, %v4662
    %v4665 = vunpack.c.l.s4 1966171168
    %v4666 = vunpack.c.0.s8 %v4665
    %v4667 = vlaneseq
    %v4668 = vshrl.u32 %v4667, 7
    %v4669 = vsub.s32 %v4666, %v4668
    %v4670 = vrot.slane %v4656, %v4669
    %v4671 = vcombine.low %v4663, %v4670
    %v4672 = vcombine.low %v2202, %v2206
    %v4673 = vcombine.low %v2210, %v2214
    %v4674 = vcombine.low %v2218, %v2222
    %v4675 = vcombine.low %v2226, %v2230
    %v4677 = vunpack.c.l.s4 1966171168
    %v4678 = vunpack.c.0.s8 %v4677
    %v4679 = vlaneseq
    %v4680 = vshrl.u32 %v4679, 7
    %v4681 = vsub.s32 %v4678, %v4680
    %v4682 = vrot.slane %v4672, %v4681
    %v4684 = vunpack.c.l.s4 1966171168
    %v4685 = vunpack.c.0.s8 %v4684
    %v4686 = vlaneseq
    %v4687 = vshrl.u32 %v4686, 7
    %v4688 = vsub.s32 %v4685, %v4687
    %v4689 = vrot.slane %v4673, %v4688
    %v4691 = vunpack.c.l.s4 1966171168
    %v4692 = vunpack.c.0.s8 %v4691
    %v4693 = vlaneseq
    %v4694 = vshrl.u32 %v4693, 7
    %v4695 = vsub.s32 %v4692, %v4694
    %v4696 = vrot.slane %v4674, %v4695
    %v4698 = vunpack.c.l.s4 1966171168
    %v4699 = vunpack.c.0.s8 %v4698
    %v4700 = vlaneseq
    %v4701 = vshrl.u32 %v4700, 7
    %v4702 = vsub.s32 %v4699, %v4701
    %v4703 = vrot.slane %v4675, %v4702
    %v4704 = vcombine.low %v4682, %v4689
    %v4705 = vcombine.low %v4696, %v4703
    %v4707 = vunpack.c.l.s4 1966171168
    %v4708 = vunpack.c.0.s8 %v4707
    %v4709 = vlaneseq
    %v4710 = vshrl.u32 %v4709, 7
    %v4711 = vsub.s32 %v4708, %v4710
    %v4712 = vrot.slane %v4704, %v4711
    %v4714 = vunpack.c.l.s4 1966171168
    %v4715 = vunpack.c.0.s8 %v4714
    %v4716 = vlaneseq
    %v4717 = vshrl.u32 %v4716, 7
    %v4718 = vsub.s32 %v4715, %v4717
    %v4719 = vrot.slane %v4705, %v4718
    %v4720 = vcombine.low %v4712, %v4719
    %v4721 = vcombine.low %v2234, %v2238
    %v4722 = vcombine.low %v2242, %v2246
    %v4723 = vcombine.low %v2250, %v2254
    %v4724 = vcombine.low %v2258, %v2262
    %v4726 = vunpack.c.l.s4 1966171168
    %v4727 = vunpack.c.0.s8 %v4726
    %v4728 = vlaneseq
    %v4729 = vshrl.u32 %v4728, 7
    %v4730 = vsub.s32 %v4727, %v4729
    %v4731 = vrot.slane %v4721, %v4730
    %v4733 = vunpack.c.l.s4 1966171168
    %v4734 = vunpack.c.0.s8 %v4733
    %v4735 = vlaneseq
    %v4736 = vshrl.u32 %v4735, 7
    %v4737 = vsub.s32 %v4734, %v4736
    %v4738 = vrot.slane %v4722, %v4737
    %v4740 = vunpack.c.l.s4 1966171168
    %v4741 = vunpack.c.0.s8 %v4740
    %v4742 = vlaneseq
    %v4743 = vshrl.u32 %v4742, 7
    %v4744 = vsub.s32 %v4741, %v4743
    %v4745 = vrot.slane %v4723, %v4744
    %v4747 = vunpack.c.l.s4 1966171168
    %v4748 = vunpack.c.0.s8 %v4747
    %v4749 = vlaneseq
    %v4750 = vshrl.u32 %v4749, 7
    %v4751 = vsub.s32 %v4748, %v4750
    %v4752 = vrot.slane %v4724, %v4751
    %v4753 = vcombine.low %v4731, %v4738
    %v4754 = vcombine.low %v4745, %v4752
    %v4756 = vunpack.c.l.s4 1966171168
    %v4757 = vunpack.c.0.s8 %v4756
    %v4758 = vlaneseq
    %v4759 = vshrl.u32 %v4758, 7
    %v4760 = vsub.s32 %v4757, %v4759
    %v4761 = vrot.slane %v4753, %v4760
    %v4763 = vunpack.c.l.s4 1966171168
    %v4764 = vunpack.c.0.s8 %v4763
    %v4765 = vlaneseq
    %v4766 = vshrl.u32 %v4765, 7
    %v4767 = vsub.s32 %v4764, %v4766
    %v4768 = vrot.slane %v4754, %v4767
    %v4769 = vcombine.low %v4761, %v4768
    %v4770 = vcombine.low %v2266, %v2270
    %v4771 = vcombine.low %v2274, %v2278
    %v4772 = vcombine.low %v2282, %v2286
    %v4773 = vcombine.low %v2290, %v2294
    %v4775 = vunpack.c.l.s4 1966171168
    %v4776 = vunpack.c.0.s8 %v4775
    %v4777 = vlaneseq
    %v4778 = vshrl.u32 %v4777, 7
    %v4779 = vsub.s32 %v4776, %v4778
    %v4780 = vrot.slane %v4770, %v4779
    %v4782 = vunpack.c.l.s4 1966171168
    %v4783 = vunpack.c.0.s8 %v4782
    %v4784 = vlaneseq
    %v4785 = vshrl.u32 %v4784, 7
    %v4786 = vsub.s32 %v4783, %v4785
    %v4787 = vrot.slane %v4771, %v4786
    %v4789 = vunpack.c.l.s4 1966171168
    %v4790 = vunpack.c.0.s8 %v4789
    %v4791 = vlaneseq
    %v4792 = vshrl.u32 %v4791, 7
    %v4793 = vsub.s32 %v4790, %v4792
    %v4794 = vrot.slane %v4772, %v4793
    %v4796 = vunpack.c.l.s4 1966171168
    %v4797 = vunpack.c.0.s8 %v4796
    %v4798 = vlaneseq
    %v4799 = vshrl.u32 %v4798, 7
    %v4800 = vsub.s32 %v4797, %v4799
    %v4801 = vrot.slane %v4773, %v4800
    %v4802 = vcombine.low %v4780, %v4787
    %v4803 = vcombine.low %v4794, %v4801
    %v4805 = vunpack.c.l.s4 1966171168
    %v4806 = vunpack.c.0.s8 %v4805
    %v4807 = vlaneseq
    %v4808 = vshrl.u32 %v4807, 7
    %v4809 = vsub.s32 %v4806, %v4808
    %v4810 = vrot.slane %v4802, %v4809
    %v4812 = vunpack.c.l.s4 1966171168
    %v4813 = vunpack.c.0.s8 %v4812
    %v4814 = vlaneseq
    %v4815 = vshrl.u32 %v4814, 7
    %v4816 = vsub.s32 %v4813, %v4815
    %v4817 = vrot.slane %v4803, %v4816
    %v4818 = vcombine.low %v4810, %v4817
    %v4819 = vcombine.low %v2298, %v2302
    %v4820 = vcombine.low %v2306, %v2310
    %v4821 = vcombine.low %v2314, %v2318
    %v4822 = vcombine.low %v2322, %v2326
    %v4824 = vunpack.c.l.s4 1966171168
    %v4825 = vunpack.c.0.s8 %v4824
    %v4826 = vlaneseq
    %v4827 = vshrl.u32 %v4826, 7
    %v4828 = vsub.s32 %v4825, %v4827
    %v4829 = vrot.slane %v4819, %v4828
    %v4831 = vunpack.c.l.s4 1966171168
    %v4832 = vunpack.c.0.s8 %v4831
    %v4833 = vlaneseq
    %v4834 = vshrl.u32 %v4833, 7
    %v4835 = vsub.s32 %v4832, %v4834
    %v4836 = vrot.slane %v4820, %v4835
    %v4838 = vunpack.c.l.s4 1966171168
    %v4839 = vunpack.c.0.s8 %v4838
    %v4840 = vlaneseq
    %v4841 = vshrl.u32 %v4840, 7
    %v4842 = vsub.s32 %v4839, %v4841
    %v4843 = vrot.slane %v4821, %v4842
    %v4845 = vunpack.c.l.s4 1966171168
    %v4846 = vunpack.c.0.s8 %v4845
    %v4847 = vlaneseq
    %v4848 = vshrl.u32 %v4847, 7
    %v4849 = vsub.s32 %v4846, %v4848
    %v4850 = vrot.slane %v4822, %v4849
    %v4851 = vcombine.low %v4829, %v4836
    %v4852 = vcombine.low %v4843, %v4850
    %v4854 = vunpack.c.l.s4 1966171168
    %v4855 = vunpack.c.0.s8 %v4854
    %v4856 = vlaneseq
    %v4857 = vshrl.u32 %v4856, 7
    %v4858 = vsub.s32 %v4855, %v4857
    %v4859 = vrot.slane %v4851, %v4858
    %v4861 = vunpack.c.l.s4 1966171168
    %v4862 = vunpack.c.0.s8 %v4861
    %v4863 = vlaneseq
    %v4864 = vshrl.u32 %v4863, 7
    %v4865 = vsub.s32 %v4862, %v4864
    %v4866 = vrot.slane %v4852, %v4865
    %v4867 = vcombine.low %v4859, %v4866
    %v4868 = vcombine.low %v2330, %v2334
    %v4869 = vcombine.low %v2338, %v2342
    %v4870 = vcombine.low %v2346, %v2350
    %v4871 = vcombine.low %v2354, %v2358
    %v4873 = vunpack.c.l.s4 1966171168
    %v4874 = vunpack.c.0.s8 %v4873
    %v4875 = vlaneseq
    %v4876 = vshrl.u32 %v4875, 7
    %v4877 = vsub.s32 %v4874, %v4876
    %v4878 = vrot.slane %v4868, %v4877
    %v4880 = vunpack.c.l.s4 1966171168
    %v4881 = vunpack.c.0.s8 %v4880
    %v4882 = vlaneseq
    %v4883 = vshrl.u32 %v4882, 7
    %v4884 = vsub.s32 %v4881, %v4883
    %v4885 = vrot.slane %v4869, %v4884
    %v4887 = vunpack.c.l.s4 1966171168
    %v4888 = vunpack.c.0.s8 %v4887
    %v4889 = vlaneseq
    %v4890 = vshrl.u32 %v4889, 7
    %v4891 = vsub.s32 %v4888, %v4890
    %v4892 = vrot.slane %v4870, %v4891
    %v4894 = vunpack.c.l.s4 1966171168
    %v4895 = vunpack.c.0.s8 %v4894
    %v4896 = vlaneseq
    %v4897 = vshrl.u32 %v4896, 7
    %v4898 = vsub.s32 %v4895, %v4897
    %v4899 = vrot.slane %v4871, %v4898
    %v4900 = vcombine.low %v4878, %v4885
    %v4901 = vcombine.low %v4892, %v4899
    %v4903 = vunpack.c.l.s4 1966171168
    %v4904 = vunpack.c.0.s8 %v4903
    %v4905 = vlaneseq
    %v4906 = vshrl.u32 %v4905, 7
    %v4907 = vsub.s32 %v4904, %v4906
    %v4908 = vrot.slane %v4900, %v4907
    %v4910 = vunpack.c.l.s4 1966171168
    %v4911 = vunpack.c.0.s8 %v4910
    %v4912 = vlaneseq
    %v4913 = vshrl.u32 %v4912, 7
    %v4914 = vsub.s32 %v4911, %v4913
    %v4915 = vrot.slane %v4901, %v4914
    %v4916 = vcombine.low %v4908, %v4915
    %v4917 = vcombine.low %v2362, %v2366
    %v4918 = vcombine.low %v2370, %v2374
    %v4919 = vcombine.low %v2378, %v2382
    %v4920 = vcombine.low %v2386, %v2390
    %v4922 = vunpack.c.l.s4 1966171168
    %v4923 = vunpack.c.0.s8 %v4922
    %v4924 = vlaneseq
    %v4925 = vshrl.u32 %v4924, 7
    %v4926 = vsub.s32 %v4923, %v4925
    %v4927 = vrot.slane %v4917, %v4926
    %v4929 = vunpack.c.l.s4 1966171168
    %v4930 = vunpack.c.0.s8 %v4929
    %v4931 = vlaneseq
    %v4932 = vshrl.u32 %v4931, 7
    %v4933 = vsub.s32 %v4930, %v4932
    %v4934 = vrot.slane %v4918, %v4933
    %v4936 = vunpack.c.l.s4 1966171168
    %v4937 = vunpack.c.0.s8 %v4936
    %v4938 = vlaneseq
    %v4939 = vshrl.u32 %v4938, 7
    %v4940 = vsub.s32 %v4937, %v4939
    %v4941 = vrot.slane %v4919, %v4940
    %v4943 = vunpack.c.l.s4 1966171168
    %v4944 = vunpack.c.0.s8 %v4943
    %v4945 = vlaneseq
    %v4946 = vshrl.u32 %v4945, 7
    %v4947 = vsub.s32 %v4944, %v4946
    %v4948 = vrot.slane %v4920, %v4947
    %v4949 = vcombine.low %v4927, %v4934
    %v4950 = vcombine.low %v4941, %v4948
    %v4952 = vunpack.c.l.s4 1966171168
    %v4953 = vunpack.c.0.s8 %v4952
    %v4954 = vlaneseq
    %v4955 = vshrl.u32 %v4954, 7
    %v4956 = vsub.s32 %v4953, %v4955
    %v4957 = vrot.slane %v4949, %v4956
    %v4959 = vunpack.c.l.s4 1966171168
    %v4960 = vunpack.c.0.s8 %v4959
    %v4961 = vlaneseq
    %v4962 = vshrl.u32 %v4961, 7
    %v4963 = vsub.s32 %v4960, %v4962
    %v4964 = vrot.slane %v4950, %v4963
    %v4965 = vcombine.low %v4957, %v4964
    %v4966 = vcombine.low %v2394, %v2398
    %v4967 = vcombine.low %v2402, %v2406
    %v4968 = vcombine.low %v2410, %v2414
    %v4969 = vcombine.low %v2418, %v2422
    %v4971 = vunpack.c.l.s4 1966171168
    %v4972 = vunpack.c.0.s8 %v4971
    %v4973 = vlaneseq
    %v4974 = vshrl.u32 %v4973, 7
    %v4975 = vsub.s32 %v4972, %v4974
    %v4976 = vrot.slane %v4966, %v4975
    %v4978 = vunpack.c.l.s4 1966171168
    %v4979 = vunpack.c.0.s8 %v4978
    %v4980 = vlaneseq
    %v4981 = vshrl.u32 %v4980, 7
    %v4982 = vsub.s32 %v4979, %v4981
    %v4983 = vrot.slane %v4967, %v4982
    %v4985 = vunpack.c.l.s4 1966171168
    %v4986 = vunpack.c.0.s8 %v4985
    %v4987 = vlaneseq
    %v4988 = vshrl.u32 %v4987, 7
    %v4989 = vsub.s32 %v4986, %v4988
    %v4990 = vrot.slane %v4968, %v4989
    %v4992 = vunpack.c.l.s4 1966171168
    %v4993 = vunpack.c.0.s8 %v4992
    %v4994 = vlaneseq
    %v4995 = vshrl.u32 %v4994, 7
    %v4996 = vsub.s32 %v4993, %v4995
    %v4997 = vrot.slane %v4969, %v4996
    %v4998 = vcombine.low %v4976, %v4983
    %v4999 = vcombine.low %v4990, %v4997
    %v5001 = vunpack.c.l.s4 1966171168
    %v5002 = vunpack.c.0.s8 %v5001
    %v5003 = vlaneseq
    %v5004 = vshrl.u32 %v5003, 7
    %v5005 = vsub.s32 %v5002, %v5004
    %v5006 = vrot.slane %v4998, %v5005
    %v5008 = vunpack.c.l.s4 1966171168
    %v5009 = vunpack.c.0.s8 %v5008
    %v5010 = vlaneseq
    %v5011 = vshrl.u32 %v5010, 7
    %v5012 = vsub.s32 %v5009, %v5011
    %v5013 = vrot.slane %v4999, %v5012
    %v5014 = vcombine.low %v5006, %v5013
    %v5015 = vcombine.low %v2426, %v2430
    %v5016 = vcombine.low %v2434, %v2438
    %v5017 = vcombine.low %v2442, %v2446
    %v5018 = vcombine.low %v2450, %v2454
    %v5020 = vunpack.c.l.s4 1966171168
    %v5021 = vunpack.c.0.s8 %v5020
    %v5022 = vlaneseq
    %v5023 = vshrl.u32 %v5022, 7
    %v5024 = vsub.s32 %v5021, %v5023
    %v5025 = vrot.slane %v5015, %v5024
    %v5027 = vunpack.c.l.s4 1966171168
    %v5028 = vunpack.c.0.s8 %v5027
    %v5029 = vlaneseq
    %v5030 = vshrl.u32 %v5029, 7
    %v5031 = vsub.s32 %v5028, %v5030
    %v5032 = vrot.slane %v5016, %v5031
    %v5034 = vunpack.c.l.s4 1966171168
    %v5035 = vunpack.c.0.s8 %v5034
    %v5036 = vlaneseq
    %v5037 = vshrl.u32 %v5036, 7
    %v5038 = vsub.s32 %v5035, %v5037
    %v5039 = vrot.slane %v5017, %v5038
    %v5041 = vunpack.c.l.s4 1966171168
    %v5042 = vunpack.c.0.s8 %v5041
    %v5043 = vlaneseq
    %v5044 = vshrl.u32 %v5043, 7
    %v5045 = vsub.s32 %v5042, %v5044
    %v5046 = vrot.slane %v5018, %v5045
    %v5047 = vcombine.low %v5025, %v5032
    %v5048 = vcombine.low %v5039, %v5046
    %v5050 = vunpack.c.l.s4 1966171168
    %v5051 = vunpack.c.0.s8 %v5050
    %v5052 = vlaneseq
    %v5053 = vshrl.u32 %v5052, 7
    %v5054 = vsub.s32 %v5051, %v5053
    %v5055 = vrot.slane %v5047, %v5054
    %v5057 = vunpack.c.l.s4 1966171168
    %v5058 = vunpack.c.0.s8 %v5057
    %v5059 = vlaneseq
    %v5060 = vshrl.u32 %v5059, 7
    %v5061 = vsub.s32 %v5058, %v5060
    %v5062 = vrot.slane %v5048, %v5061
    %v5063 = vcombine.low %v5055, %v5062
    %v5064 = vcombine.low %v2458, %v2462
    %v5065 = vcombine.low %v2466, %v2470
    %v5066 = vcombine.low %v2474, %v2478
    %v5067 = vcombine.low %v2482, %v2486
    %v5069 = vunpack.c.l.s4 1966171168
    %v5070 = vunpack.c.0.s8 %v5069
    %v5071 = vlaneseq
    %v5072 = vshrl.u32 %v5071, 7
    %v5073 = vsub.s32 %v5070, %v5072
    %v5074 = vrot.slane %v5064, %v5073
    %v5076 = vunpack.c.l.s4 1966171168
    %v5077 = vunpack.c.0.s8 %v5076
    %v5078 = vlaneseq
    %v5079 = vshrl.u32 %v5078, 7
    %v5080 = vsub.s32 %v5077, %v5079
    %v5081 = vrot.slane %v5065, %v5080
    %v5083 = vunpack.c.l.s4 1966171168
    %v5084 = vunpack.c.0.s8 %v5083
    %v5085 = vlaneseq
    %v5086 = vshrl.u32 %v5085, 7
    %v5087 = vsub.s32 %v5084, %v5086
    %v5088 = vrot.slane %v5066, %v5087
    %v5090 = vunpack.c.l.s4 1966171168
    %v5091 = vunpack.c.0.s8 %v5090
    %v5092 = vlaneseq
    %v5093 = vshrl.u32 %v5092, 7
    %v5094 = vsub.s32 %v5091, %v5093
    %v5095 = vrot.slane %v5067, %v5094
    %v5096 = vcombine.low %v5074, %v5081
    %v5097 = vcombine.low %v5088, %v5095
    %v5099 = vunpack.c.l.s4 1966171168
    %v5100 = vunpack.c.0.s8 %v5099
    %v5101 = vlaneseq
    %v5102 = vshrl.u32 %v5101, 7
    %v5103 = vsub.s32 %v5100, %v5102
    %v5104 = vrot.slane %v5096, %v5103
    %v5106 = vunpack.c.l.s4 1966171168
    %v5107 = vunpack.c.0.s8 %v5106
    %v5108 = vlaneseq
    %v5109 = vshrl.u32 %v5108, 7
    %v5110 = vsub.s32 %v5107, %v5109
    %v5111 = vrot.slane %v5097, %v5110
    %v5112 = vcombine.low %v5104, %v5111
    %v5113 = vcombine.low %v2490, %v2494
    %v5114 = vcombine.low %v2498, %v2502
    %v5115 = vcombine.low %v2506, %v2510
    %v5116 = vcombine.low %v2514, %v2518
    %v5118 = vunpack.c.l.s4 1966171168
    %v5119 = vunpack.c.0.s8 %v5118
    %v5120 = vlaneseq
    %v5121 = vshrl.u32 %v5120, 7
    %v5122 = vsub.s32 %v5119, %v5121
    %v5123 = vrot.slane %v5113, %v5122
    %v5125 = vunpack.c.l.s4 1966171168
    %v5126 = vunpack.c.0.s8 %v5125
    %v5127 = vlaneseq
    %v5128 = vshrl.u32 %v5127, 7
    %v5129 = vsub.s32 %v5126, %v5128
    %v5130 = vrot.slane %v5114, %v5129
    %v5132 = vunpack.c.l.s4 1966171168
    %v5133 = vunpack.c.0.s8 %v5132
    %v5134 = vlaneseq
    %v5135 = vshrl.u32 %v5134, 7
    %v5136 = vsub.s32 %v5133, %v5135
    %v5137 = vrot.slane %v5115, %v5136
    %v5139 = vunpack.c.l.s4 1966171168
    %v5140 = vunpack.c.0.s8 %v5139
    %v5141 = vlaneseq
    %v5142 = vshrl.u32 %v5141, 7
    %v5143 = vsub.s32 %v5140, %v5142
    %v5144 = vrot.slane %v5116, %v5143
    %v5145 = vcombine.low %v5123, %v5130
    %v5146 = vcombine.low %v5137, %v5144
    %v5148 = vunpack.c.l.s4 1966171168
    %v5149 = vunpack.c.0.s8 %v5148
    %v5150 = vlaneseq
    %v5151 = vshrl.u32 %v5150, 7
    %v5152 = vsub.s32 %v5149, %v5151
    %v5153 = vrot.slane %v5145, %v5152
    %v5155 = vunpack.c.l.s4 1966171168
    %v5156 = vunpack.c.0.s8 %v5155
    %v5157 = vlaneseq
    %v5158 = vshrl.u32 %v5157, 7
    %v5159 = vsub.s32 %v5156, %v5158
    %v5160 = vrot.slane %v5146, %v5159
    %v5161 = vcombine.low %v5153, %v5160
    %v5162 = vcombine.low %v2522, %v2526
    %v5163 = vcombine.low %v2530, %v2534
    %v5164 = vcombine.low %v2538, %v2542
    %v5165 = vcombine.low %v2546, %v2550
    %v5167 = vunpack.c.l.s4 1966171168
    %v5168 = vunpack.c.0.s8 %v5167
    %v5169 = vlaneseq
    %v5170 = vshrl.u32 %v5169, 7
    %v5171 = vsub.s32 %v5168, %v5170
    %v5172 = vrot.slane %v5162, %v5171
    %v5174 = vunpack.c.l.s4 1966171168
    %v5175 = vunpack.c.0.s8 %v5174
    %v5176 = vlaneseq
    %v5177 = vshrl.u32 %v5176, 7
    %v5178 = vsub.s32 %v5175, %v5177
    %v5179 = vrot.slane %v5163, %v5178
    %v5181 = vunpack.c.l.s4 1966171168
    %v5182 = vunpack.c.0.s8 %v5181
    %v5183 = vlaneseq
    %v5184 = vshrl.u32 %v5183, 7
    %v5185 = vsub.s32 %v5182, %v5184
    %v5186 = vrot.slane %v5164, %v5185
    %v5188 = vunpack.c.l.s4 1966171168
    %v5189 = vunpack.c.0.s8 %v5188
    %v5190 = vlaneseq
    %v5191 = vshrl.u32 %v5190, 7
    %v5192 = vsub.s32 %v5189, %v5191
    %v5193 = vrot.slane %v5165, %v5192
    %v5194 = vcombine.low %v5172, %v5179
    %v5195 = vcombine.low %v5186, %v5193
    %v5197 = vunpack.c.l.s4 1966171168
    %v5198 = vunpack.c.0.s8 %v5197
    %v5199 = vlaneseq
    %v5200 = vshrl.u32 %v5199, 7
    %v5201 = vsub.s32 %v5198, %v5200
    %v5202 = vrot.slane %v5194, %v5201
    %v5204 = vunpack.c.l.s4 1966171168
    %v5205 = vunpack.c.0.s8 %v5204
    %v5206 = vlaneseq
    %v5207 = vshrl.u32 %v5206, 7
    %v5208 = vsub.s32 %v5205, %v5207
    %v5209 = vrot.slane %v5195, %v5208
    %v5210 = vcombine.low %v5202, %v5209
    %v5211 = vcombine.low %v2554, %v2558
    %v5212 = vcombine.low %v2562, %v2566
    %v5213 = vcombine.low %v2570, %v2574
    %v5214 = vcombine.low %v2578, %v2582
    %v5216 = vunpack.c.l.s4 1966171168
    %v5217 = vunpack.c.0.s8 %v5216
    %v5218 = vlaneseq
    %v5219 = vshrl.u32 %v5218, 7
    %v5220 = vsub.s32 %v5217, %v5219
    %v5221 = vrot.slane %v5211, %v5220
    %v5223 = vunpack.c.l.s4 1966171168
    %v5224 = vunpack.c.0.s8 %v5223
    %v5225 = vlaneseq
    %v5226 = vshrl.u32 %v5225, 7
    %v5227 = vsub.s32 %v5224, %v5226
    %v5228 = vrot.slane %v5212, %v5227
    %v5230 = vunpack.c.l.s4 1966171168
    %v5231 = vunpack.c.0.s8 %v5230
    %v5232 = vlaneseq
    %v5233 = vshrl.u32 %v5232, 7
    %v5234 = vsub.s32 %v5231, %v5233
    %v5235 = vrot.slane %v5213, %v5234
    %v5237 = vunpack.c.l.s4 1966171168
    %v5238 = vunpack.c.0.s8 %v5237
    %v5239 = vlaneseq
    %v5240 = vshrl.u32 %v5239, 7
    %v5241 = vsub.s32 %v5238, %v5240
    %v5242 = vrot.slane %v5214, %v5241
    %v5243 = vcombine.low %v5221, %v5228
    %v5244 = vcombine.low %v5235, %v5242
    %v5246 = vunpack.c.l.s4 1966171168
    %v5247 = vunpack.c.0.s8 %v5246
    %v5248 = vlaneseq
    %v5249 = vshrl.u32 %v5248, 7
    %v5250 = vsub.s32 %v5247, %v5249
    %v5251 = vrot.slane %v5243, %v5250
    %v5253 = vunpack.c.l.s4 1966171168
    %v5254 = vunpack.c.0.s8 %v5253
    %v5255 = vlaneseq
    %v5256 = vshrl.u32 %v5255, 7
    %v5257 = vsub.s32 %v5254, %v5256
    %v5258 = vrot.slane %v5244, %v5257
    %v5259 = vcombine.low %v5251, %v5258
    %v5260 = vcombine.low %v2586, %v2590
    %v5261 = vcombine.low %v2594, %v2598
    %v5262 = vcombine.low %v2602, %v2606
    %v5263 = vcombine.low %v2610, %v2614
    %v5265 = vunpack.c.l.s4 1966171168
    %v5266 = vunpack.c.0.s8 %v5265
    %v5267 = vlaneseq
    %v5268 = vshrl.u32 %v5267, 7
    %v5269 = vsub.s32 %v5266, %v5268
    %v5270 = vrot.slane %v5260, %v5269
    %v5272 = vunpack.c.l.s4 1966171168
    %v5273 = vunpack.c.0.s8 %v5272
    %v5274 = vlaneseq
    %v5275 = vshrl.u32 %v5274, 7
    %v5276 = vsub.s32 %v5273, %v5275
    %v5277 = vrot.slane %v5261, %v5276
    %v5279 = vunpack.c.l.s4 1966171168
    %v5280 = vunpack.c.0.s8 %v5279
    %v5281 = vlaneseq
    %v5282 = vshrl.u32 %v5281, 7
    %v5283 = vsub.s32 %v5280, %v5282
    %v5284 = vrot.slane %v5262, %v5283
    %v5286 = vunpack.c.l.s4 1966171168
    %v5287 = vunpack.c.0.s8 %v5286
    %v5288 = vlaneseq
    %v5289 = vshrl.u32 %v5288, 7
    %v5290 = vsub.s32 %v5287, %v5289
    %v5291 = vrot.slane %v5263, %v5290
    %v5292 = vcombine.low %v5270, %v5277
    %v5293 = vcombine.low %v5284, %v5291
    %v5295 = vunpack.c.l.s4 1966171168
    %v5296 = vunpack.c.0.s8 %v5295
    %v5297 = vlaneseq
    %v5298 = vshrl.u32 %v5297, 7
    %v5299 = vsub.s32 %v5296, %v5298
    %v5300 = vrot.slane %v5292, %v5299
    %v5302 = vunpack.c.l.s4 1966171168
    %v5303 = vunpack.c.0.s8 %v5302
    %v5304 = vlaneseq
    %v5305 = vshrl.u32 %v5304, 7
    %v5306 = vsub.s32 %v5303, %v5305
    %v5307 = vrot.slane %v5293, %v5306
    %v5308 = vcombine.low %v5300, %v5307
    %v5309 = vcombine.low %v2618, %v2622
    %v5310 = vcombine.low %v2626, %v2630
    %v5311 = vcombine.low %v2634, %v2638
    %v5312 = vcombine.low %v2642, %v2646
    %v5314 = vunpack.c.l.s4 1966171168
    %v5315 = vunpack.c.0.s8 %v5314
    %v5316 = vlaneseq
    %v5317 = vshrl.u32 %v5316, 7
    %v5318 = vsub.s32 %v5315, %v5317
    %v5319 = vrot.slane %v5309, %v5318
    %v5321 = vunpack.c.l.s4 1966171168
    %v5322 = vunpack.c.0.s8 %v5321
    %v5323 = vlaneseq
    %v5324 = vshrl.u32 %v5323, 7
    %v5325 = vsub.s32 %v5322, %v5324
    %v5326 = vrot.slane %v5310, %v5325
    %v5328 = vunpack.c.l.s4 1966171168
    %v5329 = vunpack.c.0.s8 %v5328
    %v5330 = vlaneseq
    %v5331 = vshrl.u32 %v5330, 7
    %v5332 = vsub.s32 %v5329, %v5331
    %v5333 = vrot.slane %v5311, %v5332
    %v5335 = vunpack.c.l.s4 1966171168
    %v5336 = vunpack.c.0.s8 %v5335
    %v5337 = vlaneseq
    %v5338 = vshrl.u32 %v5337, 7
    %v5339 = vsub.s32 %v5336, %v5338
    %v5340 = vrot.slane %v5312, %v5339
    %v5341 = vcombine.low %v5319, %v5326
    %v5342 = vcombine.low %v5333, %v5340
    %v5344 = vunpack.c.l.s4 1966171168
    %v5345 = vunpack.c.0.s8 %v5344
    %v5346 = vlaneseq
    %v5347 = vshrl.u32 %v5346, 7
    %v5348 = vsub.s32 %v5345, %v5347
    %v5349 = vrot.slane %v5341, %v5348
    %v5351 = vunpack.c.l.s4 1966171168
    %v5352 = vunpack.c.0.s8 %v5351
    %v5353 = vlaneseq
    %v5354 = vshrl.u32 %v5353, 7
    %v5355 = vsub.s32 %v5352, %v5354
    %v5356 = vrot.slane %v5342, %v5355
    %v5357 = vcombine.low %v5349, %v5356
    %v5358 = vcombine.low %v2650, %v2654
    %v5359 = vcombine.low %v2658, %v2662
    %v5360 = vcombine.low %v2666, %v2670
    %v5361 = vcombine.low %v2674, %v2678
    %v5363 = vunpack.c.l.s4 1966171168
    %v5364 = vunpack.c.0.s8 %v5363
    %v5365 = vlaneseq
    %v5366 = vshrl.u32 %v5365, 7
    %v5367 = vsub.s32 %v5364, %v5366
    %v5368 = vrot.slane %v5358, %v5367
    %v5370 = vunpack.c.l.s4 1966171168
    %v5371 = vunpack.c.0.s8 %v5370
    %v5372 = vlaneseq
    %v5373 = vshrl.u32 %v5372, 7
    %v5374 = vsub.s32 %v5371, %v5373
    %v5375 = vrot.slane %v5359, %v5374
    %v5377 = vunpack.c.l.s4 1966171168
    %v5378 = vunpack.c.0.s8 %v5377
    %v5379 = vlaneseq
    %v5380 = vshrl.u32 %v5379, 7
    %v5381 = vsub.s32 %v5378, %v5380
    %v5382 = vrot.slane %v5360, %v5381
    %v5384 = vunpack.c.l.s4 1966171168
    %v5385 = vunpack.c.0.s8 %v5384
    %v5386 = vlaneseq
    %v5387 = vshrl.u32 %v5386, 7
    %v5388 = vsub.s32 %v5385, %v5387
    %v5389 = vrot.slane %v5361, %v5388
    %v5390 = vcombine.low %v5368, %v5375
    %v5391 = vcombine.low %v5382, %v5389
    %v5393 = vunpack.c.l.s4 1966171168
    %v5394 = vunpack.c.0.s8 %v5393
    %v5395 = vlaneseq
    %v5396 = vshrl.u32 %v5395, 7
    %v5397 = vsub.s32 %v5394, %v5396
    %v5398 = vrot.slane %v5390, %v5397
    %v5400 = vunpack.c.l.s4 1966171168
    %v5401 = vunpack.c.0.s8 %v5400
    %v5402 = vlaneseq
    %v5403 = vshrl.u32 %v5402, 7
    %v5404 = vsub.s32 %v5401, %v5403
    %v5405 = vrot.slane %v5391, %v5404
    %v5406 = vcombine.low %v5398, %v5405
    %v5407 = vcombine.low %v2682, %v2686
    %v5408 = vcombine.low %v2690, %v2694
    %v5409 = vcombine.low %v2698, %v2702
    %v5410 = vcombine.low %v2706, %v2710
    %v5412 = vunpack.c.l.s4 1966171168
    %v5413 = vunpack.c.0.s8 %v5412
    %v5414 = vlaneseq
    %v5415 = vshrl.u32 %v5414, 7
    %v5416 = vsub.s32 %v5413, %v5415
    %v5417 = vrot.slane %v5407, %v5416
    %v5419 = vunpack.c.l.s4 1966171168
    %v5420 = vunpack.c.0.s8 %v5419
    %v5421 = vlaneseq
    %v5422 = vshrl.u32 %v5421, 7
    %v5423 = vsub.s32 %v5420, %v5422
    %v5424 = vrot.slane %v5408, %v5423
    %v5426 = vunpack.c.l.s4 1966171168
    %v5427 = vunpack.c.0.s8 %v5426
    %v5428 = vlaneseq
    %v5429 = vshrl.u32 %v5428, 7
    %v5430 = vsub.s32 %v5427, %v5429
    %v5431 = vrot.slane %v5409, %v5430
    %v5433 = vunpack.c.l.s4 1966171168
    %v5434 = vunpack.c.0.s8 %v5433
    %v5435 = vlaneseq
    %v5436 = vshrl.u32 %v5435, 7
    %v5437 = vsub.s32 %v5434, %v5436
    %v5438 = vrot.slane %v5410, %v5437
    %v5439 = vcombine.low %v5417, %v5424
    %v5440 = vcombine.low %v5431, %v5438
    %v5442 = vunpack.c.l.s4 1966171168
    %v5443 = vunpack.c.0.s8 %v5442
    %v5444 = vlaneseq
    %v5445 = vshrl.u32 %v5444, 7
    %v5446 = vsub.s32 %v5443, %v5445
    %v5447 = vrot.slane %v5439, %v5446
    %v5449 = vunpack.c.l.s4 1966171168
    %v5450 = vunpack.c.0.s8 %v5449
    %v5451 = vlaneseq
    %v5452 = vshrl.u32 %v5451, 7
    %v5453 = vsub.s32 %v5450, %v5452
    %v5454 = vrot.slane %v5440, %v5453
    %v5455 = vcombine.low %v5447, %v5454
    %v5456 = vcombine.low %v2714, %v2718
    %v5457 = vcombine.low %v2722, %v2726
    %v5458 = vcombine.low %v2730, %v2734
    %v5459 = vcombine.low %v2738, %v2742
    %v5461 = vunpack.c.l.s4 1966171168
    %v5462 = vunpack.c.0.s8 %v5461
    %v5463 = vlaneseq
    %v5464 = vshrl.u32 %v5463, 7
    %v5465 = vsub.s32 %v5462, %v5464
    %v5466 = vrot.slane %v5456, %v5465
    %v5468 = vunpack.c.l.s4 1966171168
    %v5469 = vunpack.c.0.s8 %v5468
    %v5470 = vlaneseq
    %v5471 = vshrl.u32 %v5470, 7
    %v5472 = vsub.s32 %v5469, %v5471
    %v5473 = vrot.slane %v5457, %v5472
    %v5475 = vunpack.c.l.s4 1966171168
    %v5476 = vunpack.c.0.s8 %v5475
    %v5477 = vlaneseq
    %v5478 = vshrl.u32 %v5477, 7
    %v5479 = vsub.s32 %v5476, %v5478
    %v5480 = vrot.slane %v5458, %v5479
    %v5482 = vunpack.c.l.s4 1966171168
    %v5483 = vunpack.c.0.s8 %v5482
    %v5484 = vlaneseq
    %v5485 = vshrl.u32 %v5484, 7
    %v5486 = vsub.s32 %v5483, %v5485
    %v5487 = vrot.slane %v5459, %v5486
    %v5488 = vcombine.low %v5466, %v5473
    %v5489 = vcombine.low %v5480, %v5487
    %v5491 = vunpack.c.l.s4 1966171168
    %v5492 = vunpack.c.0.s8 %v5491
    %v5493 = vlaneseq
    %v5494 = vshrl.u32 %v5493, 7
    %v5495 = vsub.s32 %v5492, %v5494
    %v5496 = vrot.slane %v5488, %v5495
    %v5498 = vunpack.c.l.s4 1966171168
    %v5499 = vunpack.c.0.s8 %v5498
    %v5500 = vlaneseq
    %v5501 = vshrl.u32 %v5500, 7
    %v5502 = vsub.s32 %v5499, %v5501
    %v5503 = vrot.slane %v5489, %v5502
    %v5504 = vcombine.low %v5496, %v5503
    %v5505 = vcombine.low %v2746, %v2750
    %v5506 = vcombine.low %v2754, %v2758
    %v5507 = vcombine.low %v2762, %v2766
    %v5508 = vcombine.low %v2770, %v2774
    %v5510 = vunpack.c.l.s4 1966171168
    %v5511 = vunpack.c.0.s8 %v5510
    %v5512 = vlaneseq
    %v5513 = vshrl.u32 %v5512, 7
    %v5514 = vsub.s32 %v5511, %v5513
    %v5515 = vrot.slane %v5505, %v5514
    %v5517 = vunpack.c.l.s4 1966171168
    %v5518 = vunpack.c.0.s8 %v5517
    %v5519 = vlaneseq
    %v5520 = vshrl.u32 %v5519, 7
    %v5521 = vsub.s32 %v5518, %v5520
    %v5522 = vrot.slane %v5506, %v5521
    %v5524 = vunpack.c.l.s4 1966171168
    %v5525 = vunpack.c.0.s8 %v5524
    %v5526 = vlaneseq
    %v5527 = vshrl.u32 %v5526, 7
    %v5528 = vsub.s32 %v5525, %v5527
    %v5529 = vrot.slane %v5507, %v5528
    %v5531 = vunpack.c.l.s4 1966171168
    %v5532 = vunpack.c.0.s8 %v5531
    %v5533 = vlaneseq
    %v5534 = vshrl.u32 %v5533, 7
    %v5535 = vsub.s32 %v5532, %v5534
    %v5536 = vrot.slane %v5508, %v5535
    %v5537 = vcombine.low %v5515, %v5522
    %v5538 = vcombine.low %v5529, %v5536
    %v5540 = vunpack.c.l.s4 1966171168
    %v5541 = vunpack.c.0.s8 %v5540
    %v5542 = vlaneseq
    %v5543 = vshrl.u32 %v5542, 7
    %v5544 = vsub.s32 %v5541, %v5543
    %v5545 = vrot.slane %v5537, %v5544
    %v5547 = vunpack.c.l.s4 1966171168
    %v5548 = vunpack.c.0.s8 %v5547
    %v5549 = vlaneseq
    %v5550 = vshrl.u32 %v5549, 7
    %v5551 = vsub.s32 %v5548, %v5550
    %v5552 = vrot.slane %v5538, %v5551
    %v5553 = vcombine.low %v5545, %v5552
    %v5554 = vcombine.low %v2778, %v2782
    %v5555 = vcombine.low %v2786, %v2790
    %v5556 = vcombine.low %v2794, %v2798
    %v5557 = vcombine.low %v2802, %v2806
    %v5559 = vunpack.c.l.s4 1966171168
    %v5560 = vunpack.c.0.s8 %v5559
    %v5561 = vlaneseq
    %v5562 = vshrl.u32 %v5561, 7
    %v5563 = vsub.s32 %v5560, %v5562
    %v5564 = vrot.slane %v5554, %v5563
    %v5566 = vunpack.c.l.s4 1966171168
    %v5567 = vunpack.c.0.s8 %v5566
    %v5568 = vlaneseq
    %v5569 = vshrl.u32 %v5568, 7
    %v5570 = vsub.s32 %v5567, %v5569
    %v5571 = vrot.slane %v5555, %v5570
    %v5573 = vunpack.c.l.s4 1966171168
    %v5574 = vunpack.c.0.s8 %v5573
    %v5575 = vlaneseq
    %v5576 = vshrl.u32 %v5575, 7
    %v5577 = vsub.s32 %v5574, %v5576
    %v5578 = vrot.slane %v5556, %v5577
    %v5580 = vunpack.c.l.s4 1966171168
    %v5581 = vunpack.c.0.s8 %v5580
    %v5582 = vlaneseq
    %v5583 = vshrl.u32 %v5582, 7
    %v5584 = vsub.s32 %v5581, %v5583
    %v5585 = vrot.slane %v5557, %v5584
    %v5586 = vcombine.low %v5564, %v5571
    %v5587 = vcombine.low %v5578, %v5585
    %v5589 = vunpack.c.l.s4 1966171168
    %v5590 = vunpack.c.0.s8 %v5589
    %v5591 = vlaneseq
    %v5592 = vshrl.u32 %v5591, 7
    %v5593 = vsub.s32 %v5590, %v5592
    %v5594 = vrot.slane %v5586, %v5593
    %v5596 = vunpack.c.l.s4 1966171168
    %v5597 = vunpack.c.0.s8 %v5596
    %v5598 = vlaneseq
    %v5599 = vshrl.u32 %v5598, 7
    %v5600 = vsub.s32 %v5597, %v5599
    %v5601 = vrot.slane %v5587, %v5600
    %v5602 = vcombine.low %v5594, %v5601
    %v5603 = vcombine.low %v2810, %v2814
    %v5604 = vcombine.low %v2818, %v2822
    %v5605 = vcombine.low %v2826, %v2830
    %v5606 = vcombine.low %v2834, %v2838
    %v5608 = vunpack.c.l.s4 1966171168
    %v5609 = vunpack.c.0.s8 %v5608
    %v5610 = vlaneseq
    %v5611 = vshrl.u32 %v5610, 7
    %v5612 = vsub.s32 %v5609, %v5611
    %v5613 = vrot.slane %v5603, %v5612
    %v5615 = vunpack.c.l.s4 1966171168
    %v5616 = vunpack.c.0.s8 %v5615
    %v5617 = vlaneseq
    %v5618 = vshrl.u32 %v5617, 7
    %v5619 = vsub.s32 %v5616, %v5618
    %v5620 = vrot.slane %v5604, %v5619
    %v5622 = vunpack.c.l.s4 1966171168
    %v5623 = vunpack.c.0.s8 %v5622
    %v5624 = vlaneseq
    %v5625 = vshrl.u32 %v5624, 7
    %v5626 = vsub.s32 %v5623, %v5625
    %v5627 = vrot.slane %v5605, %v5626
    %v5629 = vunpack.c.l.s4 1966171168
    %v5630 = vunpack.c.0.s8 %v5629
    %v5631 = vlaneseq
    %v5632 = vshrl.u32 %v5631, 7
    %v5633 = vsub.s32 %v5630, %v5632
    %v5634 = vrot.slane %v5606, %v5633
    %v5635 = vcombine.low %v5613, %v5620
    %v5636 = vcombine.low %v5627, %v5634
    %v5638 = vunpack.c.l.s4 1966171168
    %v5639 = vunpack.c.0.s8 %v5638
    %v5640 = vlaneseq
    %v5641 = vshrl.u32 %v5640, 7
    %v5642 = vsub.s32 %v5639, %v5641
    %v5643 = vrot.slane %v5635, %v5642
    %v5645 = vunpack.c.l.s4 1966171168
    %v5646 = vunpack.c.0.s8 %v5645
    %v5647 = vlaneseq
    %v5648 = vshrl.u32 %v5647, 7
    %v5649 = vsub.s32 %v5646, %v5648
    %v5650 = vrot.slane %v5636, %v5649
    %v5651 = vcombine.low %v5643, %v5650
    %v5652 = vcombine.low %v2842, %v2846
    %v5653 = vcombine.low %v2850, %v2854
    %v5654 = vcombine.low %v2858, %v2862
    %v5655 = vcombine.low %v2866, %v2870
    %v5657 = vunpack.c.l.s4 1966171168
    %v5658 = vunpack.c.0.s8 %v5657
    %v5659 = vlaneseq
    %v5660 = vshrl.u32 %v5659, 7
    %v5661 = vsub.s32 %v5658, %v5660
    %v5662 = vrot.slane %v5652, %v5661
    %v5664 = vunpack.c.l.s4 1966171168
    %v5665 = vunpack.c.0.s8 %v5664
    %v5666 = vlaneseq
    %v5667 = vshrl.u32 %v5666, 7
    %v5668 = vsub.s32 %v5665, %v5667
    %v5669 = vrot.slane %v5653, %v5668
    %v5671 = vunpack.c.l.s4 1966171168
    %v5672 = vunpack.c.0.s8 %v5671
    %v5673 = vlaneseq
    %v5674 = vshrl.u32 %v5673, 7
    %v5675 = vsub.s32 %v5672, %v5674
    %v5676 = vrot.slane %v5654, %v5675
    %v5678 = vunpack.c.l.s4 1966171168
    %v5679 = vunpack.c.0.s8 %v5678
    %v5680 = vlaneseq
    %v5681 = vshrl.u32 %v5680, 7
    %v5682 = vsub.s32 %v5679, %v5681
    %v5683 = vrot.slane %v5655, %v5682
    %v5684 = vcombine.low %v5662, %v5669
    %v5685 = vcombine.low %v5676, %v5683
    %v5687 = vunpack.c.l.s4 1966171168
    %v5688 = vunpack.c.0.s8 %v5687
    %v5689 = vlaneseq
    %v5690 = vshrl.u32 %v5689, 7
    %v5691 = vsub.s32 %v5688, %v5690
    %v5692 = vrot.slane %v5684, %v5691
    %v5694 = vunpack.c.l.s4 1966171168
    %v5695 = vunpack.c.0.s8 %v5694
    %v5696 = vlaneseq
    %v5697 = vshrl.u32 %v5696, 7
    %v5698 = vsub.s32 %v5695, %v5697
    %v5699 = vrot.slane %v5685, %v5698
    %v5700 = vcombine.low %v5692, %v5699
    %v5701 = vcombine.low %v2874, %v2878
    %v5702 = vcombine.low %v2882, %v2886
    %v5703 = vcombine.low %v2890, %v2894
    %v5704 = vcombine.low %v2898, %v2902
    %v5706 = vunpack.c.l.s4 1966171168
    %v5707 = vunpack.c.0.s8 %v5706
    %v5708 = vlaneseq
    %v5709 = vshrl.u32 %v5708, 7
    %v5710 = vsub.s32 %v5707, %v5709
    %v5711 = vrot.slane %v5701, %v5710
    %v5713 = vunpack.c.l.s4 1966171168
    %v5714 = vunpack.c.0.s8 %v5713
    %v5715 = vlaneseq
    %v5716 = vshrl.u32 %v5715, 7
    %v5717 = vsub.s32 %v5714, %v5716
    %v5718 = vrot.slane %v5702, %v5717
    %v5720 = vunpack.c.l.s4 1966171168
    %v5721 = vunpack.c.0.s8 %v5720
    %v5722 = vlaneseq
    %v5723 = vshrl.u32 %v5722, 7
    %v5724 = vsub.s32 %v5721, %v5723
    %v5725 = vrot.slane %v5703, %v5724
    %v5727 = vunpack.c.l.s4 1966171168
    %v5728 = vunpack.c.0.s8 %v5727
    %v5729 = vlaneseq
    %v5730 = vshrl.u32 %v5729, 7
    %v5731 = vsub.s32 %v5728, %v5730
    %v5732 = vrot.slane %v5704, %v5731
    %v5733 = vcombine.low %v5711, %v5718
    %v5734 = vcombine.low %v5725, %v5732
    %v5736 = vunpack.c.l.s4 1966171168
    %v5737 = vunpack.c.0.s8 %v5736
    %v5738 = vlaneseq
    %v5739 = vshrl.u32 %v5738, 7
    %v5740 = vsub.s32 %v5737, %v5739
    %v5741 = vrot.slane %v5733, %v5740
    %v5743 = vunpack.c.l.s4 1966171168
    %v5744 = vunpack.c.0.s8 %v5743
    %v5745 = vlaneseq
    %v5746 = vshrl.u32 %v5745, 7
    %v5747 = vsub.s32 %v5744, %v5746
    %v5748 = vrot.slane %v5734, %v5747
    %v5749 = vcombine.low %v5741, %v5748
    %v5750 = vcombine.low %v2906, %v2910
    %v5751 = vcombine.low %v2914, %v2918
    %v5752 = vcombine.low %v2922, %v2926
    %v5753 = vcombine.low %v2930, %v2934
    %v5755 = vunpack.c.l.s4 1966171168
    %v5756 = vunpack.c.0.s8 %v5755
    %v5757 = vlaneseq
    %v5758 = vshrl.u32 %v5757, 7
    %v5759 = vsub.s32 %v5756, %v5758
    %v5760 = vrot.slane %v5750, %v5759
    %v5762 = vunpack.c.l.s4 1966171168
    %v5763 = vunpack.c.0.s8 %v5762
    %v5764 = vlaneseq
    %v5765 = vshrl.u32 %v5764, 7
    %v5766 = vsub.s32 %v5763, %v5765
    %v5767 = vrot.slane %v5751, %v5766
    %v5769 = vunpack.c.l.s4 1966171168
    %v5770 = vunpack.c.0.s8 %v5769
    %v5771 = vlaneseq
    %v5772 = vshrl.u32 %v5771, 7
    %v5773 = vsub.s32 %v5770, %v5772
    %v5774 = vrot.slane %v5752, %v5773
    %v5776 = vunpack.c.l.s4 1966171168
    %v5777 = vunpack.c.0.s8 %v5776
    %v5778 = vlaneseq
    %v5779 = vshrl.u32 %v5778, 7
    %v5780 = vsub.s32 %v5777, %v5779
    %v5781 = vrot.slane %v5753, %v5780
    %v5782 = vcombine.low %v5760, %v5767
    %v5783 = vcombine.low %v5774, %v5781
    %v5785 = vunpack.c.l.s4 1966171168
    %v5786 = vunpack.c.0.s8 %v5785
    %v5787 = vlaneseq
    %v5788 = vshrl.u32 %v5787, 7
    %v5789 = vsub.s32 %v5786, %v5788
    %v5790 = vrot.slane %v5782, %v5789
    %v5792 = vunpack.c.l.s4 1966171168
    %v5793 = vunpack.c.0.s8 %v5792
    %v5794 = vlaneseq
    %v5795 = vshrl.u32 %v5794, 7
    %v5796 = vsub.s32 %v5793, %v5795
    %v5797 = vrot.slane %v5783, %v5796
    %v5798 = vcombine.low %v5790, %v5797
    %v5799 = vcombine.low %v2938, %v2942
    %v5800 = vcombine.low %v2946, %v2950
    %v5801 = vcombine.low %v2954, %v2958
    %v5802 = vcombine.low %v2962, %v2966
    %v5804 = vunpack.c.l.s4 1966171168
    %v5805 = vunpack.c.0.s8 %v5804
    %v5806 = vlaneseq
    %v5807 = vshrl.u32 %v5806, 7
    %v5808 = vsub.s32 %v5805, %v5807
    %v5809 = vrot.slane %v5799, %v5808
    %v5811 = vunpack.c.l.s4 1966171168
    %v5812 = vunpack.c.0.s8 %v5811
    %v5813 = vlaneseq
    %v5814 = vshrl.u32 %v5813, 7
    %v5815 = vsub.s32 %v5812, %v5814
    %v5816 = vrot.slane %v5800, %v5815
    %v5818 = vunpack.c.l.s4 1966171168
    %v5819 = vunpack.c.0.s8 %v5818
    %v5820 = vlaneseq
    %v5821 = vshrl.u32 %v5820, 7
    %v5822 = vsub.s32 %v5819, %v5821
    %v5823 = vrot.slane %v5801, %v5822
    %v5825 = vunpack.c.l.s4 1966171168
    %v5826 = vunpack.c.0.s8 %v5825
    %v5827 = vlaneseq
    %v5828 = vshrl.u32 %v5827, 7
    %v5829 = vsub.s32 %v5826, %v5828
    %v5830 = vrot.slane %v5802, %v5829
    %v5831 = vcombine.low %v5809, %v5816
    %v5832 = vcombine.low %v5823, %v5830
    %v5834 = vunpack.c.l.s4 1966171168
    %v5835 = vunpack.c.0.s8 %v5834
    %v5836 = vlaneseq
    %v5837 = vshrl.u32 %v5836, 7
    %v5838 = vsub.s32 %v5835, %v5837
    %v5839 = vrot.slane %v5831, %v5838
    %v5841 = vunpack.c.l.s4 1966171168
    %v5842 = vunpack.c.0.s8 %v5841
    %v5843 = vlaneseq
    %v5844 = vshrl.u32 %v5843, 7
    %v5845 = vsub.s32 %v5842, %v5844
    %v5846 = vrot.slane %v5832, %v5845
    %v5847 = vcombine.low %v5839, %v5846
    %v5848 = vcombine.low %v2970, %v2974
    %v5849 = vcombine.low %v2978, %v2982
    %v5850 = vcombine.low %v2986, %v2990
    %v5851 = vcombine.low %v2994, %v2998
    %v5853 = vunpack.c.l.s4 1966171168
    %v5854 = vunpack.c.0.s8 %v5853
    %v5855 = vlaneseq
    %v5856 = vshrl.u32 %v5855, 7
    %v5857 = vsub.s32 %v5854, %v5856
    %v5858 = vrot.slane %v5848, %v5857
    %v5860 = vunpack.c.l.s4 1966171168
    %v5861 = vunpack.c.0.s8 %v5860
    %v5862 = vlaneseq
    %v5863 = vshrl.u32 %v5862, 7
    %v5864 = vsub.s32 %v5861, %v5863
    %v5865 = vrot.slane %v5849, %v5864
    %v5867 = vunpack.c.l.s4 1966171168
    %v5868 = vunpack.c.0.s8 %v5867
    %v5869 = vlaneseq
    %v5870 = vshrl.u32 %v5869, 7
    %v5871 = vsub.s32 %v5868, %v5870
    %v5872 = vrot.slane %v5850, %v5871
    %v5874 = vunpack.c.l.s4 1966171168
    %v5875 = vunpack.c.0.s8 %v5874
    %v5876 = vlaneseq
    %v5877 = vshrl.u32 %v5876, 7
    %v5878 = vsub.s32 %v5875, %v5877
    %v5879 = vrot.slane %v5851, %v5878
    %v5880 = vcombine.low %v5858, %v5865
    %v5881 = vcombine.low %v5872, %v5879
    %v5883 = vunpack.c.l.s4 1966171168
    %v5884 = vunpack.c.0.s8 %v5883
    %v5885 = vlaneseq
    %v5886 = vshrl.u32 %v5885, 7
    %v5887 = vsub.s32 %v5884, %v5886
    %v5888 = vrot.slane %v5880, %v5887
    %v5890 = vunpack.c.l.s4 1966171168
    %v5891 = vunpack.c.0.s8 %v5890
    %v5892 = vlaneseq
    %v5893 = vshrl.u32 %v5892, 7
    %v5894 = vsub.s32 %v5891, %v5893
    %v5895 = vrot.slane %v5881, %v5894
    %v5896 = vcombine.low %v5888, %v5895
    %v5897 = vcombine.low %v3002, %v3006
    %v5898 = vcombine.low %v3010, %v3014
    %v5899 = vcombine.low %v3018, %v3022
    %v5900 = vcombine.low %v3026, %v3030
    %v5902 = vunpack.c.l.s4 1966171168
    %v5903 = vunpack.c.0.s8 %v5902
    %v5904 = vlaneseq
    %v5905 = vshrl.u32 %v5904, 7
    %v5906 = vsub.s32 %v5903, %v5905
    %v5907 = vrot.slane %v5897, %v5906
    %v5909 = vunpack.c.l.s4 1966171168
    %v5910 = vunpack.c.0.s8 %v5909
    %v5911 = vlaneseq
    %v5912 = vshrl.u32 %v5911, 7
    %v5913 = vsub.s32 %v5910, %v5912
    %v5914 = vrot.slane %v5898, %v5913
    %v5916 = vunpack.c.l.s4 1966171168
    %v5917 = vunpack.c.0.s8 %v5916
    %v5918 = vlaneseq
    %v5919 = vshrl.u32 %v5918, 7
    %v5920 = vsub.s32 %v5917, %v5919
    %v5921 = vrot.slane %v5899, %v5920
    %v5923 = vunpack.c.l.s4 1966171168
    %v5924 = vunpack.c.0.s8 %v5923
    %v5925 = vlaneseq
    %v5926 = vshrl.u32 %v5925, 7
    %v5927 = vsub.s32 %v5924, %v5926
    %v5928 = vrot.slane %v5900, %v5927
    %v5929 = vcombine.low %v5907, %v5914
    %v5930 = vcombine.low %v5921, %v5928
    %v5932 = vunpack.c.l.s4 1966171168
    %v5933 = vunpack.c.0.s8 %v5932
    %v5934 = vlaneseq
    %v5935 = vshrl.u32 %v5934, 7
    %v5936 = vsub.s32 %v5933, %v5935
    %v5937 = vrot.slane %v5929, %v5936
    %v5939 = vunpack.c.l.s4 1966171168
    %v5940 = vunpack.c.0.s8 %v5939
    %v5941 = vlaneseq
    %v5942 = vshrl.u32 %v5941, 7
    %v5943 = vsub.s32 %v5940, %v5942
    %v5944 = vrot.slane %v5930, %v5943
    %v5945 = vcombine.low %v5937, %v5944
    %v5946 = vcombine.low %v3034, %v3038
    %v5947 = vcombine.low %v3042, %v3046
    %v5948 = vcombine.low %v3050, %v3054
    %v5949 = vcombine.low %v3058, %v3062
    %v5951 = vunpack.c.l.s4 1966171168
    %v5952 = vunpack.c.0.s8 %v5951
    %v5953 = vlaneseq
    %v5954 = vshrl.u32 %v5953, 7
    %v5955 = vsub.s32 %v5952, %v5954
    %v5956 = vrot.slane %v5946, %v5955
    %v5958 = vunpack.c.l.s4 1966171168
    %v5959 = vunpack.c.0.s8 %v5958
    %v5960 = vlaneseq
    %v5961 = vshrl.u32 %v5960, 7
    %v5962 = vsub.s32 %v5959, %v5961
    %v5963 = vrot.slane %v5947, %v5962
    %v5965 = vunpack.c.l.s4 1966171168
    %v5966 = vunpack.c.0.s8 %v5965
    %v5967 = vlaneseq
    %v5968 = vshrl.u32 %v5967, 7
    %v5969 = vsub.s32 %v5966, %v5968
    %v5970 = vrot.slane %v5948, %v5969
    %v5972 = vunpack.c.l.s4 1966171168
    %v5973 = vunpack.c.0.s8 %v5972
    %v5974 = vlaneseq
    %v5975 = vshrl.u32 %v5974, 7
    %v5976 = vsub.s32 %v5973, %v5975
    %v5977 = vrot.slane %v5949, %v5976
    %v5978 = vcombine.low %v5956, %v5963
    %v5979 = vcombine.low %v5970, %v5977
    %v5981 = vunpack.c.l.s4 1966171168
    %v5982 = vunpack.c.0.s8 %v5981
    %v5983 = vlaneseq
    %v5984 = vshrl.u32 %v5983, 7
    %v5985 = vsub.s32 %v5982, %v5984
    %v5986 = vrot.slane %v5978, %v5985
    %v5988 = vunpack.c.l.s4 1966171168
    %v5989 = vunpack.c.0.s8 %v5988
    %v5990 = vlaneseq
    %v5991 = vshrl.u32 %v5990, 7
    %v5992 = vsub.s32 %v5989, %v5991
    %v5993 = vrot.slane %v5979, %v5992
    %v5994 = vcombine.low %v5986, %v5993
    %v5995 = vcombine.low %v3066, %v3070
    %v5996 = vcombine.low %v3074, %v3078
    %v5997 = vcombine.low %v3082, %v3086
    %v5998 = vcombine.low %v3090, %v3094
    %v6000 = vunpack.c.l.s4 1966171168
    %v6001 = vunpack.c.0.s8 %v6000
    %v6002 = vlaneseq
    %v6003 = vshrl.u32 %v6002, 7
    %v6004 = vsub.s32 %v6001, %v6003
    %v6005 = vrot.slane %v5995, %v6004
    %v6007 = vunpack.c.l.s4 1966171168
    %v6008 = vunpack.c.0.s8 %v6007
    %v6009 = vlaneseq
    %v6010 = vshrl.u32 %v6009, 7
    %v6011 = vsub.s32 %v6008, %v6010
    %v6012 = vrot.slane %v5996, %v6011
    %v6014 = vunpack.c.l.s4 1966171168
    %v6015 = vunpack.c.0.s8 %v6014
    %v6016 = vlaneseq
    %v6017 = vshrl.u32 %v6016, 7
    %v6018 = vsub.s32 %v6015, %v6017
    %v6019 = vrot.slane %v5997, %v6018
    %v6021 = vunpack.c.l.s4 1966171168
    %v6022 = vunpack.c.0.s8 %v6021
    %v6023 = vlaneseq
    %v6024 = vshrl.u32 %v6023, 7
    %v6025 = vsub.s32 %v6022, %v6024
    %v6026 = vrot.slane %v5998, %v6025
    %v6027 = vcombine.low %v6005, %v6012
    %v6028 = vcombine.low %v6019, %v6026
    %v6030 = vunpack.c.l.s4 1966171168
    %v6031 = vunpack.c.0.s8 %v6030
    %v6032 = vlaneseq
    %v6033 = vshrl.u32 %v6032, 7
    %v6034 = vsub.s32 %v6031, %v6033
    %v6035 = vrot.slane %v6027, %v6034
    %v6037 = vunpack.c.l.s4 1966171168
    %v6038 = vunpack.c.0.s8 %v6037
    %v6039 = vlaneseq
    %v6040 = vshrl.u32 %v6039, 7
    %v6041 = vsub.s32 %v6038, %v6040
    %v6042 = vrot.slane %v6028, %v6041
    %v6043 = vcombine.low %v6035, %v6042
    %v6044 = vcombine.low %v3098, %v3102
    %v6045 = vcombine.low %v3106, %v3110
    %v6046 = vcombine.low %v3114, %v3118
    %v6047 = vcombine.low %v3122, %v3126
    %v6049 = vunpack.c.l.s4 1966171168
    %v6050 = vunpack.c.0.s8 %v6049
    %v6051 = vlaneseq
    %v6052 = vshrl.u32 %v6051, 7
    %v6053 = vsub.s32 %v6050, %v6052
    %v6054 = vrot.slane %v6044, %v6053
    %v6056 = vunpack.c.l.s4 1966171168
    %v6057 = vunpack.c.0.s8 %v6056
    %v6058 = vlaneseq
    %v6059 = vshrl.u32 %v6058, 7
    %v6060 = vsub.s32 %v6057, %v6059
    %v6061 = vrot.slane %v6045, %v6060
    %v6063 = vunpack.c.l.s4 1966171168
    %v6064 = vunpack.c.0.s8 %v6063
    %v6065 = vlaneseq
    %v6066 = vshrl.u32 %v6065, 7
    %v6067 = vsub.s32 %v6064, %v6066
    %v6068 = vrot.slane %v6046, %v6067
    %v6070 = vunpack.c.l.s4 1966171168
    %v6071 = vunpack.c.0.s8 %v6070
    %v6072 = vlaneseq
    %v6073 = vshrl.u32 %v6072, 7
    %v6074 = vsub.s32 %v6071, %v6073
    %v6075 = vrot.slane %v6047, %v6074
    %v6076 = vcombine.low %v6054, %v6061
    %v6077 = vcombine.low %v6068, %v6075
    %v6079 = vunpack.c.l.s4 1966171168
    %v6080 = vunpack.c.0.s8 %v6079
    %v6081 = vlaneseq
    %v6082 = vshrl.u32 %v6081, 7
    %v6083 = vsub.s32 %v6080, %v6082
    %v6084 = vrot.slane %v6076, %v6083
    %v6086 = vunpack.c.l.s4 1966171168
    %v6087 = vunpack.c.0.s8 %v6086
    %v6088 = vlaneseq
    %v6089 = vshrl.u32 %v6088, 7
    %v6090 = vsub.s32 %v6087, %v6089
    %v6091 = vrot.slane %v6077, %v6090
    %v6092 = vcombine.low %v6084, %v6091
    %v6093 = vcombine.low %v3130, %v3134
    %v6094 = vcombine.low %v3138, %v3142
    %v6095 = vcombine.low %v3146, %v3150
    %v6096 = vcombine.low %v3154, %v3158
    %v6098 = vunpack.c.l.s4 1966171168
    %v6099 = vunpack.c.0.s8 %v6098
    %v6100 = vlaneseq
    %v6101 = vshrl.u32 %v6100, 7
    %v6102 = vsub.s32 %v6099, %v6101
    %v6103 = vrot.slane %v6093, %v6102
    %v6105 = vunpack.c.l.s4 1966171168
    %v6106 = vunpack.c.0.s8 %v6105
    %v6107 = vlaneseq
    %v6108 = vshrl.u32 %v6107, 7
    %v6109 = vsub.s32 %v6106, %v6108
    %v6110 = vrot.slane %v6094, %v6109
    %v6112 = vunpack.c.l.s4 1966171168
    %v6113 = vunpack.c.0.s8 %v6112
    %v6114 = vlaneseq
    %v6115 = vshrl.u32 %v6114, 7
    %v6116 = vsub.s32 %v6113, %v6115
    %v6117 = vrot.slane %v6095, %v6116
    %v6119 = vunpack.c.l.s4 1966171168
    %v6120 = vunpack.c.0.s8 %v6119
    %v6121 = vlaneseq
    %v6122 = vshrl.u32 %v6121, 7
    %v6123 = vsub.s32 %v6120, %v6122
    %v6124 = vrot.slane %v6096, %v6123
    %v6125 = vcombine.low %v6103, %v6110
    %v6126 = vcombine.low %v6117, %v6124
    %v6128 = vunpack.c.l.s4 1966171168
    %v6129 = vunpack.c.0.s8 %v6128
    %v6130 = vlaneseq
    %v6131 = vshrl.u32 %v6130, 7
    %v6132 = vsub.s32 %v6129, %v6131
    %v6133 = vrot.slane %v6125, %v6132
    %v6135 = vunpack.c.l.s4 1966171168
    %v6136 = vunpack.c.0.s8 %v6135
    %v6137 = vlaneseq
    %v6138 = vshrl.u32 %v6137, 7
    %v6139 = vsub.s32 %v6136, %v6138
    %v6140 = vrot.slane %v6126, %v6139
    %v6141 = vcombine.low %v6133, %v6140
    %v6142 = vcombine.low %v3162, %v3166
    %v6143 = vcombine.low %v3170, %v3174
    %v6144 = vcombine.low %v3178, %v3182
    %v6145 = vcombine.low %v3186, %v3190
    %v6147 = vunpack.c.l.s4 1966171168
    %v6148 = vunpack.c.0.s8 %v6147
    %v6149 = vlaneseq
    %v6150 = vshrl.u32 %v6149, 7
    %v6151 = vsub.s32 %v6148, %v6150
    %v6152 = vrot.slane %v6142, %v6151
    %v6154 = vunpack.c.l.s4 1966171168
    %v6155 = vunpack.c.0.s8 %v6154
    %v6156 = vlaneseq
    %v6157 = vshrl.u32 %v6156, 7
    %v6158 = vsub.s32 %v6155, %v6157
    %v6159 = vrot.slane %v6143, %v6158
    %v6161 = vunpack.c.l.s4 1966171168
    %v6162 = vunpack.c.0.s8 %v6161
    %v6163 = vlaneseq
    %v6164 = vshrl.u32 %v6163, 7
    %v6165 = vsub.s32 %v6162, %v6164
    %v6166 = vrot.slane %v6144, %v6165
    %v6168 = vunpack.c.l.s4 1966171168
    %v6169 = vunpack.c.0.s8 %v6168
    %v6170 = vlaneseq
    %v6171 = vshrl.u32 %v6170, 7
    %v6172 = vsub.s32 %v6169, %v6171
    %v6173 = vrot.slane %v6145, %v6172
    %v6174 = vcombine.low %v6152, %v6159
    %v6175 = vcombine.low %v6166, %v6173
    %v6177 = vunpack.c.l.s4 1966171168
    %v6178 = vunpack.c.0.s8 %v6177
    %v6179 = vlaneseq
    %v6180 = vshrl.u32 %v6179, 7
    %v6181 = vsub.s32 %v6178, %v6180
    %v6182 = vrot.slane %v6174, %v6181
    %v6184 = vunpack.c.l.s4 1966171168
    %v6185 = vunpack.c.0.s8 %v6184
    %v6186 = vlaneseq
    %v6187 = vshrl.u32 %v6186, 7
    %v6188 = vsub.s32 %v6185, %v6187
    %v6189 = vrot.slane %v6175, %v6188
    %v6190 = vcombine.low %v6182, %v6189
    %v6191 = vcombine.low %v3194, %v3198
    %v6192 = vcombine.low %v3202, %v3206
    %v6193 = vcombine.low %v3210, %v3214
    %v6194 = vcombine.low %v3218, %v3222
    %v6196 = vunpack.c.l.s4 1966171168
    %v6197 = vunpack.c.0.s8 %v6196
    %v6198 = vlaneseq
    %v6199 = vshrl.u32 %v6198, 7
    %v6200 = vsub.s32 %v6197, %v6199
    %v6201 = vrot.slane %v6191, %v6200
    %v6203 = vunpack.c.l.s4 1966171168
    %v6204 = vunpack.c.0.s8 %v6203
    %v6205 = vlaneseq
    %v6206 = vshrl.u32 %v6205, 7
    %v6207 = vsub.s32 %v6204, %v6206
    %v6208 = vrot.slane %v6192, %v6207
    %v6210 = vunpack.c.l.s4 1966171168
    %v6211 = vunpack.c.0.s8 %v6210
    %v6212 = vlaneseq
    %v6213 = vshrl.u32 %v6212, 7
    %v6214 = vsub.s32 %v6211, %v6213
    %v6215 = vrot.slane %v6193, %v6214
    %v6217 = vunpack.c.l.s4 1966171168
    %v6218 = vunpack.c.0.s8 %v6217
    %v6219 = vlaneseq
    %v6220 = vshrl.u32 %v6219, 7
    %v6221 = vsub.s32 %v6218, %v6220
    %v6222 = vrot.slane %v6194, %v6221
    %v6223 = vcombine.low %v6201, %v6208
    %v6224 = vcombine.low %v6215, %v6222
    %v6226 = vunpack.c.l.s4 1966171168
    %v6227 = vunpack.c.0.s8 %v6226
    %v6228 = vlaneseq
    %v6229 = vshrl.u32 %v6228, 7
    %v6230 = vsub.s32 %v6227, %v6229
    %v6231 = vrot.slane %v6223, %v6230
    %v6233 = vunpack.c.l.s4 1966171168
    %v6234 = vunpack.c.0.s8 %v6233
    %v6235 = vlaneseq
    %v6236 = vshrl.u32 %v6235, 7
    %v6237 = vsub.s32 %v6234, %v6236
    %v6238 = vrot.slane %v6224, %v6237
    %v6239 = vcombine.low %v6231, %v6238
    %v6240 = vcombine.low %v3226, %v3230
    %v6241 = vcombine.low %v3234, %v3238
    %v6242 = vcombine.low %v3242, %v3246
    %v6243 = vcombine.low %v3250, %v3254
    %v6245 = vunpack.c.l.s4 1966171168
    %v6246 = vunpack.c.0.s8 %v6245
    %v6247 = vlaneseq
    %v6248 = vshrl.u32 %v6247, 7
    %v6249 = vsub.s32 %v6246, %v6248
    %v6250 = vrot.slane %v6240, %v6249
    %v6252 = vunpack.c.l.s4 1966171168
    %v6253 = vunpack.c.0.s8 %v6252
    %v6254 = vlaneseq
    %v6255 = vshrl.u32 %v6254, 7
    %v6256 = vsub.s32 %v6253, %v6255
    %v6257 = vrot.slane %v6241, %v6256
    %v6259 = vunpack.c.l.s4 1966171168
    %v6260 = vunpack.c.0.s8 %v6259
    %v6261 = vlaneseq
    %v6262 = vshrl.u32 %v6261, 7
    %v6263 = vsub.s32 %v6260, %v6262
    %v6264 = vrot.slane %v6242, %v6263
    %v6266 = vunpack.c.l.s4 1966171168
    %v6267 = vunpack.c.0.s8 %v6266
    %v6268 = vlaneseq
    %v6269 = vshrl.u32 %v6268, 7
    %v6270 = vsub.s32 %v6267, %v6269
    %v6271 = vrot.slane %v6243, %v6270
    %v6272 = vcombine.low %v6250, %v6257
    %v6273 = vcombine.low %v6264, %v6271
    %v6275 = vunpack.c.l.s4 1966171168
    %v6276 = vunpack.c.0.s8 %v6275
    %v6277 = vlaneseq
    %v6278 = vshrl.u32 %v6277, 7
    %v6279 = vsub.s32 %v6276, %v6278
    %v6280 = vrot.slane %v6272, %v6279
    %v6282 = vunpack.c.l.s4 1966171168
    %v6283 = vunpack.c.0.s8 %v6282
    %v6284 = vlaneseq
    %v6285 = vshrl.u32 %v6284, 7
    %v6286 = vsub.s32 %v6283, %v6285
    %v6287 = vrot.slane %v6273, %v6286
    %v6288 = vcombine.low %v6280, %v6287
    %v6289 = vcombine.low %v3258, %v3262
    %v6290 = vcombine.low %v3266, %v3270
    %v6291 = vcombine.low %v3274, %v3278
    %v6292 = vcombine.low %v3282, %v3286
    %v6294 = vunpack.c.l.s4 1966171168
    %v6295 = vunpack.c.0.s8 %v6294
    %v6296 = vlaneseq
    %v6297 = vshrl.u32 %v6296, 7
    %v6298 = vsub.s32 %v6295, %v6297
    %v6299 = vrot.slane %v6289, %v6298
    %v6301 = vunpack.c.l.s4 1966171168
    %v6302 = vunpack.c.0.s8 %v6301
    %v6303 = vlaneseq
    %v6304 = vshrl.u32 %v6303, 7
    %v6305 = vsub.s32 %v6302, %v6304
    %v6306 = vrot.slane %v6290, %v6305
    %v6308 = vunpack.c.l.s4 1966171168
    %v6309 = vunpack.c.0.s8 %v6308
    %v6310 = vlaneseq
    %v6311 = vshrl.u32 %v6310, 7
    %v6312 = vsub.s32 %v6309, %v6311
    %v6313 = vrot.slane %v6291, %v6312
    %v6315 = vunpack.c.l.s4 1966171168
    %v6316 = vunpack.c.0.s8 %v6315
    %v6317 = vlaneseq
    %v6318 = vshrl.u32 %v6317, 7
    %v6319 = vsub.s32 %v6316, %v6318
    %v6320 = vrot.slane %v6292, %v6319
    %v6321 = vcombine.low %v6299, %v6306
    %v6322 = vcombine.low %v6313, %v6320
    %v6324 = vunpack.c.l.s4 1966171168
    %v6325 = vunpack.c.0.s8 %v6324
    %v6326 = vlaneseq
    %v6327 = vshrl.u32 %v6326, 7
    %v6328 = vsub.s32 %v6325, %v6327
    %v6329 = vrot.slane %v6321, %v6328
    %v6331 = vunpack.c.l.s4 1966171168
    %v6332 = vunpack.c.0.s8 %v6331
    %v6333 = vlaneseq
    %v6334 = vshrl.u32 %v6333, 7
    %v6335 = vsub.s32 %v6332, %v6334
    %v6336 = vrot.slane %v6322, %v6335
    %v6337 = vcombine.low %v6329, %v6336
    %v6338 = vcombine.low %v3290, %v3294
    %v6339 = vcombine.low %v3298, %v3302
    %v6340 = vcombine.low %v3306, %v3310
    %v6341 = vcombine.low %v3314, %v3318
    %v6343 = vunpack.c.l.s4 1966171168
    %v6344 = vunpack.c.0.s8 %v6343
    %v6345 = vlaneseq
    %v6346 = vshrl.u32 %v6345, 7
    %v6347 = vsub.s32 %v6344, %v6346
    %v6348 = vrot.slane %v6338, %v6347
    %v6350 = vunpack.c.l.s4 1966171168
    %v6351 = vunpack.c.0.s8 %v6350
    %v6352 = vlaneseq
    %v6353 = vshrl.u32 %v6352, 7
    %v6354 = vsub.s32 %v6351, %v6353
    %v6355 = vrot.slane %v6339, %v6354
    %v6357 = vunpack.c.l.s4 1966171168
    %v6358 = vunpack.c.0.s8 %v6357
    %v6359 = vlaneseq
    %v6360 = vshrl.u32 %v6359, 7
    %v6361 = vsub.s32 %v6358, %v6360
    %v6362 = vrot.slane %v6340, %v6361
    %v6364 = vunpack.c.l.s4 1966171168
    %v6365 = vunpack.c.0.s8 %v6364
    %v6366 = vlaneseq
    %v6367 = vshrl.u32 %v6366, 7
    %v6368 = vsub.s32 %v6365, %v6367
    %v6369 = vrot.slane %v6341, %v6368
    %v6370 = vcombine.low %v6348, %v6355
    %v6371 = vcombine.low %v6362, %v6369
    %v6373 = vunpack.c.l.s4 1966171168
    %v6374 = vunpack.c.0.s8 %v6373
    %v6375 = vlaneseq
    %v6376 = vshrl.u32 %v6375, 7
    %v6377 = vsub.s32 %v6374, %v6376
    %v6378 = vrot.slane %v6370, %v6377
    %v6380 = vunpack.c.l.s4 1966171168
    %v6381 = vunpack.c.0.s8 %v6380
    %v6382 = vlaneseq
    %v6383 = vshrl.u32 %v6382, 7
    %v6384 = vsub.s32 %v6381, %v6383
    %v6385 = vrot.slane %v6371, %v6384
    %v6386 = vcombine.low %v6378, %v6385
    %v6387 = vcombine.low %v3322, %v3326
    %v6388 = vcombine.low %v3330, %v3334
    %v6389 = vcombine.low %v3338, %v3342
    %v6390 = vcombine.low %v3346, %v3350
    %v6392 = vunpack.c.l.s4 1966171168
    %v6393 = vunpack.c.0.s8 %v6392
    %v6394 = vlaneseq
    %v6395 = vshrl.u32 %v6394, 7
    %v6396 = vsub.s32 %v6393, %v6395
    %v6397 = vrot.slane %v6387, %v6396
    %v6399 = vunpack.c.l.s4 1966171168
    %v6400 = vunpack.c.0.s8 %v6399
    %v6401 = vlaneseq
    %v6402 = vshrl.u32 %v6401, 7
    %v6403 = vsub.s32 %v6400, %v6402
    %v6404 = vrot.slane %v6388, %v6403
    %v6406 = vunpack.c.l.s4 1966171168
    %v6407 = vunpack.c.0.s8 %v6406
    %v6408 = vlaneseq
    %v6409 = vshrl.u32 %v6408, 7
    %v6410 = vsub.s32 %v6407, %v6409
    %v6411 = vrot.slane %v6389, %v6410
    %v6413 = vunpack.c.l.s4 1966171168
    %v6414 = vunpack.c.0.s8 %v6413
    %v6415 = vlaneseq
    %v6416 = vshrl.u32 %v6415, 7
    %v6417 = vsub.s32 %v6414, %v6416
    %v6418 = vrot.slane %v6390, %v6417
    %v6419 = vcombine.low %v6397, %v6404
    %v6420 = vcombine.low %v6411, %v6418
    %v6422 = vunpack.c.l.s4 1966171168
    %v6423 = vunpack.c.0.s8 %v6422
    %v6424 = vlaneseq
    %v6425 = vshrl.u32 %v6424, 7
    %v6426 = vsub.s32 %v6423, %v6425
    %v6427 = vrot.slane %v6419, %v6426
    %v6429 = vunpack.c.l.s4 1966171168
    %v6430 = vunpack.c.0.s8 %v6429
    %v6431 = vlaneseq
    %v6432 = vshrl.u32 %v6431, 7
    %v6433 = vsub.s32 %v6430, %v6432
    %v6434 = vrot.slane %v6420, %v6433
    %v6435 = vcombine.low %v6427, %v6434
    %v6436 = vcombine.low %v3354, %v3358
    %v6437 = vcombine.low %v3362, %v3366
    %v6438 = vcombine.low %v3370, %v3374
    %v6439 = vcombine.low %v3378, %v3382
    %v6441 = vunpack.c.l.s4 1966171168
    %v6442 = vunpack.c.0.s8 %v6441
    %v6443 = vlaneseq
    %v6444 = vshrl.u32 %v6443, 7
    %v6445 = vsub.s32 %v6442, %v6444
    %v6446 = vrot.slane %v6436, %v6445
    %v6448 = vunpack.c.l.s4 1966171168
    %v6449 = vunpack.c.0.s8 %v6448
    %v6450 = vlaneseq
    %v6451 = vshrl.u32 %v6450, 7
    %v6452 = vsub.s32 %v6449, %v6451
    %v6453 = vrot.slane %v6437, %v6452
    %v6455 = vunpack.c.l.s4 1966171168
    %v6456 = vunpack.c.0.s8 %v6455
    %v6457 = vlaneseq
    %v6458 = vshrl.u32 %v6457, 7
    %v6459 = vsub.s32 %v6456, %v6458
    %v6460 = vrot.slane %v6438, %v6459
    %v6462 = vunpack.c.l.s4 1966171168
    %v6463 = vunpack.c.0.s8 %v6462
    %v6464 = vlaneseq
    %v6465 = vshrl.u32 %v6464, 7
    %v6466 = vsub.s32 %v6463, %v6465
    %v6467 = vrot.slane %v6439, %v6466
    %v6468 = vcombine.low %v6446, %v6453
    %v6469 = vcombine.low %v6460, %v6467
    %v6471 = vunpack.c.l.s4 1966171168
    %v6472 = vunpack.c.0.s8 %v6471
    %v6473 = vlaneseq
    %v6474 = vshrl.u32 %v6473, 7
    %v6475 = vsub.s32 %v6472, %v6474
    %v6476 = vrot.slane %v6468, %v6475
    %v6478 = vunpack.c.l.s4 1966171168
    %v6479 = vunpack.c.0.s8 %v6478
    %v6480 = vlaneseq
    %v6481 = vshrl.u32 %v6480, 7
    %v6482 = vsub.s32 %v6479, %v6481
    %v6483 = vrot.slane %v6469, %v6482
    %v6484 = vcombine.low %v6476, %v6483
    %v6485 = vcombine.low %v3386, %v3390
    %v6486 = vcombine.low %v3394, %v3398
    %v6487 = vcombine.low %v3402, %v3406
    %v6488 = vcombine.low %v3410, %v3414
    %v6490 = vunpack.c.l.s4 1966171168
    %v6491 = vunpack.c.0.s8 %v6490
    %v6492 = vlaneseq
    %v6493 = vshrl.u32 %v6492, 7
    %v6494 = vsub.s32 %v6491, %v6493
    %v6495 = vrot.slane %v6485, %v6494
    %v6497 = vunpack.c.l.s4 1966171168
    %v6498 = vunpack.c.0.s8 %v6497
    %v6499 = vlaneseq
    %v6500 = vshrl.u32 %v6499, 7
    %v6501 = vsub.s32 %v6498, %v6500
    %v6502 = vrot.slane %v6486, %v6501
    %v6504 = vunpack.c.l.s4 1966171168
    %v6505 = vunpack.c.0.s8 %v6504
    %v6506 = vlaneseq
    %v6507 = vshrl.u32 %v6506, 7
    %v6508 = vsub.s32 %v6505, %v6507
    %v6509 = vrot.slane %v6487, %v6508
    %v6511 = vunpack.c.l.s4 1966171168
    %v6512 = vunpack.c.0.s8 %v6511
    %v6513 = vlaneseq
    %v6514 = vshrl.u32 %v6513, 7
    %v6515 = vsub.s32 %v6512, %v6514
    %v6516 = vrot.slane %v6488, %v6515
    %v6517 = vcombine.low %v6495, %v6502
    %v6518 = vcombine.low %v6509, %v6516
    %v6520 = vunpack.c.l.s4 1966171168
    %v6521 = vunpack.c.0.s8 %v6520
    %v6522 = vlaneseq
    %v6523 = vshrl.u32 %v6522, 7
    %v6524 = vsub.s32 %v6521, %v6523
    %v6525 = vrot.slane %v6517, %v6524
    %v6527 = vunpack.c.l.s4 1966171168
    %v6528 = vunpack.c.0.s8 %v6527
    %v6529 = vlaneseq
    %v6530 = vshrl.u32 %v6529, 7
    %v6531 = vsub.s32 %v6528, %v6530
    %v6532 = vrot.slane %v6518, %v6531
    %v6533 = vcombine.low %v6525, %v6532
    %v6534 = vcombine.low %v3418, %v3422
    %v6535 = vcombine.low %v3426, %v3430
    %v6536 = vcombine.low %v3434, %v3438
    %v6537 = vcombine.low %v3442, %v3446
    %v6539 = vunpack.c.l.s4 1966171168
    %v6540 = vunpack.c.0.s8 %v6539
    %v6541 = vlaneseq
    %v6542 = vshrl.u32 %v6541, 7
    %v6543 = vsub.s32 %v6540, %v6542
    %v6544 = vrot.slane %v6534, %v6543
    %v6546 = vunpack.c.l.s4 1966171168
    %v6547 = vunpack.c.0.s8 %v6546
    %v6548 = vlaneseq
    %v6549 = vshrl.u32 %v6548, 7
    %v6550 = vsub.s32 %v6547, %v6549
    %v6551 = vrot.slane %v6535, %v6550
    %v6553 = vunpack.c.l.s4 1966171168
    %v6554 = vunpack.c.0.s8 %v6553
    %v6555 = vlaneseq
    %v6556 = vshrl.u32 %v6555, 7
    %v6557 = vsub.s32 %v6554, %v6556
    %v6558 = vrot.slane %v6536, %v6557
    %v6560 = vunpack.c.l.s4 1966171168
    %v6561 = vunpack.c.0.s8 %v6560
    %v6562 = vlaneseq
    %v6563 = vshrl.u32 %v6562, 7
    %v6564 = vsub.s32 %v6561, %v6563
    %v6565 = vrot.slane %v6537, %v6564
    %v6566 = vcombine.low %v6544, %v6551
    %v6567 = vcombine.low %v6558, %v6565
    %v6569 = vunpack.c.l.s4 1966171168
    %v6570 = vunpack.c.0.s8 %v6569
    %v6571 = vlaneseq
    %v6572 = vshrl.u32 %v6571, 7
    %v6573 = vsub.s32 %v6570, %v6572
    %v6574 = vrot.slane %v6566, %v6573
    %v6576 = vunpack.c.l.s4 1966171168
    %v6577 = vunpack.c.0.s8 %v6576
    %v6578 = vlaneseq
    %v6579 = vshrl.u32 %v6578, 7
    %v6580 = vsub.s32 %v6577, %v6579
    %v6581 = vrot.slane %v6567, %v6580
    %v6582 = vcombine.low %v6574, %v6581
    %6583 = vset.pattern.permute.xlu0 0
    %6584 = vperm.xlu0 %6583, %v3495
    %v6585 = vpop.permute.xlu0 %6584
    %6586 = vset.pattern.permute.xlu0 0
    %6587 = vperm.xlu0 %6586, %v3544
    %v6588 = vpop.permute.xlu0 %6587
    %6589 = vset.pattern.permute.xlu0 0
    %6590 = vperm.xlu0 %6589, %v3593
    %v6591 = vpop.permute.xlu0 %6590
    %6592 = vset.pattern.permute.xlu0 0
    %6593 = vperm.xlu0 %6592, %v3642
    %v6594 = vpop.permute.xlu0 %6593
    %6595 = vset.pattern.permute.xlu0 0
    %6596 = vperm.xlu0 %6595, %v3691
    %v6597 = vpop.permute.xlu0 %6596
    %6598 = vset.pattern.permute.xlu0 0
    %6599 = vperm.xlu0 %6598, %v3740
    %v6600 = vpop.permute.xlu0 %6599
    %6601 = vset.pattern.permute.xlu0 0
    %6602 = vperm.xlu0 %6601, %v3789
    %v6603 = vpop.permute.xlu0 %6602
    %6604 = vset.pattern.permute.xlu0 0
    %6605 = vperm.xlu0 %6604, %v3838
    %v6606 = vpop.permute.xlu0 %6605
    %6607 = vset.pattern.permute.xlu0 0
    %6608 = vperm.xlu0 %6607, %v3887
    %v6609 = vpop.permute.xlu0 %6608
    %6610 = vset.pattern.permute.xlu0 0
    %6611 = vperm.xlu0 %6610, %v3936
    %v6612 = vpop.permute.xlu0 %6611
    %6613 = vset.pattern.permute.xlu0 0
    %6614 = vperm.xlu0 %6613, %v3985
    %v6615 = vpop.permute.xlu0 %6614
    %6616 = vset.pattern.permute.xlu0 0
    %6617 = vperm.xlu0 %6616, %v4034
    %v6618 = vpop.permute.xlu0 %6617
    %6619 = vset.pattern.permute.xlu0 0
    %6620 = vperm.xlu0 %6619, %v4083
    %v6621 = vpop.permute.xlu0 %6620
    %6622 = vset.pattern.permute.xlu0 0
    %6623 = vperm.xlu0 %6622, %v4132
    %v6624 = vpop.permute.xlu0 %6623
    %6625 = vset.pattern.permute.xlu0 0
    %6626 = vperm.xlu0 %6625, %v4181
    %v6627 = vpop.permute.xlu0 %6626
    %6628 = vset.pattern.permute.xlu0 0
    %6629 = vperm.xlu0 %6628, %v4230
    %v6630 = vpop.permute.xlu0 %6629
    %6631 = vset.pattern.permute.xlu0 0
    %6632 = vperm.xlu0 %6631, %v4279
    %v6633 = vpop.permute.xlu0 %6632
    %6634 = vset.pattern.permute.xlu0 0
    %6635 = vperm.xlu0 %6634, %v4328
    %v6636 = vpop.permute.xlu0 %6635
    %6637 = vset.pattern.permute.xlu0 0
    %6638 = vperm.xlu0 %6637, %v4377
    %v6639 = vpop.permute.xlu0 %6638
    %6640 = vset.pattern.permute.xlu0 0
    %6641 = vperm.xlu0 %6640, %v4426
    %v6642 = vpop.permute.xlu0 %6641
    %6643 = vset.pattern.permute.xlu0 0
    %6644 = vperm.xlu0 %6643, %v4475
    %v6645 = vpop.permute.xlu0 %6644
    %6646 = vset.pattern.permute.xlu0 0
    %6647 = vperm.xlu0 %6646, %v4524
    %v6648 = vpop.permute.xlu0 %6647
    %6649 = vset.pattern.permute.xlu0 0
    %6650 = vperm.xlu0 %6649, %v4573
    %v6651 = vpop.permute.xlu0 %6650
    %6652 = vset.pattern.permute.xlu0 0
    %6653 = vperm.xlu0 %6652, %v4622
    %v6654 = vpop.permute.xlu0 %6653
    %6655 = vset.pattern.permute.xlu0 0
    %6656 = vperm.xlu0 %6655, %v4671
    %v6657 = vpop.permute.xlu0 %6656
    %6658 = vset.pattern.permute.xlu0 0
    %6659 = vperm.xlu0 %6658, %v4720
    %v6660 = vpop.permute.xlu0 %6659
    %6661 = vset.pattern.permute.xlu0 0
    %6662 = vperm.xlu0 %6661, %v4769
    %v6663 = vpop.permute.xlu0 %6662
    %6664 = vset.pattern.permute.xlu0 0
    %6665 = vperm.xlu0 %6664, %v4818
    %v6666 = vpop.permute.xlu0 %6665
    %6667 = vset.pattern.permute.xlu0 0
    %6668 = vperm.xlu0 %6667, %v4867
    %v6669 = vpop.permute.xlu0 %6668
    %6670 = vset.pattern.permute.xlu0 0
    %6671 = vperm.xlu0 %6670, %v4916
    %v6672 = vpop.permute.xlu0 %6671
    %6673 = vset.pattern.permute.xlu0 0
    %6674 = vperm.xlu0 %6673, %v4965
    %v6675 = vpop.permute.xlu0 %6674
    %6676 = vset.pattern.permute.xlu0 0
    %6677 = vperm.xlu0 %6676, %v5014
    %v6678 = vpop.permute.xlu0 %6677
    %6679 = vset.pattern.permute.xlu0 0
    %6680 = vperm.xlu0 %6679, %v5063
    %v6681 = vpop.permute.xlu0 %6680
    %6682 = vset.pattern.permute.xlu0 0
    %6683 = vperm.xlu0 %6682, %v5112
    %v6684 = vpop.permute.xlu0 %6683
    %6685 = vset.pattern.permute.xlu0 0
    %6686 = vperm.xlu0 %6685, %v5161
    %v6687 = vpop.permute.xlu0 %6686
    %6688 = vset.pattern.permute.xlu0 0
    %6689 = vperm.xlu0 %6688, %v5210
    %v6690 = vpop.permute.xlu0 %6689
    %6691 = vset.pattern.permute.xlu0 0
    %6692 = vperm.xlu0 %6691, %v5259
    %v6693 = vpop.permute.xlu0 %6692
    %6694 = vset.pattern.permute.xlu0 0
    %6695 = vperm.xlu0 %6694, %v5308
    %v6696 = vpop.permute.xlu0 %6695
    %6697 = vset.pattern.permute.xlu0 0
    %6698 = vperm.xlu0 %6697, %v5357
    %v6699 = vpop.permute.xlu0 %6698
    %6700 = vset.pattern.permute.xlu0 0
    %6701 = vperm.xlu0 %6700, %v5406
    %v6702 = vpop.permute.xlu0 %6701
    %6703 = vset.pattern.permute.xlu0 0
    %6704 = vperm.xlu0 %6703, %v5455
    %v6705 = vpop.permute.xlu0 %6704
    %6706 = vset.pattern.permute.xlu0 0
    %6707 = vperm.xlu0 %6706, %v5504
    %v6708 = vpop.permute.xlu0 %6707
    %6709 = vset.pattern.permute.xlu0 0
    %6710 = vperm.xlu0 %6709, %v5553
    %v6711 = vpop.permute.xlu0 %6710
    %6712 = vset.pattern.permute.xlu0 0
    %6713 = vperm.xlu0 %6712, %v5602
    %v6714 = vpop.permute.xlu0 %6713
    %6715 = vset.pattern.permute.xlu0 0
    %6716 = vperm.xlu0 %6715, %v5651
    %v6717 = vpop.permute.xlu0 %6716
    %6718 = vset.pattern.permute.xlu0 0
    %6719 = vperm.xlu0 %6718, %v5700
    %v6720 = vpop.permute.xlu0 %6719
    %6721 = vset.pattern.permute.xlu0 0
    %6722 = vperm.xlu0 %6721, %v5749
    %v6723 = vpop.permute.xlu0 %6722
    %6724 = vset.pattern.permute.xlu0 0
    %6725 = vperm.xlu0 %6724, %v5798
    %v6726 = vpop.permute.xlu0 %6725
    %6727 = vset.pattern.permute.xlu0 0
    %6728 = vperm.xlu0 %6727, %v5847
    %v6729 = vpop.permute.xlu0 %6728
    %6730 = vset.pattern.permute.xlu0 0
    %6731 = vperm.xlu0 %6730, %v5896
    %v6732 = vpop.permute.xlu0 %6731
    %6733 = vset.pattern.permute.xlu0 0
    %6734 = vperm.xlu0 %6733, %v5945
    %v6735 = vpop.permute.xlu0 %6734
    %6736 = vset.pattern.permute.xlu0 0
    %6737 = vperm.xlu0 %6736, %v5994
    %v6738 = vpop.permute.xlu0 %6737
    %6739 = vset.pattern.permute.xlu0 0
    %6740 = vperm.xlu0 %6739, %v6043
    %v6741 = vpop.permute.xlu0 %6740
    %6742 = vset.pattern.permute.xlu0 0
    %6743 = vperm.xlu0 %6742, %v6092
    %v6744 = vpop.permute.xlu0 %6743
    %6745 = vset.pattern.permute.xlu0 0
    %6746 = vperm.xlu0 %6745, %v6141
    %v6747 = vpop.permute.xlu0 %6746
    %6748 = vset.pattern.permute.xlu0 0
    %6749 = vperm.xlu0 %6748, %v6190
    %v6750 = vpop.permute.xlu0 %6749
    %6751 = vset.pattern.permute.xlu0 0
    %6752 = vperm.xlu0 %6751, %v6239
    %v6753 = vpop.permute.xlu0 %6752
    %6754 = vset.pattern.permute.xlu0 0
    %6755 = vperm.xlu0 %6754, %v6288
    %v6756 = vpop.permute.xlu0 %6755
    %6757 = vset.pattern.permute.xlu0 0
    %6758 = vperm.xlu0 %6757, %v6337
    %v6759 = vpop.permute.xlu0 %6758
    %6760 = vset.pattern.permute.xlu0 0
    %6761 = vperm.xlu0 %6760, %v6386
    %v6762 = vpop.permute.xlu0 %6761
    %6763 = vset.pattern.permute.xlu0 0
    %6764 = vperm.xlu0 %6763, %v6435
    %v6765 = vpop.permute.xlu0 %6764
    %6766 = vset.pattern.permute.xlu0 0
    %6767 = vperm.xlu0 %6766, %v6484
    %v6768 = vpop.permute.xlu0 %6767
    %6769 = vset.pattern.permute.xlu0 0
    %6770 = vperm.xlu0 %6769, %v6533
    %v6771 = vpop.permute.xlu0 %6770
    %6772 = vset.pattern.permute.xlu0 0
    %6773 = vperm.xlu0 %6772, %v6582
    %v6774 = vpop.permute.xlu0 %6773
    %v6775 = vlaneseq
    %v6776 = vand.u32 %v6775, 127
    %v6777 = vlaneseq
    %v6778 = vshrl.u32 %v6777, 7
    %v6779 = vsub.s32 %v6776, %v6778
    %v6780 = vrot.slane %v6585, %v6779
    %v6781 = vadd.s32 %v6776, 4294967288
    %v6782 = vlaneseq
    %v6783 = vshrl.u32 %v6782, 7
    %v6784 = vsub.s32 %v6781, %v6783
    %v6785 = vrot.slane %v6588, %v6784
    %vm6786 = vcmask 130112
    %v6787 = vsel %vm6786, %v6785, %v6780
    %v6788 = vadd.s32 %v6776, 4294967280
    %v6789 = vlaneseq
    %v6790 = vshrl.u32 %v6789, 7
    %v6791 = vsub.s32 %v6788, %v6790
    %v6792 = vrot.slane %v6591, %v6791
    %vm6793 = vcmask 195712
    %v6794 = vsel %vm6793, %v6792, %v6787
    %v6795 = vadd.s32 %v6776, 4294967272
    %v6796 = vlaneseq
    %v6797 = vshrl.u32 %v6796, 7
    %v6798 = vsub.s32 %v6795, %v6797
    %v6799 = vrot.slane %v6594, %v6798
    %vm6800 = vcmask 261312
    %v6801 = vsel %vm6800, %v6799, %v6794
    %v6802 = vadd.s32 %v6776, 4294967264
    %v6803 = vlaneseq
    %v6804 = vshrl.u32 %v6803, 7
    %v6805 = vsub.s32 %v6802, %v6804
    %v6806 = vrot.slane %v6597, %v6805
    %vm6807 = vcmask 326912
    %v6808 = vsel %vm6807, %v6806, %v6801
    %v6809 = vadd.s32 %v6776, 4294967256
    %v6810 = vlaneseq
    %v6811 = vshrl.u32 %v6810, 7
    %v6812 = vsub.s32 %v6809, %v6811
    %v6813 = vrot.slane %v6600, %v6812
    %vm6814 = vcmask 392512
    %v6815 = vsel %vm6814, %v6813, %v6808
    %v6816 = vadd.s32 %v6776, 4294967248
    %v6817 = vlaneseq
    %v6818 = vshrl.u32 %v6817, 7
    %v6819 = vsub.s32 %v6816, %v6818
    %v6820 = vrot.slane %v6603, %v6819
    %vm6821 = vcmask 458112
    %v6822 = vsel %vm6821, %v6820, %v6815
    %v6823 = vadd.s32 %v6776, 4294967240
    %v6824 = vlaneseq
    %v6825 = vshrl.u32 %v6824, 7
    %v6826 = vsub.s32 %v6823, %v6825
    %v6827 = vrot.slane %v6606, %v6826
    %vm6828 = vcmask 523712
    %v6829 = vsel %vm6828, %v6827, %v6822
    %v6830 = vadd.s32 %v6776, 4294967232
    %v6831 = vlaneseq
    %v6832 = vshrl.u32 %v6831, 7
    %v6833 = vsub.s32 %v6830, %v6832
    %v6834 = vrot.slane %v6609, %v6833
    %vm6835 = vcmask 589312
    %v6836 = vsel %vm6835, %v6834, %v6829
    %v6837 = vadd.s32 %v6776, 4294967224
    %v6838 = vlaneseq
    %v6839 = vshrl.u32 %v6838, 7
    %v6840 = vsub.s32 %v6837, %v6839
    %v6841 = vrot.slane %v6612, %v6840
    %vm6842 = vcmask 654912
    %v6843 = vsel %vm6842, %v6841, %v6836
    %v6844 = vadd.s32 %v6776, 4294967216
    %v6845 = vlaneseq
    %v6846 = vshrl.u32 %v6845, 7
    %v6847 = vsub.s32 %v6844, %v6846
    %v6848 = vrot.slane %v6615, %v6847
    %vm6849 = vcmask 720512
    %v6850 = vsel %vm6849, %v6848, %v6843
    %v6851 = vadd.s32 %v6776, 4294967208
    %v6852 = vlaneseq
    %v6853 = vshrl.u32 %v6852, 7
    %v6854 = vsub.s32 %v6851, %v6853
    %v6855 = vrot.slane %v6618, %v6854
    %vm6856 = vcmask 786112
    %v6857 = vsel %vm6856, %v6855, %v6850
    %v6858 = vadd.s32 %v6776, 4294967200
    %v6859 = vlaneseq
    %v6860 = vshrl.u32 %v6859, 7
    %v6861 = vsub.s32 %v6858, %v6860
    %v6862 = vrot.slane %v6621, %v6861
    %vm6863 = vcmask 851712
    %v6864 = vsel %vm6863, %v6862, %v6857
    %v6865 = vadd.s32 %v6776, 4294967192
    %v6866 = vlaneseq
    %v6867 = vshrl.u32 %v6866, 7
    %v6868 = vsub.s32 %v6865, %v6867
    %v6869 = vrot.slane %v6624, %v6868
    %vm6870 = vcmask 917312
    %v6871 = vsel %vm6870, %v6869, %v6864
    %v6872 = vadd.s32 %v6776, 4294967184
    %v6873 = vlaneseq
    %v6874 = vshrl.u32 %v6873, 7
    %v6875 = vsub.s32 %v6872, %v6874
    %v6876 = vrot.slane %v6627, %v6875
    %vm6877 = vcmask 982912
    %v6878 = vsel %vm6877, %v6876, %v6871
    %v6879 = vadd.s32 %v6776, 4294967176
    %v6880 = vlaneseq
    %v6881 = vshrl.u32 %v6880, 7
    %v6882 = vsub.s32 %v6879, %v6881
    %v6883 = vrot.slane %v6630, %v6882
    %vm6884 = vcmask 1048512
    %v6885 = vsel %vm6884, %v6883, %v6878
    %v6886 = vlaneseq
    %v6887 = vshrl.u32 %v6886, 7
    %v6888 = vsub.s32 %v6776, %v6887
    %v6889 = vrot.slane %v6633, %v6888
    %v6890 = vlaneseq
    %v6891 = vshrl.u32 %v6890, 7
    %v6892 = vsub.s32 %v6781, %v6891
    %v6893 = vrot.slane %v6636, %v6892
    %v6894 = vsel %vm6786, %v6893, %v6889
    %v6895 = vlaneseq
    %v6896 = vshrl.u32 %v6895, 7
    %v6897 = vsub.s32 %v6788, %v6896
    %v6898 = vrot.slane %v6639, %v6897
    %v6899 = vsel %vm6793, %v6898, %v6894
    %v6900 = vlaneseq
    %v6901 = vshrl.u32 %v6900, 7
    %v6902 = vsub.s32 %v6795, %v6901
    %v6903 = vrot.slane %v6642, %v6902
    %v6904 = vsel %vm6800, %v6903, %v6899
    %v6905 = vlaneseq
    %v6906 = vshrl.u32 %v6905, 7
    %v6907 = vsub.s32 %v6802, %v6906
    %v6908 = vrot.slane %v6645, %v6907
    %v6909 = vsel %vm6807, %v6908, %v6904
    %v6910 = vlaneseq
    %v6911 = vshrl.u32 %v6910, 7
    %v6912 = vsub.s32 %v6809, %v6911
    %v6913 = vrot.slane %v6648, %v6912
    %v6914 = vsel %vm6814, %v6913, %v6909
    %v6915 = vlaneseq
    %v6916 = vshrl.u32 %v6915, 7
    %v6917 = vsub.s32 %v6816, %v6916
    %v6918 = vrot.slane %v6651, %v6917
    %v6919 = vsel %vm6821, %v6918, %v6914
    %v6920 = vlaneseq
    %v6921 = vshrl.u32 %v6920, 7
    %v6922 = vsub.s32 %v6823, %v6921
    %v6923 = vrot.slane %v6654, %v6922
    %v6924 = vsel %vm6828, %v6923, %v6919
    %v6925 = vlaneseq
    %v6926 = vshrl.u32 %v6925, 7
    %v6927 = vsub.s32 %v6830, %v6926
    %v6928 = vrot.slane %v6657, %v6927
    %v6929 = vsel %vm6835, %v6928, %v6924
    %v6930 = vlaneseq
    %v6931 = vshrl.u32 %v6930, 7
    %v6932 = vsub.s32 %v6837, %v6931
    %v6933 = vrot.slane %v6660, %v6932
    %v6934 = vsel %vm6842, %v6933, %v6929
    %v6935 = vlaneseq
    %v6936 = vshrl.u32 %v6935, 7
    %v6937 = vsub.s32 %v6844, %v6936
    %v6938 = vrot.slane %v6663, %v6937
    %v6939 = vsel %vm6849, %v6938, %v6934
    %v6940 = vlaneseq
    %v6941 = vshrl.u32 %v6940, 7
    %v6942 = vsub.s32 %v6851, %v6941
    %v6943 = vrot.slane %v6666, %v6942
    %v6944 = vsel %vm6856, %v6943, %v6939
    %v6945 = vlaneseq
    %v6946 = vshrl.u32 %v6945, 7
    %v6947 = vsub.s32 %v6858, %v6946
    %v6948 = vrot.slane %v6669, %v6947
    %v6949 = vsel %vm6863, %v6948, %v6944
    %v6950 = vlaneseq
    %v6951 = vshrl.u32 %v6950, 7
    %v6952 = vsub.s32 %v6865, %v6951
    %v6953 = vrot.slane %v6672, %v6952
    %v6954 = vsel %vm6870, %v6953, %v6949
    %v6955 = vlaneseq
    %v6956 = vshrl.u32 %v6955, 7
    %v6957 = vsub.s32 %v6872, %v6956
    %v6958 = vrot.slane %v6675, %v6957
    %v6959 = vsel %vm6877, %v6958, %v6954
    %v6960 = vlaneseq
    %v6961 = vshrl.u32 %v6960, 7
    %v6962 = vsub.s32 %v6879, %v6961
    %v6963 = vrot.slane %v6678, %v6962
    %v6964 = vsel %vm6884, %v6963, %v6959
    %v6965 = vlaneseq
    %v6966 = vshrl.u32 %v6965, 7
    %v6967 = vsub.s32 %v6776, %v6966
    %v6968 = vrot.slane %v6681, %v6967
    %v6969 = vlaneseq
    %v6970 = vshrl.u32 %v6969, 7
    %v6971 = vsub.s32 %v6781, %v6970
    %v6972 = vrot.slane %v6684, %v6971
    %v6973 = vsel %vm6786, %v6972, %v6968
    %v6974 = vlaneseq
    %v6975 = vshrl.u32 %v6974, 7
    %v6976 = vsub.s32 %v6788, %v6975
    %v6977 = vrot.slane %v6687, %v6976
    %v6978 = vsel %vm6793, %v6977, %v6973
    %v6979 = vlaneseq
    %v6980 = vshrl.u32 %v6979, 7
    %v6981 = vsub.s32 %v6795, %v6980
    %v6982 = vrot.slane %v6690, %v6981
    %v6983 = vsel %vm6800, %v6982, %v6978
    %v6984 = vlaneseq
    %v6985 = vshrl.u32 %v6984, 7
    %v6986 = vsub.s32 %v6802, %v6985
    %v6987 = vrot.slane %v6693, %v6986
    %v6988 = vsel %vm6807, %v6987, %v6983
    %v6989 = vlaneseq
    %v6990 = vshrl.u32 %v6989, 7
    %v6991 = vsub.s32 %v6809, %v6990
    %v6992 = vrot.slane %v6696, %v6991
    %v6993 = vsel %vm6814, %v6992, %v6988
    %v6994 = vlaneseq
    %v6995 = vshrl.u32 %v6994, 7
    %v6996 = vsub.s32 %v6816, %v6995
    %v6997 = vrot.slane %v6699, %v6996
    %v6998 = vsel %vm6821, %v6997, %v6993
    %v6999 = vlaneseq
    %v7000 = vshrl.u32 %v6999, 7
    %v7001 = vsub.s32 %v6823, %v7000
    %v7002 = vrot.slane %v6702, %v7001
    %v7003 = vsel %vm6828, %v7002, %v6998
    %v7004 = vlaneseq
    %v7005 = vshrl.u32 %v7004, 7
    %v7006 = vsub.s32 %v6830, %v7005
    %v7007 = vrot.slane %v6705, %v7006
    %v7008 = vsel %vm6835, %v7007, %v7003
    %v7009 = vlaneseq
    %v7010 = vshrl.u32 %v7009, 7
    %v7011 = vsub.s32 %v6837, %v7010
    %v7012 = vrot.slane %v6708, %v7011
    %v7013 = vsel %vm6842, %v7012, %v7008
    %v7014 = vlaneseq
    %v7015 = vshrl.u32 %v7014, 7
    %v7016 = vsub.s32 %v6844, %v7015
    %v7017 = vrot.slane %v6711, %v7016
    %v7018 = vsel %vm6849, %v7017, %v7013
    %v7019 = vlaneseq
    %v7020 = vshrl.u32 %v7019, 7
    %v7021 = vsub.s32 %v6851, %v7020
    %v7022 = vrot.slane %v6714, %v7021
    %v7023 = vsel %vm6856, %v7022, %v7018
    %v7024 = vlaneseq
    %v7025 = vshrl.u32 %v7024, 7
    %v7026 = vsub.s32 %v6858, %v7025
    %v7027 = vrot.slane %v6717, %v7026
    %v7028 = vsel %vm6863, %v7027, %v7023
    %v7029 = vlaneseq
    %v7030 = vshrl.u32 %v7029, 7
    %v7031 = vsub.s32 %v6865, %v7030
    %v7032 = vrot.slane %v6720, %v7031
    %v7033 = vsel %vm6870, %v7032, %v7028
    %v7034 = vlaneseq
    %v7035 = vshrl.u32 %v7034, 7
    %v7036 = vsub.s32 %v6872, %v7035
    %v7037 = vrot.slane %v6723, %v7036
    %v7038 = vsel %vm6877, %v7037, %v7033
    %v7039 = vlaneseq
    %v7040 = vshrl.u32 %v7039, 7
    %v7041 = vsub.s32 %v6879, %v7040
    %v7042 = vrot.slane %v6726, %v7041
    %v7043 = vsel %vm6884, %v7042, %v7038
    %v7044 = vlaneseq
    %v7045 = vshrl.u32 %v7044, 7
    %v7046 = vsub.s32 %v6776, %v7045
    %v7047 = vrot.slane %v6729, %v7046
    %v7048 = vlaneseq
    %v7049 = vshrl.u32 %v7048, 7
    %v7050 = vsub.s32 %v6781, %v7049
    %v7051 = vrot.slane %v6732, %v7050
    %v7052 = vsel %vm6786, %v7051, %v7047
    %v7053 = vlaneseq
    %v7054 = vshrl.u32 %v7053, 7
    %v7055 = vsub.s32 %v6788, %v7054
    %v7056 = vrot.slane %v6735, %v7055
    %v7057 = vsel %vm6793, %v7056, %v7052
    %v7058 = vlaneseq
    %v7059 = vshrl.u32 %v7058, 7
    %v7060 = vsub.s32 %v6795, %v7059
    %v7061 = vrot.slane %v6738, %v7060
    %v7062 = vsel %vm6800, %v7061, %v7057
    %v7063 = vlaneseq
    %v7064 = vshrl.u32 %v7063, 7
    %v7065 = vsub.s32 %v6802, %v7064
    %v7066 = vrot.slane %v6741, %v7065
    %v7067 = vsel %vm6807, %v7066, %v7062
    %v7068 = vlaneseq
    %v7069 = vshrl.u32 %v7068, 7
    %v7070 = vsub.s32 %v6809, %v7069
    %v7071 = vrot.slane %v6744, %v7070
    %v7072 = vsel %vm6814, %v7071, %v7067
    %v7073 = vlaneseq
    %v7074 = vshrl.u32 %v7073, 7
    %v7075 = vsub.s32 %v6816, %v7074
    %v7076 = vrot.slane %v6747, %v7075
    %v7077 = vsel %vm6821, %v7076, %v7072
    %v7078 = vlaneseq
    %v7079 = vshrl.u32 %v7078, 7
    %v7080 = vsub.s32 %v6823, %v7079
    %v7081 = vrot.slane %v6750, %v7080
    %v7082 = vsel %vm6828, %v7081, %v7077
    %v7083 = vlaneseq
    %v7084 = vshrl.u32 %v7083, 7
    %v7085 = vsub.s32 %v6830, %v7084
    %v7086 = vrot.slane %v6753, %v7085
    %v7087 = vsel %vm6835, %v7086, %v7082
    %v7088 = vlaneseq
    %v7089 = vshrl.u32 %v7088, 7
    %v7090 = vsub.s32 %v6837, %v7089
    %v7091 = vrot.slane %v6756, %v7090
    %v7092 = vsel %vm6842, %v7091, %v7087
    %v7093 = vlaneseq
    %v7094 = vshrl.u32 %v7093, 7
    %v7095 = vsub.s32 %v6844, %v7094
    %v7096 = vrot.slane %v6759, %v7095
    %v7097 = vsel %vm6849, %v7096, %v7092
    %v7098 = vlaneseq
    %v7099 = vshrl.u32 %v7098, 7
    %v7100 = vsub.s32 %v6851, %v7099
    %v7101 = vrot.slane %v6762, %v7100
    %v7102 = vsel %vm6856, %v7101, %v7097
    %v7103 = vlaneseq
    %v7104 = vshrl.u32 %v7103, 7
    %v7105 = vsub.s32 %v6858, %v7104
    %v7106 = vrot.slane %v6765, %v7105
    %v7107 = vsel %vm6863, %v7106, %v7102
    %v7108 = vlaneseq
    %v7109 = vshrl.u32 %v7108, 7
    %v7110 = vsub.s32 %v6865, %v7109
    %v7111 = vrot.slane %v6768, %v7110
    %v7112 = vsel %vm6870, %v7111, %v7107
    %v7113 = vlaneseq
    %v7114 = vshrl.u32 %v7113, 7
    %v7115 = vsub.s32 %v6872, %v7114
    %v7116 = vrot.slane %v6771, %v7115
    %v7117 = vsel %vm6877, %v7116, %v7112
    %v7118 = vlaneseq
    %v7119 = vshrl.u32 %v7118, 7
    %v7120 = vsub.s32 %v6879, %v7119
    %v7121 = vrot.slane %v6774, %v7120
    %v7122 = vsel %vm6884, %v7121, %v7117
    %v7123 = vcombine.low %v6885, %v6964
    %v7124 = vcombine.low %v7043, %v7122
    %v7126 = vunpack.c.l.s4 1966171168
    %v7127 = vunpack.c.0.s8 %v7126
    %v7128 = vlaneseq
    %v7129 = vshrl.u32 %v7128, 7
    %v7130 = vsub.s32 %v7127, %v7129
    %v7131 = vrot.slane %v7123, %v7130
    %v7133 = vunpack.c.l.s4 1966171168
    %v7134 = vunpack.c.0.s8 %v7133
    %v7135 = vlaneseq
    %v7136 = vshrl.u32 %v7135, 7
    %v7137 = vsub.s32 %v7134, %v7136
    %v7138 = vrot.slane %v7124, %v7137
    %v7139 = vcombine.low %v7131, %v7138
    %v7141 = vunpack.c.l.s4 1966171168
    %v7142 = vunpack.c.0.s8 %v7141
    %v7143 = vlaneseq
    %v7144 = vshrl.u32 %v7143, 7
    %v7145 = vsub.s32 %v7142, %v7144
    %v7146 = vrot.slane %v7139, %v7145
    %v7148 = vlaneseq
    %vm7149 = vcmp.ge.s32.totalorder %v7148, 0
    %vm7150 = vcmp.lt.s32.totalorder %v7148, 512
    %vm7151 = vmand %vm7149, %vm7150
    %7152 = vst.msk [vmem:[#allocation3] sm:$0xf] %vm7151, %v7146
    // Predicated region
    $region30: #{tpu_custom_call.1} parent=1 // pred_check
      _
    $region31: #{tpu_custom_call.1} parent=1 // pred_check_branch
      %7154 = sbr.rel (0) target = $region33
    $region32: #{tpu_custom_call.1} parent=1 // pred_region
      %s7156 = ssub.s32 64, 64
      %7157 = vsyncadd [#allocation4], %s7156
      %s7159 = sshll.u32 [#allocation3], 4
      %s7160 = int_to_ptr.vmem [resolvable:$true] %s7159
      %7162 = dma.vmem_to_hbm [thread:$0]  %s7160, 64, %s7, [#allocation4]
    $region33: #{tpu_custom_call.1} parent=1 // pred_fallthru
      _
    // Predicated region
    $region34: #{tpu_custom_call.1} parent=1 // pred_check
      _
    $region35: #{tpu_custom_call.1} parent=1 // pred_check_branch
      %7164 = sbr.rel (0) target = $region37
    $region36: #{tpu_custom_call.1} parent=1 // pred_region
      %7165 = dma.done [#allocation4], 64
    $region37: #{tpu_custom_call.1} parent=1 // pred_fallthru
      _
    %7166 = vsyncpa [#allocation4], 1

</llo_original>
